<compile_context>
chip_gen: v6e
topology: v6e:2x2x1
jax: 0.10.0
libtpu: 0.0.40
codegen_flags: <defaults>
</compile_context>

<pallas_src>
import functools

import jax
import jax.numpy as jnp
from jax.experimental import pallas as pl
from jax.experimental.pallas import tpu as pltpu

_APPROX_RECIP = False   # exact 1/x for parity with torch.softmax; flip for EUP approx


def _round_up(n, m):
    return ((n + m - 1) // m) * m


def _pick_hw_tile(hw):
    # Prefer a tile that gives >= 2 pipeline steps per batch; fall back to full HW.
    for t in (512, 256, 128):
        if hw % t == 0 and hw // t >= 2:
            return t
    for t in (512, 256, 128):
        if hw % t == 0:
            return t
    return hw


# --------------------- 1x1 qkv conv: NCHW in -> bf16 NHWC rows out ---------------------
def _qkv_conv_kernel(x_ref, w_ref, o_ref):
    # x_ref: (dim, hw_t) f32 slab of NCHW input; w_ref: (dim, Cq_pad) bf16 (pre-padded).
    # o = x^T @ w -> (hw_t, Cq_pad); f32 accumulate, bf16 store (halves HBM traffic).
    # NOTE: axis-0 contraction on the LHS may insert an in-kernel transpose; with
    #       K = dim (small) this is below the MXU height anyway (architectural floor).
    o_ref[...] = jax.lax.dot_general(
        x_ref[...].astype(jnp.bfloat16), w_ref[...],
        (((0,), (0,)), ((), ())),
        preferred_element_type=jnp.float32,
    ).astype(o_ref.dtype)


# ------------------ 1x1 project_out conv: bf16 rows in -> f32 NCHW out -----------------
def _proj_conv_kernel(x_ref, wT_ref, o_ref):
    # x_ref: (hw_t, dim_pad) bf16 rows; wT_ref: (dim, dim_pad) bf16 (padded Cin cols = 0)
    # o = wT @ x^T -> (dim, hw_t); hw_t is a multiple of 128 -> lane-dense stores.
    o_ref[...] = jax.lax.dot_general(
        wT_ref[...], x_ref[...],
        (((1,), (1,)), ((), ())),
        preferred_element_type=jnp.float32,
    ).astype(o_ref.dtype)


# --------------- fused depthwise 3x3 conv + TTSA attention (one batch/step) ------------
def _dwconv_ttsa_kernel(wts_ref, temp_ref, mask_ref, x_ref, wdw_ref, o_ref,
                        pad_scr, rows_scr, *, num_heads, dim, dim_pad, topks, H, W):
    # wts_ref : (4,) f32 SMEM          attn1..attn4 branch weights
    # temp_ref: (dim, 1) f32           per-row temperature (repeated per head)
    # mask_ref: (dim, dim) f32         0 on diagonal head blocks, -inf elsewhere
    # x_ref   : (H, W, Cq_pad) bf16    qkv 1x1-conv output (NHWC, lane-dense)
    # wdw_ref : (9, Cq_pad) f32        depthwise taps, tap-major
    # o_ref   : (HW, dim_pad) bf16     attention rows (feeds project_out directly)
    # pad_scr : (H+2, W+2, Cq_pad) f32 VMEM, spatially padded dw input
    # rows_scr: (HW, Cq_pad) bf16 VMEM, dw output rows (attention input)
    C = dim // num_heads

    # ---- depthwise 3x3 conv (stride 1, pad 1); border zero-padded in VMEM: no host
    #      jnp.pad pass and no HBM round trip for the dw output (fused with attention).
    pad_scr[...] = jnp.zeros_like(pad_scr)
    pad_scr[1:H + 1, 1:W + 1, :] = x_ref[...].astype(pad_scr.dtype)
    taps = [wdw_ref[t] for t in range(9)]                    # hoisted tap loads
    # TODO(synk): dx in {0, 2} tap reads are sublane-misaligned re-slices; move the
    #             W-shift onto the XLU with pltpu.roll (+ border mask) once validated
    #             at small W, and stripe H with a 1-row halo for production images
    #             (v7x 64 MiB VMEM).
    for y in range(H):
        acc = jnp.zeros((W, pad_scr.shape[-1]), jnp.float32)
        for t in range(9):
            dy, dx = divmod(t, 3)
            acc = acc + pad_scr[y + dy, dx:dx + W, :] * taps[t]
        rows_scr[y * W:(y + 1) * W, :] = acc.astype(rows_scr.dtype)   # aligned (W % 8 == 0)

    # ---------------- TTSA channel attention, all heads in one matmul ----------------
    q = rows_scr[:, 0:dim].astype(jnp.float32)               # (HW, dim)
    k = rows_scr[:, dim:2 * dim].astype(jnp.float32)
    # F.normalize(dim=-1) over the spatial axis: x / max(||x||, 1e-12)
    qn = (q * jax.lax.rsqrt(jnp.maximum(jnp.sum(q * q, axis=0, keepdims=True), 1e-24))
          ).astype(jnp.bfloat16)
    kn = (k * jax.lax.rsqrt(jnp.maximum(jnp.sum(k * k, axis=0, keepdims=True), 1e-24))
          ).astype(jnp.bfloat16)

    # One dim-wide gram matmul (streams HW once for every head), temperature scale and
    # additive -inf mask on the off-diagonal head blocks.
    attn = jax.lax.dot_general(qn, kn, (((0,), (0,)), ((), ())),
                               preferred_element_type=jnp.float32)        # (dim, dim)
    attn = attn * temp_ref[...] + mask_ref[...]

    # Top-k thresholds from the compact diagonal blocks (the rank loop never runs at
    # full (dim, dim) width).  Ties keep all equal values (torch.topk keeps exactly k).
    blk = jnp.concatenate(
        [attn[h * C:(h + 1) * C, h * C:(h + 1) * C] for h in range(num_heads)],
        axis=0)                                                           # (dim, C)
    rank = jnp.zeros_like(blk)
    for m in range(C):
        rank = rank + (blk[:, m:m + 1] > blk).astype(jnp.float32)
    # TODO(synk): swap the column loop for a pltpu.roll pairwise compare (XLU slot)
    #             once roll is validated for lane widths < 128.

    # Fused 4-branch masked softmax: masks are nested and always contain the row max, so
    #   sum_i w_i * softmax(mask_i(attn)) == ((sum_i w_i * msk_i / denom_i) * e) with
    #   e = exp(attn - rowmax)  -> one exp / one weighting instead of four passes.
    row_max = jnp.max(attn, axis=-1, keepdims=True)
    e = jnp.exp(attn - row_max)                               # exp(-inf) == 0 off-block
    coeff = jnp.zeros_like(attn)
    for i, kk in enumerate(topks):
        tau = jnp.min(jnp.where(rank < float(kk), blk, jnp.inf), axis=-1, keepdims=True)
        msk = (attn >= tau).astype(jnp.float32)               # 0 off-block (-inf < tau)
        denom = jnp.sum(msk * e, axis=-1, keepdims=True)
        coeff = coeff + wts_ref[i] * (msk * pl.reciprocal(denom, approx=_APPROX_RECIP))
    p = coeff * e                                             # block-diagonal weights

    # Zero-pad P to (dim_pad, dim) so the single output matmul writes one lane-dense
    # (HW, dim_pad) block; padded columns are exactly zero for project_out.
    if dim_pad != dim:
        p = jnp.concatenate([p, jnp.zeros((dim_pad - dim, dim), jnp.float32)], axis=0)
    v = rows_scr[:, 2 * dim:3 * dim]                          # (HW, dim) bf16
    o_ref[...] = jax.lax.dot_general(
        v, p.astype(jnp.bfloat16), (((1,), (1,)), ((), ())),
        preferred_element_type=jnp.float32,
    ).astype(o_ref.dtype)


# ------------------------------------ full forward --------------------------------------
def attention_forward(x, params, num_heads):
    # x: (B, dim, H, W) NCHW, exactly like the PyTorch module.
    B, dim, H, W = x.shape
    HW = H * W
    assert dim % num_heads == 0
    assert W % 8 == 0, "sublane-aligned dwconv row stores assume W % 8 == 0"
    C = dim // num_heads
    Cq = 3 * dim
    Cq_pad = _round_up(Cq, 128)
    dim_pad = _round_up(dim, 128)
    hw_t = _pick_hw_tile(HW)

    # ---- weights: pre-cast to bf16 / pre-pad to lane-dense shapes once ----
    w_qkv = params["w_qkv"].astype(jnp.bfloat16)                  # (dim, 3*dim)
    if Cq_pad != Cq:
        w_qkv = jnp.pad(w_qkv, ((0, 0), (0, Cq_pad - Cq)))
    w_dw = params["w_dw"]                                         # (9, 3*dim), keep f32 taps
    if Cq_pad != Cq:
        w_dw = jnp.pad(w_dw, ((0, 0), (0, Cq_pad - Cq)))
    w_projT = params["w_proj"].T.astype(jnp.bfloat16)             # (Cout, Cin)
    if dim_pad != dim:
        w_projT = jnp.pad(w_projT, ((0, 0), (0, dim_pad - dim)))
    temp_rows = jnp.repeat(params["temperature"].astype(jnp.float32), C).reshape(dim, 1)
    hid = jnp.arange(dim) // C
    block_mask = jnp.where(hid[:, None] == hid[None, :], 0.0, -jnp.inf).astype(jnp.float32)
    topks = (C // 2, (C * 2) // 3, (C * 3) // 4, (C * 4) // 5)    # == int(C * frac)

    # 1) qkv 1x1 conv: NCHW in -> lane-dense bf16 NHWC rows, HW-tiled for pipelining.
    x3 = x.reshape(B, dim, HW)
    qkv_rows = pl.pallas_call(
        _qkv_conv_kernel,
        out_shape=jax.ShapeDtypeStruct((B, HW, Cq_pad), jnp.bfloat16),
        grid=(B, HW // hw_t),
        in_specs=[pl.BlockSpec((None, dim, hw_t), lambda b, t: (b, 0, t)),
                  pl.BlockSpec((dim, Cq_pad), lambda b, t: (0, 0))],
        out_specs=pl.BlockSpec((None, hw_t, Cq_pad), lambda b, t: (b, t, 0)),
        compiler_params=pltpu.CompilerParams(
            dimension_semantics=("parallel", "parallel")),
    )(x3, w_qkv)

    # 2) fused depthwise 3x3 conv + TTSA attention: one grid step per batch element.
    # TODO(synk): for production feature maps add an HW/H stripe (attention needs full
    #             HW for the normalization/gram, so this is a two-pass accumulation).
    kern = functools.partial(_dwconv_ttsa_kernel, num_heads=num_heads, dim=dim,
                             dim_pad=dim_pad, topks=topks, H=H, W=W)
    attn_rows = pl.pallas_call(
        kern,
        out_shape=jax.ShapeDtypeStruct((B, HW, dim_pad), jnp.bfloat16),
        grid=(B,),
        in_specs=[pl.BlockSpec(memory_space=pltpu.MemorySpace.SMEM),            # attn1..4
                  pl.BlockSpec((dim, 1), lambda b: (0, 0)),                     # temperature
                  pl.BlockSpec((dim, dim), lambda b: (0, 0)),                   # head mask
                  pl.BlockSpec((None, H, W, Cq_pad), lambda b: (b, 0, 0, 0)),   # qkv rows
                  pl.BlockSpec((9, Cq_pad), lambda b: (0, 0))],                 # dw taps
        out_specs=pl.BlockSpec((None, HW, dim_pad), lambda b: (b, 0, 0)),
        scratch_shapes=[pltpu.VMEM((H + 2, W + 2, Cq_pad), jnp.float32),
                        pltpu.VMEM((HW, Cq_pad), jnp.bfloat16)],
        compiler_params=pltpu.CompilerParams(dimension_semantics=("parallel",)),
    )(params["attn_w"], temp_rows, block_mask, qkv_rows.reshape(B, H, W, Cq_pad), w_dw)

    # 3) project_out 1x1 conv: bf16 rows in -> f32 NCHW out, HW-tiled.
    out = pl.pallas_call(
        _proj_conv_kernel,
        out_shape=jax.ShapeDtypeStruct((B, dim, HW), jnp.float32),
        grid=(B, HW // hw_t),
        in_specs=[pl.BlockSpec((None, hw_t, dim_pad), lambda b, t: (b, t, 0)),
                  pl.BlockSpec((dim, dim_pad), lambda b, t: (0, 0))],
        out_specs=pl.BlockSpec((None, dim, hw_t), lambda b, t: (b, 0, t)),
        compiler_params=pltpu.CompilerParams(
            dimension_semantics=("parallel", "parallel")),
    )(attn_rows, w_projT)

    return out.reshape(B, dim, H, W)


# ------------------------------------ main ------------------------------------------
if __name__ == "__main__":
    B, dim, H, W = 2, 32, 16, 16
    num_heads = 4

    key = jax.random.PRNGKey(0)
    kx, k1, k2, k3 = jax.random.split(key, 4)
    x = jax.random.normal(kx, (B, dim, H, W), jnp.float32)

    params = {
        "w_qkv": 0.1 * jax.random.normal(k1, (dim, 3 * dim), jnp.float32),  # 1x1 qkv (in, out)
        "w_dw": 0.1 * jax.random.normal(k2, (9, 3 * dim), jnp.float32),     # dw 3x3, tap-major
        "w_proj": 0.1 * jax.random.normal(k3, (dim, dim), jnp.float32),     # 1x1 proj (in, out)
        "temperature": jnp.ones((num_heads,), jnp.float32),                 # torch init
        "attn_w": jnp.full((4,), 0.2, jnp.float32),                         # attn1..attn4
    }

    fwd = jax.jit(functools.partial(attention_forward, num_heads=num_heads))
    out = jax.block_until_ready(fwd(x, params))

    assert out.shape == (B, dim, H, W)
    assert bool(jnp.all(jnp.isfinite(out)))
    print("KERNEL_OK")
</pallas_src>

<mosaic_0001>
module attributes {stable_mosaic.version = 11 : i64} {
  func.func @_proj_conv_kernel(%arg0: i32, %arg1: i32, %arg2: memref<1x128x128xbf16, #tpu.memory_space<vmem>>, %arg3: memref<32x128xbf16, #tpu.memory_space<vmem>>, %arg4: memref<1x32x128xf32, #tpu.memory_space<vmem>>) attributes {dimension_semantics = [#tpu.dimension_semantics<parallel>, #tpu.dimension_semantics<parallel>], iteration_bounds = array<i64: 2, 2>, scalar_prefetch = 0 : i64, scratch_operands = 0 : i64, tpu.core_type = #tpu.core_type<tc>, window_params = [{transform_indices = @transform_0, window_bounds = array<i64: 1, 128, 128>}, {pipeline_mode = #tpu.pipeline_mode<synchronous>, transform_indices = @transform_1, window_bounds = array<i64: 32, 128>}, {transform_indices = @transform_2, window_bounds = array<i64: 1, 32, 128>}]} {
    %c0 = arith.constant 0 : index
    %c0_0 = arith.constant 0 : index
    %0 = vector.load %arg3[%c0, %c0_0] : memref<32x128xbf16, #tpu.memory_space<vmem>>, vector<32x128xbf16>
    %c0_1 = arith.constant 0 : index
    %c0_2 = arith.constant 0 : index
    %c0_3 = arith.constant 0 : index
    %1 = vector.load %arg2[%c0_1, %c0_2, %c0_3] : memref<1x128x128xbf16, #tpu.memory_space<vmem>>, vector<1x128x128xbf16>
    %2 = vector.shape_cast %1 : vector<1x128x128xbf16> to vector<128x128xbf16>
    %cst = arith.constant dense<0.000000e+00> : vector<32x128xf32>
    %3 = tpu.matmul %0, %2, %cst {dimension_numbers = #tpu.dot_dimension_numbers<[1], [1], [0], [0], [0, 0, 1, 0], [], []>} : vector<32x128xbf16>, vector<128x128xbf16>, vector<32x128xf32> -> vector<32x128xf32>
    %c0_4 = arith.constant 0 : index
    %c0_5 = arith.constant 0 : index
    %c0_6 = arith.constant 0 : index
    %4 = vector.load %arg4[%c0_4, %c0_5, %c0_6] : memref<1x32x128xf32, #tpu.memory_space<vmem>>, vector<1x32x128xf32>
    %5 = vector.shape_cast %4 : vector<1x32x128xf32> to vector<32x128xf32>
    %6 = vector.shape_cast %3 : vector<32x128xf32> to vector<1x32x128xf32>
    tpu.vector_store %arg4[%c0_4, %c0_5, %c0_6], %6 {strides = array<i32>} : memref<1x32x128xf32, #tpu.memory_space<vmem>>, vector<1x32x128xf32>,
    return
  }
  func.func @transform_0(%arg0: i32, %arg1: i32) -> (i32, i32, i32) {
    %c0_i32 = arith.constant 0 : i32
    %c0_i32_0 = arith.constant 0 : i32
    return %arg0, %arg1, %c0_i32 : i32, i32, i32
  }
  func.func @transform_1(%arg0: i32, %arg1: i32) -> (i32, i32) {
    %c0_i32 = arith.constant 0 : i32
    %c0_i32_0 = arith.constant 0 : i32
    %c0_i32_1 = arith.constant 0 : i32
    return %c0_i32, %c0_i32_0 : i32, i32
  }
  func.func @transform_2(%arg0: i32, %arg1: i32) -> (i32, i32, i32) {
    %c0_i32 = arith.constant 0 : i32
    %c0_i32_0 = arith.constant 0 : i32
    return %arg0, %c0_i32, %arg1 : i32, i32, i32
  }
}

module attributes {stable_mosaic.version = 11 : i64} {
  func.func @_qkv_conv_kernel(%arg0: i32, %arg1: i32, %arg2: memref<1x32x128xf32, #tpu.memory_space<vmem>>, %arg3: memref<32x128xbf16, #tpu.memory_space<vmem>>, %arg4: memref<1x128x128xbf16, #tpu.memory_space<vmem>>) attributes {dimension_semantics = [#tpu.dimension_semantics<parallel>, #tpu.dimension_semantics<parallel>], iteration_bounds = array<i64: 2, 2>, scalar_prefetch = 0 : i64, scratch_operands = 0 : i64, tpu.core_type = #tpu.core_type<tc>, window_params = [{transform_indices = @transform_0, window_bounds = array<i64: 1, 32, 128>}, {pipeline_mode = #tpu.pipeline_mode<synchronous>, transform_indices = @transform_1, window_bounds = array<i64: 32, 128>}, {transform_indices = @transform_2, window_bounds = array<i64: 1, 128, 128>}]} {
    %c0 = arith.constant 0 : index
    %c0_0 = arith.constant 0 : index
    %c0_1 = arith.constant 0 : index
    %0 = vector.load %arg2[%c0, %c0_0, %c0_1] : memref<1x32x128xf32, #tpu.memory_space<vmem>>, vector<1x32x128xf32>
    %1 = vector.shape_cast %0 : vector<1x32x128xf32> to vector<32x128xf32>
    %2 = arith.truncf %1 : vector<32x128xf32> to vector<32x128xbf16>
    %c0_2 = arith.constant 0 : index
    %c0_3 = arith.constant 0 : index
    %3 = vector.load %arg3[%c0_2, %c0_3] : memref<32x128xbf16, #tpu.memory_space<vmem>>, vector<32x128xbf16>
    %cst = arith.constant dense<0.000000e+00> : vector<128x128xf32>
    %4 = tpu.matmul %2, %3, %cst {dimension_numbers = #tpu.dot_dimension_numbers<[0], [0], [1], [1], [0, 1, 1, 1], [], []>} : vector<32x128xbf16>, vector<32x128xbf16>, vector<128x128xf32> -> vector<128x128xf32>
    %5 = arith.truncf %4 : vector<128x128xf32> to vector<128x128xbf16>
    %c0_4 = arith.constant 0 : index
    %c0_5 = arith.constant 0 : index
    %c0_6 = arith.constant 0 : index
    %6 = vector.load %arg4[%c0_4, %c0_5, %c0_6] : memref<1x128x128xbf16, #tpu.memory_space<vmem>>, vector<1x128x128xbf16>
    %7 = vector.shape_cast %6 : vector<1x128x128xbf16> to vector<128x128xbf16>
    %8 = vector.shape_cast %5 : vector<128x128xbf16> to vector<1x128x128xbf16>
    tpu.vector_store %arg4[%c0_4, %c0_5, %c0_6], %8 {strides = array<i32>} : memref<1x128x128xbf16, #tpu.memory_space<vmem>>, vector<1x128x128xbf16>,
    return
  }
  func.func @transform_0(%arg0: i32, %arg1: i32) -> (i32, i32, i32) {
    %c0_i32 = arith.constant 0 : i32
    %c0_i32_0 = arith.constant 0 : i32
    return %arg0, %c0_i32, %arg1 : i32, i32, i32
  }
  func.func @transform_1(%arg0: i32, %arg1: i32) -> (i32, i32) {
    %c0_i32 = arith.constant 0 : i32
    %c0_i32_0 = arith.constant 0 : i32
    %c0_i32_1 = arith.constant 0 : i32
    return %c0_i32, %c0_i32_0 : i32, i32
  }
  func.func @transform_2(%arg0: i32, %arg1: i32) -> (i32, i32, i32) {
    %c0_i32 = arith.constant 0 : i32
    %c0_i32_0 = arith.constant 0 : i32
    return %arg0, %arg1, %c0_i32 : i32, i32, i32
  }
}

module attributes {stable_mosaic.version = 11 : i64} {
  func.func @_dwconv_ttsa_kernel(%arg0: i32, %arg1: memref<4xf32, #tpu.memory_space<smem>>, %arg2: memref<32x1xf32, #tpu.memory_space<vmem>>, %arg3: memref<32x32xf32, #tpu.memory_space<vmem>>, %arg4: memref<1x16x16x128xbf16, #tpu.memory_space<vmem>>, %arg5: memref<9x128xf32, #tpu.memory_space<vmem>>, %arg6: memref<1x256x128xbf16, #tpu.memory_space<vmem>>, %arg7: memref<18x18x128xf32, #tpu.memory_space<vmem>>, %arg8: memref<256x128xbf16, #tpu.memory_space<vmem>>) attributes {dimension_semantics = [#tpu.dimension_semantics<parallel>], iteration_bounds = array<i64: 2>, scalar_prefetch = 0 : i64, scratch_operands = 2 : i64, tpu.core_type = #tpu.core_type<tc>, window_params = [{transform_indices = @transform_0, window_bounds = array<i64: 4>}, {pipeline_mode = #tpu.pipeline_mode<synchronous>, transform_indices = @transform_1, window_bounds = array<i64: 32, 1>}, {pipeline_mode = #tpu.pipeline_mode<synchronous>, transform_indices = @transform_2, window_bounds = array<i64: 32, 32>}, {transform_indices = @transform_3, window_bounds = array<i64: 1, 16, 16, 128>}, {pipeline_mode = #tpu.pipeline_mode<synchronous>, transform_indices = @transform_4, window_bounds = array<i64: 9, 128>}, {transform_indices = @transform_5, window_bounds = array<i64: 1, 256, 128>}]} {
    %cst = arith.constant 0.000000e+00 : f32
    %0 = vector.broadcast %cst : f32 to vector<18x18x128xf32>
    %c0 = arith.constant 0 : index
    %c0_0 = arith.constant 0 : index
    %c0_1 = arith.constant 0 : index
    %1 = vector.load %arg7[%c0, %c0_0, %c0_1] : memref<18x18x128xf32, #tpu.memory_space<vmem>>, vector<18x18x128xf32>
    tpu.vector_store %arg7[%c0, %c0_0, %c0_1], %0 {strides = array<i32>} : memref<18x18x128xf32, #tpu.memory_space<vmem>>, vector<18x18x128xf32>,
    %c0_2 = arith.constant 0 : index
    %c0_3 = arith.constant 0 : index
    %c0_4 = arith.constant 0 : index
    %c0_5 = arith.constant 0 : index
    %2 = vector.load %arg4[%c0_2, %c0_3, %c0_4, %c0_5] : memref<1x16x16x128xbf16, #tpu.memory_space<vmem>>, vector<1x16x16x128xbf16>
    %3 = vector.shape_cast %2 : vector<1x16x16x128xbf16> to vector<16x16x128xbf16>
    %4 = arith.extf %3 : vector<16x16x128xbf16> to vector<16x16x128xf32>
    %c1 = arith.constant 1 : index
    %c1_6 = arith.constant 1 : index
    %c0_7 = arith.constant 0 : index
    %5 = vector.load %arg7[%c1, %c1_6, %c0_7] : memref<18x18x128xf32, #tpu.memory_space<vmem>>, vector<16x16x128xf32>
    tpu.vector_store %arg7[%c1, %c1_6, %c0_7], %4 {strides = array<i32>} : memref<18x18x128xf32, #tpu.memory_space<vmem>>, vector<16x16x128xf32>,
    %c0_8 = arith.constant 0 : index
    %c0_9 = arith.constant 0 : index
    %6 = vector.load %arg5[%c0_8, %c0_9] : memref<9x128xf32, #tpu.memory_space<vmem>>, vector<1x128xf32>
    %7 = vector.shape_cast %6 : vector<1x128xf32> to vector<128xf32>
    %c1_10 = arith.constant 1 : index
    %c0_11 = arith.constant 0 : index
    %8 = vector.load %arg5[%c1_10, %c0_11] : memref<9x128xf32, #tpu.memory_space<vmem>>, vector<1x128xf32>
    %9 = vector.shape_cast %8 : vector<1x128xf32> to vector<128xf32>
    %c2 = arith.constant 2 : index
    %c0_12 = arith.constant 0 : index
    %10 = vector.load %arg5[%c2, %c0_12] : memref<9x128xf32, #tpu.memory_space<vmem>>, vector<1x128xf32>
    %11 = vector.shape_cast %10 : vector<1x128xf32> to vector<128xf32>
    %c3 = arith.constant 3 : index
    %c0_13 = arith.constant 0 : index
    %12 = vector.load %arg5[%c3, %c0_13] : memref<9x128xf32, #tpu.memory_space<vmem>>, vector<1x128xf32>
    %13 = vector.shape_cast %12 : vector<1x128xf32> to vector<128xf32>
    %c4 = arith.constant 4 : index
    %c0_14 = arith.constant 0 : index
    %14 = vector.load %arg5[%c4, %c0_14] : memref<9x128xf32, #tpu.memory_space<vmem>>, vector<1x128xf32>
    %15 = vector.shape_cast %14 : vector<1x128xf32> to vector<128xf32>
    %c5 = arith.constant 5 : index
    %c0_15 = arith.constant 0 : index
    %16 = vector.load %arg5[%c5, %c0_15] : memref<9x128xf32, #tpu.memory_space<vmem>>, vector<1x128xf32>
    %17 = vector.shape_cast %16 : vector<1x128xf32> to vector<128xf32>
    %c6 = arith.constant 6 : index
    %c0_16 = arith.constant 0 : index
    %18 = vector.load %arg5[%c6, %c0_16] : memref<9x128xf32, #tpu.memory_space<vmem>>, vector<1x128xf32>
    %19 = vector.shape_cast %18 : vector<1x128xf32> to vector<128xf32>
    %c7 = arith.constant 7 : index
    %c0_17 = arith.constant 0 : index
    %20 = vector.load %arg5[%c7, %c0_17] : memref<9x128xf32, #tpu.memory_space<vmem>>, vector<1x128xf32>
    %21 = vector.shape_cast %20 : vector<1x128xf32> to vector<128xf32>
    %c8 = arith.constant 8 : index
    %c0_18 = arith.constant 0 : index
    %22 = vector.load %arg5[%c8, %c0_18] : memref<9x128xf32, #tpu.memory_space<vmem>>, vector<1x128xf32>
    %23 = vector.shape_cast %22 : vector<1x128xf32> to vector<128xf32>
    %cst_19 = arith.constant 0.000000e+00 : f32
    %24 = vector.broadcast %cst_19 : f32 to vector<16x128xf32>
    %c0_20 = arith.constant 0 : index
    %c0_21 = arith.constant 0 : index
    %c0_22 = arith.constant 0 : index
    %25 = vector.load %arg7[%c0_20, %c0_21, %c0_22] : memref<18x18x128xf32, #tpu.memory_space<vmem>>, vector<1x16x128xf32>
    %26 = vector.shape_cast %25 : vector<1x16x128xf32> to vector<16x128xf32>
    %27 = vector.shape_cast %7 : vector<128xf32> to vector<1x128xf32>
    %28 = vector.broadcast %27 : vector<1x128xf32> to vector<16x128xf32>
    %29 = arith.mulf %26, %28 : vector<16x128xf32>
    %30 = arith.addf %24, %29 : vector<16x128xf32>
    %c0_23 = arith.constant 0 : index
    %c1_24 = arith.constant 1 : index
    %c0_25 = arith.constant 0 : index
    %31 = vector.load %arg7[%c0_23, %c1_24, %c0_25] : memref<18x18x128xf32, #tpu.memory_space<vmem>>, vector<1x16x128xf32>
    %32 = vector.shape_cast %31 : vector<1x16x128xf32> to vector<16x128xf32>
    %33 = vector.shape_cast %9 : vector<128xf32> to vector<1x128xf32>
    %34 = vector.broadcast %33 : vector<1x128xf32> to vector<16x128xf32>
    %35 = arith.mulf %32, %34 : vector<16x128xf32>
    %36 = arith.addf %30, %35 : vector<16x128xf32>
    %c0_26 = arith.constant 0 : index
    %c2_27 = arith.constant 2 : index
    %c0_28 = arith.constant 0 : index
    %37 = vector.load %arg7[%c0_26, %c2_27, %c0_28] : memref<18x18x128xf32, #tpu.memory_space<vmem>>, vector<1x16x128xf32>
    %38 = vector.shape_cast %37 : vector<1x16x128xf32> to vector<16x128xf32>
    %39 = vector.shape_cast %11 : vector<128xf32> to vector<1x128xf32>
    %40 = vector.broadcast %39 : vector<1x128xf32> to vector<16x128xf32>
    %41 = arith.mulf %38, %40 : vector<16x128xf32>
    %42 = arith.addf %36, %41 : vector<16x128xf32>
    %c1_29 = arith.constant 1 : index
    %c0_30 = arith.constant 0 : index
    %c0_31 = arith.constant 0 : index
    %43 = vector.load %arg7[%c1_29, %c0_30, %c0_31] : memref<18x18x128xf32, #tpu.memory_space<vmem>>, vector<1x16x128xf32>
    %44 = vector.shape_cast %43 : vector<1x16x128xf32> to vector<16x128xf32>
    %45 = vector.shape_cast %13 : vector<128xf32> to vector<1x128xf32>
    %46 = vector.broadcast %45 : vector<1x128xf32> to vector<16x128xf32>
    %47 = arith.mulf %44, %46 : vector<16x128xf32>
    %48 = arith.addf %42, %47 : vector<16x128xf32>
    %c1_32 = arith.constant 1 : index
    %c1_33 = arith.constant 1 : index
    %c0_34 = arith.constant 0 : index
    %49 = vector.load %arg7[%c1_32, %c1_33, %c0_34] : memref<18x18x128xf32, #tpu.memory_space<vmem>>, vector<1x16x128xf32>
    %50 = vector.shape_cast %49 : vector<1x16x128xf32> to vector<16x128xf32>
    %51 = vector.shape_cast %15 : vector<128xf32> to vector<1x128xf32>
    %52 = vector.broadcast %51 : vector<1x128xf32> to vector<16x128xf32>
    %53 = arith.mulf %50, %52 : vector<16x128xf32>
    %54 = arith.addf %48, %53 : vector<16x128xf32>
    %c1_35 = arith.constant 1 : index
    %c2_36 = arith.constant 2 : index
    %c0_37 = arith.constant 0 : index
    %55 = vector.load %arg7[%c1_35, %c2_36, %c0_37] : memref<18x18x128xf32, #tpu.memory_space<vmem>>, vector<1x16x128xf32>
    %56 = vector.shape_cast %55 : vector<1x16x128xf32> to vector<16x128xf32>
    %57 = vector.shape_cast %17 : vector<128xf32> to vector<1x128xf32>
    %58 = vector.broadcast %57 : vector<1x128xf32> to vector<16x128xf32>
    %59 = arith.mulf %56, %58 : vector<16x128xf32>
    %60 = arith.addf %54, %59 : vector<16x128xf32>
    %c2_38 = arith.constant 2 : index
    %c0_39 = arith.constant 0 : index
    %c0_40 = arith.constant 0 : index
    %61 = vector.load %arg7[%c2_38, %c0_39, %c0_40] : memref<18x18x128xf32, #tpu.memory_space<vmem>>, vector<1x16x128xf32>
    %62 = vector.shape_cast %61 : vector<1x16x128xf32> to vector<16x128xf32>
    %63 = vector.shape_cast %19 : vector<128xf32> to vector<1x128xf32>
    %64 = vector.broadcast %63 : vector<1x128xf32> to vector<16x128xf32>
    %65 = arith.mulf %62, %64 : vector<16x128xf32>
    %66 = arith.addf %60, %65 : vector<16x128xf32>
    %c2_41 = arith.constant 2 : index
    %c1_42 = arith.constant 1 : index
    %c0_43 = arith.constant 0 : index
    %67 = vector.load %arg7[%c2_41, %c1_42, %c0_43] : memref<18x18x128xf32, #tpu.memory_space<vmem>>, vector<1x16x128xf32>
    %68 = vector.shape_cast %67 : vector<1x16x128xf32> to vector<16x128xf32>
    %69 = vector.shape_cast %21 : vector<128xf32> to vector<1x128xf32>
    %70 = vector.broadcast %69 : vector<1x128xf32> to vector<16x128xf32>
    %71 = arith.mulf %68, %70 : vector<16x128xf32>
    %72 = arith.addf %66, %71 : vector<16x128xf32>
    %c2_44 = arith.constant 2 : index
    %c2_45 = arith.constant 2 : index
    %c0_46 = arith.constant 0 : index
    %73 = vector.load %arg7[%c2_44, %c2_45, %c0_46] : memref<18x18x128xf32, #tpu.memory_space<vmem>>, vector<1x16x128xf32>
    %74 = vector.shape_cast %73 : vector<1x16x128xf32> to vector<16x128xf32>
    %75 = vector.shape_cast %23 : vector<128xf32> to vector<1x128xf32>
    %76 = vector.broadcast %75 : vector<1x128xf32> to vector<16x128xf32>
    %77 = arith.mulf %74, %76 : vector<16x128xf32>
    %78 = arith.addf %72, %77 : vector<16x128xf32>
    %79 = arith.truncf %78 : vector<16x128xf32> to vector<16x128xbf16>
    %c0_47 = arith.constant 0 : index
    %c0_48 = arith.constant 0 : index
    %80 = vector.load %arg8[%c0_47, %c0_48] : memref<256x128xbf16, #tpu.memory_space<vmem>>, vector<16x128xbf16>
    tpu.vector_store %arg8[%c0_47, %c0_48], %79 {strides = array<i32>} : memref<256x128xbf16, #tpu.memory_space<vmem>>, vector<16x128xbf16>,
    %cst_49 = arith.constant 0.000000e+00 : f32
    %81 = vector.broadcast %cst_49 : f32 to vector<16x128xf32>
    %c1_50 = arith.constant 1 : index
    %c0_51 = arith.constant 0 : index
    %c0_52 = arith.constant 0 : index
    %82 = vector.load %arg7[%c1_50, %c0_51, %c0_52] : memref<18x18x128xf32, #tpu.memory_space<vmem>>, vector<1x16x128xf32>
    %83 = vector.shape_cast %82 : vector<1x16x128xf32> to vector<16x128xf32>
    %84 = vector.shape_cast %7 : vector<128xf32> to vector<1x128xf32>
    %85 = vector.broadcast %84 : vector<1x128xf32> to vector<16x128xf32>
    %86 = arith.mulf %83, %85 : vector<16x128xf32>
    %87 = arith.addf %81, %86 : vector<16x128xf32>
    %c1_53 = arith.constant 1 : index
    %c1_54 = arith.constant 1 : index
    %c0_55 = arith.constant 0 : index
    %88 = vector.load %arg7[%c1_53, %c1_54, %c0_55] : memref<18x18x128xf32, #tpu.memory_space<vmem>>, vector<1x16x128xf32>
    %89 = vector.shape_cast %88 : vector<1x16x128xf32> to vector<16x128xf32>
    %90 = vector.shape_cast %9 : vector<128xf32> to vector<1x128xf32>
    %91 = vector.broadcast %90 : vector<1x128xf32> to vector<16x128xf32>
    %92 = arith.mulf %89, %91 : vector<16x128xf32>
    %93 = arith.addf %87, %92 : vector<16x128xf32>
    %c1_56 = arith.constant 1 : index
    %c2_57 = arith.constant 2 : index
    %c0_58 = arith.constant 0 : index
    %94 = vector.load %arg7[%c1_56, %c2_57, %c0_58] : memref<18x18x128xf32, #tpu.memory_space<vmem>>, vector<1x16x128xf32>
    %95 = vector.shape_cast %94 : vector<1x16x128xf32> to vector<16x128xf32>
    %96 = vector.shape_cast %11 : vector<128xf32> to vector<1x128xf32>
    %97 = vector.broadcast %96 : vector<1x128xf32> to vector<16x128xf32>
    %98 = arith.mulf %95, %97 : vector<16x128xf32>
    %99 = arith.addf %93, %98 : vector<16x128xf32>
    %c2_59 = arith.constant 2 : index
    %c0_60 = arith.constant 0 : index
    %c0_61 = arith.constant 0 : index
    %100 = vector.load %arg7[%c2_59, %c0_60, %c0_61] : memref<18x18x128xf32, #tpu.memory_space<vmem>>, vector<1x16x128xf32>
    %101 = vector.shape_cast %100 : vector<1x16x128xf32> to vector<16x128xf32>
    %102 = vector.shape_cast %13 : vector<128xf32> to vector<1x128xf32>
    %103 = vector.broadcast %102 : vector<1x128xf32> to vector<16x128xf32>
    %104 = arith.mulf %101, %103 : vector<16x128xf32>
    %105 = arith.addf %99, %104 : vector<16x128xf32>
    %c2_62 = arith.constant 2 : index
    %c1_63 = arith.constant 1 : index
    %c0_64 = arith.constant 0 : index
    %106 = vector.load %arg7[%c2_62, %c1_63, %c0_64] : memref<18x18x128xf32, #tpu.memory_space<vmem>>, vector<1x16x128xf32>
    %107 = vector.shape_cast %106 : vector<1x16x128xf32> to vector<16x128xf32>
    %108 = vector.shape_cast %15 : vector<128xf32> to vector<1x128xf32>
    %109 = vector.broadcast %108 : vector<1x128xf32> to vector<16x128xf32>
    %110 = arith.mulf %107, %109 : vector<16x128xf32>
    %111 = arith.addf %105, %110 : vector<16x128xf32>
    %c2_65 = arith.constant 2 : index
    %c2_66 = arith.constant 2 : index
    %c0_67 = arith.constant 0 : index
    %112 = vector.load %arg7[%c2_65, %c2_66, %c0_67] : memref<18x18x128xf32, #tpu.memory_space<vmem>>, vector<1x16x128xf32>
    %113 = vector.shape_cast %112 : vector<1x16x128xf32> to vector<16x128xf32>
    %114 = vector.shape_cast %17 : vector<128xf32> to vector<1x128xf32>
    %115 = vector.broadcast %114 : vector<1x128xf32> to vector<16x128xf32>
    %116 = arith.mulf %113, %115 : vector<16x128xf32>
    %117 = arith.addf %111, %116 : vector<16x128xf32>
    %c3_68 = arith.constant 3 : index
    %c0_69 = arith.constant 0 : index
    %c0_70 = arith.constant 0 : index
    %118 = vector.load %arg7[%c3_68, %c0_69, %c0_70] : memref<18x18x128xf32, #tpu.memory_space<vmem>>, vector<1x16x128xf32>
    %119 = vector.shape_cast %118 : vector<1x16x128xf32> to vector<16x128xf32>
    %120 = vector.shape_cast %19 : vector<128xf32> to vector<1x128xf32>
    %121 = vector.broadcast %120 : vector<1x128xf32> to vector<16x128xf32>
    %122 = arith.mulf %119, %121 : vector<16x128xf32>
    %123 = arith.addf %117, %122 : vector<16x128xf32>
    %c3_71 = arith.constant 3 : index
    %c1_72 = arith.constant 1 : index
    %c0_73 = arith.constant 0 : index
    %124 = vector.load %arg7[%c3_71, %c1_72, %c0_73] : memref<18x18x128xf32, #tpu.memory_space<vmem>>, vector<1x16x128xf32>
    %125 = vector.shape_cast %124 : vector<1x16x128xf32> to vector<16x128xf32>
    %126 = vector.shape_cast %21 : vector<128xf32> to vector<1x128xf32>
    %127 = vector.broadcast %126 : vector<1x128xf32> to vector<16x128xf32>
    %128 = arith.mulf %125, %127 : vector<16x128xf32>
    %129 = arith.addf %123, %128 : vector<16x128xf32>
    %c3_74 = arith.constant 3 : index
    %c2_75 = arith.constant 2 : index
    %c0_76 = arith.constant 0 : index
    %130 = vector.load %arg7[%c3_74, %c2_75, %c0_76] : memref<18x18x128xf32, #tpu.memory_space<vmem>>, vector<1x16x128xf32>
    %131 = vector.shape_cast %130 : vector<1x16x128xf32> to vector<16x128xf32>
    %132 = vector.shape_cast %23 : vector<128xf32> to vector<1x128xf32>
    %133 = vector.broadcast %132 : vector<1x128xf32> to vector<16x128xf32>
    %134 = arith.mulf %131, %133 : vector<16x128xf32>
    %135 = arith.addf %129, %134 : vector<16x128xf32>
    %136 = arith.truncf %135 : vector<16x128xf32> to vector<16x128xbf16>
    %c16 = arith.constant 16 : index
    %c0_77 = arith.constant 0 : index
    %137 = vector.load %arg8[%c16, %c0_77] : memref<256x128xbf16, #tpu.memory_space<vmem>>, vector<16x128xbf16>
    tpu.vector_store %arg8[%c16, %c0_77], %136 {strides = array<i32>} : memref<256x128xbf16, #tpu.memory_space<vmem>>, vector<16x128xbf16>,
    %cst_78 = arith.constant 0.000000e+00 : f32
    %138 = vector.broadcast %cst_78 : f32 to vector<16x128xf32>
    %c2_79 = arith.constant 2 : index
    %c0_80 = arith.constant 0 : index
    %c0_81 = arith.constant 0 : index
    %139 = vector.load %arg7[%c2_79, %c0_80, %c0_81] : memref<18x18x128xf32, #tpu.memory_space<vmem>>, vector<1x16x128xf32>
    %140 = vector.shape_cast %139 : vector<1x16x128xf32> to vector<16x128xf32>
    %141 = vector.shape_cast %7 : vector<128xf32> to vector<1x128xf32>
    %142 = vector.broadcast %141 : vector<1x128xf32> to vector<16x128xf32>
    %143 = arith.mulf %140, %142 : vector<16x128xf32>
    %144 = arith.addf %138, %143 : vector<16x128xf32>
    %c2_82 = arith.constant 2 : index
    %c1_83 = arith.constant 1 : index
    %c0_84 = arith.constant 0 : index
    %145 = vector.load %arg7[%c2_82, %c1_83, %c0_84] : memref<18x18x128xf32, #tpu.memory_space<vmem>>, vector<1x16x128xf32>
    %146 = vector.shape_cast %145 : vector<1x16x128xf32> to vector<16x128xf32>
    %147 = vector.shape_cast %9 : vector<128xf32> to vector<1x128xf32>
    %148 = vector.broadcast %147 : vector<1x128xf32> to vector<16x128xf32>
    %149 = arith.mulf %146, %148 : vector<16x128xf32>
    %150 = arith.addf %144, %149 : vector<16x128xf32>
    %c2_85 = arith.constant 2 : index
    %c2_86 = arith.constant 2 : index
    %c0_87 = arith.constant 0 : index
    %151 = vector.load %arg7[%c2_85, %c2_86, %c0_87] : memref<18x18x128xf32, #tpu.memory_space<vmem>>, vector<1x16x128xf32>
    %152 = vector.shape_cast %151 : vector<1x16x128xf32> to vector<16x128xf32>
    %153 = vector.shape_cast %11 : vector<128xf32> to vector<1x128xf32>
    %154 = vector.broadcast %153 : vector<1x128xf32> to vector<16x128xf32>
    %155 = arith.mulf %152, %154 : vector<16x128xf32>
    %156 = arith.addf %150, %155 : vector<16x128xf32>
    %c3_88 = arith.constant 3 : index
    %c0_89 = arith.constant 0 : index
    %c0_90 = arith.constant 0 : index
    %157 = vector.load %arg7[%c3_88, %c0_89, %c0_90] : memref<18x18x128xf32, #tpu.memory_space<vmem>>, vector<1x16x128xf32>
    %158 = vector.shape_cast %157 : vector<1x16x128xf32> to vector<16x128xf32>
    %159 = vector.shape_cast %13 : vector<128xf32> to vector<1x128xf32>
    %160 = vector.broadcast %159 : vector<1x128xf32> to vector<16x128xf32>
    %161 = arith.mulf %158, %160 : vector<16x128xf32>
    %162 = arith.addf %156, %161 : vector<16x128xf32>
    %c3_91 = arith.constant 3 : index
    %c1_92 = arith.constant 1 : index
    %c0_93 = arith.constant 0 : index
    %163 = vector.load %arg7[%c3_91, %c1_92, %c0_93] : memref<18x18x128xf32, #tpu.memory_space<vmem>>, vector<1x16x128xf32>
    %164 = vector.shape_cast %163 : vector<1x16x128xf32> to vector<16x128xf32>
    %165 = vector.shape_cast %15 : vector<128xf32> to vector<1x128xf32>
    %166 = vector.broadcast %165 : vector<1x128xf32> to vector<16x128xf32>
    %167 = arith.mulf %164, %166 : vector<16x128xf32>
    %168 = arith.addf %162, %167 : vector<16x128xf32>
    %c3_94 = arith.constant 3 : index
    %c2_95 = arith.constant 2 : index
    %c0_96 = arith.constant 0 : index
    %169 = vector.load %arg7[%c3_94, %c2_95, %c0_96] : memref<18x18x128xf32, #tpu.memory_space<vmem>>, vector<1x16x128xf32>
    %170 = vector.shape_cast %169 : vector<1x16x128xf32> to vector<16x128xf32>
    %171 = vector.shape_cast %17 : vector<128xf32> to vector<1x128xf32>
    %172 = vector.broadcast %171 : vector<1x128xf32> to vector<16x128xf32>
    %173 = arith.mulf %170, %172 : vector<16x128xf32>
    %174 = arith.addf %168, %173 : vector<16x128xf32>
    %c4_97 = arith.constant 4 : index
    %c0_98 = arith.constant 0 : index
    %c0_99 = arith.constant 0 : index
    %175 = vector.load %arg7[%c4_97, %c0_98, %c0_99] : memref<18x18x128xf32, #tpu.memory_space<vmem>>, vector<1x16x128xf32>
    %176 = vector.shape_cast %175 : vector<1x16x128xf32> to vector<16x128xf32>
    %177 = vector.shape_cast %19 : vector<128xf32> to vector<1x128xf32>
    %178 = vector.broadcast %177 : vector<1x128xf32> to vector<16x128xf32>
    %179 = arith.mulf %176, %178 : vector<16x128xf32>
    %180 = arith.addf %174, %179 : vector<16x128xf32>
    %c4_100 = arith.constant 4 : index
    %c1_101 = arith.constant 1 : index
    %c0_102 = arith.constant 0 : index
    %181 = vector.load %arg7[%c4_100, %c1_101, %c0_102] : memref<18x18x128xf32, #tpu.memory_space<vmem>>, vector<1x16x128xf32>
    %182 = vector.shape_cast %181 : vector<1x16x128xf32> to vector<16x128xf32>
    %183 = vector.shape_cast %21 : vector<128xf32> to vector<1x128xf32>
    %184 = vector.broadcast %183 : vector<1x128xf32> to vector<16x128xf32>
    %185 = arith.mulf %182, %184 : vector<16x128xf32>
    %186 = arith.addf %180, %185 : vector<16x128xf32>
    %c4_103 = arith.constant 4 : index
    %c2_104 = arith.constant 2 : index
    %c0_105 = arith.constant 0 : index
    %187 = vector.load %arg7[%c4_103, %c2_104, %c0_105] : memref<18x18x128xf32, #tpu.memory_space<vmem>>, vector<1x16x128xf32>
    %188 = vector.shape_cast %187 : vector<1x16x128xf32> to vector<16x128xf32>
    %189 = vector.shape_cast %23 : vector<128xf32> to vector<1x128xf32>
    %190 = vector.broadcast %189 : vector<1x128xf32> to vector<16x128xf32>
    %191 = arith.mulf %188, %190 : vector<16x128xf32>
    %192 = arith.addf %186, %191 : vector<16x128xf32>
    %193 = arith.truncf %192 : vector<16x128xf32> to vector<16x128xbf16>
    %c32 = arith.constant 32 : index
    %c0_106 = arith.constant 0 : index
    %194 = vector.load %arg8[%c32, %c0_106] : memref<256x128xbf16, #tpu.memory_space<vmem>>, vector<16x128xbf16>
    tpu.vector_store %arg8[%c32, %c0_106], %193 {strides = array<i32>} : memref<256x128xbf16, #tpu.memory_space<vmem>>, vector<16x128xbf16>,
    %cst_107 = arith.constant 0.000000e+00 : f32
    %195 = vector.broadcast %cst_107 : f32 to vector<16x128xf32>
    %c3_108 = arith.constant 3 : index
    %c0_109 = arith.constant 0 : index
    %c0_110 = arith.constant 0 : index
    %196 = vector.load %arg7[%c3_108, %c0_109, %c0_110] : memref<18x18x128xf32, #tpu.memory_space<vmem>>, vector<1x16x128xf32>
    %197 = vector.shape_cast %196 : vector<1x16x128xf32> to vector<16x128xf32>
    %198 = vector.shape_cast %7 : vector<128xf32> to vector<1x128xf32>
    %199 = vector.broadcast %198 : vector<1x128xf32> to vector<16x128xf32>
    %200 = arith.mulf %197, %199 : vector<16x128xf32>
    %201 = arith.addf %195, %200 : vector<16x128xf32>
    %c3_111 = arith.constant 3 : index
    %c1_112 = arith.constant 1 : index
    %c0_113 = arith.constant 0 : index
    %202 = vector.load %arg7[%c3_111, %c1_112, %c0_113] : memref<18x18x128xf32, #tpu.memory_space<vmem>>, vector<1x16x128xf32>
    %203 = vector.shape_cast %202 : vector<1x16x128xf32> to vector<16x128xf32>
    %204 = vector.shape_cast %9 : vector<128xf32> to vector<1x128xf32>
    %205 = vector.broadcast %204 : vector<1x128xf32> to vector<16x128xf32>
    %206 = arith.mulf %203, %205 : vector<16x128xf32>
    %207 = arith.addf %201, %206 : vector<16x128xf32>
    %c3_114 = arith.constant 3 : index
    %c2_115 = arith.constant 2 : index
    %c0_116 = arith.constant 0 : index
    %208 = vector.load %arg7[%c3_114, %c2_115, %c0_116] : memref<18x18x128xf32, #tpu.memory_space<vmem>>, vector<1x16x128xf32>
    %209 = vector.shape_cast %208 : vector<1x16x128xf32> to vector<16x128xf32>
    %210 = vector.shape_cast %11 : vector<128xf32> to vector<1x128xf32>
    %211 = vector.broadcast %210 : vector<1x128xf32> to vector<16x128xf32>
    %212 = arith.mulf %209, %211 : vector<16x128xf32>
    %213 = arith.addf %207, %212 : vector<16x128xf32>
    %c4_117 = arith.constant 4 : index
    %c0_118 = arith.constant 0 : index
    %c0_119 = arith.constant 0 : index
    %214 = vector.load %arg7[%c4_117, %c0_118, %c0_119] : memref<18x18x128xf32, #tpu.memory_space<vmem>>, vector<1x16x128xf32>
    %215 = vector.shape_cast %214 : vector<1x16x128xf32> to vector<16x128xf32>
    %216 = vector.shape_cast %13 : vector<128xf32> to vector<1x128xf32>
    %217 = vector.broadcast %216 : vector<1x128xf32> to vector<16x128xf32>
    %218 = arith.mulf %215, %217 : vector<16x128xf32>
    %219 = arith.addf %213, %218 : vector<16x128xf32>
    %c4_120 = arith.constant 4 : index
    %c1_121 = arith.constant 1 : index
    %c0_122 = arith.constant 0 : index
    %220 = vector.load %arg7[%c4_120, %c1_121, %c0_122] : memref<18x18x128xf32, #tpu.memory_space<vmem>>, vector<1x16x128xf32>
    %221 = vector.shape_cast %220 : vector<1x16x128xf32> to vector<16x128xf32>
    %222 = vector.shape_cast %15 : vector<128xf32> to vector<1x128xf32>
    %223 = vector.broadcast %222 : vector<1x128xf32> to vector<16x128xf32>
    %224 = arith.mulf %221, %223 : vector<16x128xf32>
    %225 = arith.addf %219, %224 : vector<16x128xf32>
    %c4_123 = arith.constant 4 : index
    %c2_124 = arith.constant 2 : index
    %c0_125 = arith.constant 0 : index
    %226 = vector.load %arg7[%c4_123, %c2_124, %c0_125] : memref<18x18x128xf32, #tpu.memory_space<vmem>>, vector<1x16x128xf32>
    %227 = vector.shape_cast %226 : vector<1x16x128xf32> to vector<16x128xf32>
    %228 = vector.shape_cast %17 : vector<128xf32> to vector<1x128xf32>
    %229 = vector.broadcast %228 : vector<1x128xf32> to vector<16x128xf32>
    %230 = arith.mulf %227, %229 : vector<16x128xf32>
    %231 = arith.addf %225, %230 : vector<16x128xf32>
    %c5_126 = arith.constant 5 : index
    %c0_127 = arith.constant 0 : index
    %c0_128 = arith.constant 0 : index
    %232 = vector.load %arg7[%c5_126, %c0_127, %c0_128] : memref<18x18x128xf32, #tpu.memory_space<vmem>>, vector<1x16x128xf32>
    %233 = vector.shape_cast %232 : vector<1x16x128xf32> to vector<16x128xf32>
    %234 = vector.shape_cast %19 : vector<128xf32> to vector<1x128xf32>
    %235 = vector.broadcast %234 : vector<1x128xf32> to vector<16x128xf32>
    %236 = arith.mulf %233, %235 : vector<16x128xf32>
    %237 = arith.addf %231, %236 : vector<16x128xf32>
    %c5_129 = arith.constant 5 : index
    %c1_130 = arith.constant 1 : index
    %c0_131 = arith.constant 0 : index
    %238 = vector.load %arg7[%c5_129, %c1_130, %c0_131] : memref<18x18x128xf32, #tpu.memory_space<vmem>>, vector<1x16x128xf32>
    %239 = vector.shape_cast %238 : vector<1x16x128xf32> to vector<16x128xf32>
    %240 = vector.shape_cast %21 : vector<128xf32> to vector<1x128xf32>
    %241 = vector.broadcast %240 : vector<1x128xf32> to vector<16x128xf32>
    %242 = arith.mulf %239, %241 : vector<16x128xf32>
    %243 = arith.addf %237, %242 : vector<16x128xf32>
    %c5_132 = arith.constant 5 : index
    %c2_133 = arith.constant 2 : index
    %c0_134 = arith.constant 0 : index
    %244 = vector.load %arg7[%c5_132, %c2_133, %c0_134] : memref<18x18x128xf32, #tpu.memory_space<vmem>>, vector<1x16x128xf32>
    %245 = vector.shape_cast %244 : vector<1x16x128xf32> to vector<16x128xf32>
    %246 = vector.shape_cast %23 : vector<128xf32> to vector<1x128xf32>
    %247 = vector.broadcast %246 : vector<1x128xf32> to vector<16x128xf32>
    %248 = arith.mulf %245, %247 : vector<16x128xf32>
    %249 = arith.addf %243, %248 : vector<16x128xf32>
    %250 = arith.truncf %249 : vector<16x128xf32> to vector<16x128xbf16>
    %c48 = arith.constant 48 : index
    %c0_135 = arith.constant 0 : index
    %251 = vector.load %arg8[%c48, %c0_135] : memref<256x128xbf16, #tpu.memory_space<vmem>>, vector<16x128xbf16>
    tpu.vector_store %arg8[%c48, %c0_135], %250 {strides = array<i32>} : memref<256x128xbf16, #tpu.memory_space<vmem>>, vector<16x128xbf16>,
    %cst_136 = arith.constant 0.000000e+00 : f32
    %252 = vector.broadcast %cst_136 : f32 to vector<16x128xf32>
    %c4_137 = arith.constant 4 : index
    %c0_138 = arith.constant 0 : index
    %c0_139 = arith.constant 0 : index
    %253 = vector.load %arg7[%c4_137, %c0_138, %c0_139] : memref<18x18x128xf32, #tpu.memory_space<vmem>>, vector<1x16x128xf32>
    %254 = vector.shape_cast %253 : vector<1x16x128xf32> to vector<16x128xf32>
    %255 = vector.shape_cast %7 : vector<128xf32> to vector<1x128xf32>
    %256 = vector.broadcast %255 : vector<1x128xf32> to vector<16x128xf32>
    %257 = arith.mulf %254, %256 : vector<16x128xf32>
    %258 = arith.addf %252, %257 : vector<16x128xf32>
    %c4_140 = arith.constant 4 : index
    %c1_141 = arith.constant 1 : index
    %c0_142 = arith.constant 0 : index
    %259 = vector.load %arg7[%c4_140, %c1_141, %c0_142] : memref<18x18x128xf32, #tpu.memory_space<vmem>>, vector<1x16x128xf32>
    %260 = vector.shape_cast %259 : vector<1x16x128xf32> to vector<16x128xf32>
    %261 = vector.shape_cast %9 : vector<128xf32> to vector<1x128xf32>
    %262 = vector.broadcast %261 : vector<1x128xf32> to vector<16x128xf32>
    %263 = arith.mulf %260, %262 : vector<16x128xf32>
    %264 = arith.addf %258, %263 : vector<16x128xf32>
    %c4_143 = arith.constant 4 : index
    %c2_144 = arith.constant 2 : index
    %c0_145 = arith.constant 0 : index
    %265 = vector.load %arg7[%c4_143, %c2_144, %c0_145] : memref<18x18x128xf32, #tpu.memory_space<vmem>>, vector<1x16x128xf32>
    %266 = vector.shape_cast %265 : vector<1x16x128xf32> to vector<16x128xf32>
    %267 = vector.shape_cast %11 : vector<128xf32> to vector<1x128xf32>
    %268 = vector.broadcast %267 : vector<1x128xf32> to vector<16x128xf32>
    %269 = arith.mulf %266, %268 : vector<16x128xf32>
    %270 = arith.addf %264, %269 : vector<16x128xf32>
    %c5_146 = arith.constant 5 : index
    %c0_147 = arith.constant 0 : index
    %c0_148 = arith.constant 0 : index
    %271 = vector.load %arg7[%c5_146, %c0_147, %c0_148] : memref<18x18x128xf32, #tpu.memory_space<vmem>>, vector<1x16x128xf32>
    %272 = vector.shape_cast %271 : vector<1x16x128xf32> to vector<16x128xf32>
    %273 = vector.shape_cast %13 : vector<128xf32> to vector<1x128xf32>
    %274 = vector.broadcast %273 : vector<1x128xf32> to vector<16x128xf32>
    %275 = arith.mulf %272, %274 : vector<16x128xf32>
    %276 = arith.addf %270, %275 : vector<16x128xf32>
    %c5_149 = arith.constant 5 : index
    %c1_150 = arith.constant 1 : index
    %c0_151 = arith.constant 0 : index
    %277 = vector.load %arg7[%c5_149, %c1_150, %c0_151] : memref<18x18x128xf32, #tpu.memory_space<vmem>>, vector<1x16x128xf32>
    %278 = vector.shape_cast %277 : vector<1x16x128xf32> to vector<16x128xf32>
    %279 = vector.shape_cast %15 : vector<128xf32> to vector<1x128xf32>
    %280 = vector.broadcast %279 : vector<1x128xf32> to vector<16x128xf32>
    %281 = arith.mulf %278, %280 : vector<16x128xf32>
    %282 = arith.addf %276, %281 : vector<16x128xf32>
    %c5_152 = arith.constant 5 : index
    %c2_153 = arith.constant 2 : index
    %c0_154 = arith.constant 0 : index
    %283 = vector.load %arg7[%c5_152, %c2_153, %c0_154] : memref<18x18x128xf32, #tpu.memory_space<vmem>>, vector<1x16x128xf32>
    %284 = vector.shape_cast %283 : vector<1x16x128xf32> to vector<16x128xf32>
    %285 = vector.shape_cast %17 : vector<128xf32> to vector<1x128xf32>
    %286 = vector.broadcast %285 : vector<1x128xf32> to vector<16x128xf32>
    %287 = arith.mulf %284, %286 : vector<16x128xf32>
    %288 = arith.addf %282, %287 : vector<16x128xf32>
    %c6_155 = arith.constant 6 : index
    %c0_156 = arith.constant 0 : index
    %c0_157 = arith.constant 0 : index
    %289 = vector.load %arg7[%c6_155, %c0_156, %c0_157] : memref<18x18x128xf32, #tpu.memory_space<vmem>>, vector<1x16x128xf32>
    %290 = vector.shape_cast %289 : vector<1x16x128xf32> to vector<16x128xf32>
    %291 = vector.shape_cast %19 : vector<128xf32> to vector<1x128xf32>
    %292 = vector.broadcast %291 : vector<1x128xf32> to vector<16x128xf32>
    %293 = arith.mulf %290, %292 : vector<16x128xf32>
    %294 = arith.addf %288, %293 : vector<16x128xf32>
    %c6_158 = arith.constant 6 : index
    %c1_159 = arith.constant 1 : index
    %c0_160 = arith.constant 0 : index
    %295 = vector.load %arg7[%c6_158, %c1_159, %c0_160] : memref<18x18x128xf32, #tpu.memory_space<vmem>>, vector<1x16x128xf32>
    %296 = vector.shape_cast %295 : vector<1x16x128xf32> to vector<16x128xf32>
    %297 = vector.shape_cast %21 : vector<128xf32> to vector<1x128xf32>
    %298 = vector.broadcast %297 : vector<1x128xf32> to vector<16x128xf32>
    %299 = arith.mulf %296, %298 : vector<16x128xf32>
    %300 = arith.addf %294, %299 : vector<16x128xf32>
    %c6_161 = arith.constant 6 : index
    %c2_162 = arith.constant 2 : index
    %c0_163 = arith.constant 0 : index
    %301 = vector.load %arg7[%c6_161, %c2_162, %c0_163] : memref<18x18x128xf32, #tpu.memory_space<vmem>>, vector<1x16x128xf32>
    %302 = vector.shape_cast %301 : vector<1x16x128xf32> to vector<16x128xf32>
    %303 = vector.shape_cast %23 : vector<128xf32> to vector<1x128xf32>
    %304 = vector.broadcast %303 : vector<1x128xf32> to vector<16x128xf32>
    %305 = arith.mulf %302, %304 : vector<16x128xf32>
    %306 = arith.addf %300, %305 : vector<16x128xf32>
    %307 = arith.truncf %306 : vector<16x128xf32> to vector<16x128xbf16>
    %c64 = arith.constant 64 : index
    %c0_164 = arith.constant 0 : index
    %308 = vector.load %arg8[%c64, %c0_164] : memref<256x128xbf16, #tpu.memory_space<vmem>>, vector<16x128xbf16>
    tpu.vector_store %arg8[%c64, %c0_164], %307 {strides = array<i32>} : memref<256x128xbf16, #tpu.memory_space<vmem>>, vector<16x128xbf16>,
    %cst_165 = arith.constant 0.000000e+00 : f32
    %309 = vector.broadcast %cst_165 : f32 to vector<16x128xf32>
    %c5_166 = arith.constant 5 : index
    %c0_167 = arith.constant 0 : index
    %c0_168 = arith.constant 0 : index
    %310 = vector.load %arg7[%c5_166, %c0_167, %c0_168] : memref<18x18x128xf32, #tpu.memory_space<vmem>>, vector<1x16x128xf32>
    %311 = vector.shape_cast %310 : vector<1x16x128xf32> to vector<16x128xf32>
    %312 = vector.shape_cast %7 : vector<128xf32> to vector<1x128xf32>
    %313 = vector.broadcast %312 : vector<1x128xf32> to vector<16x128xf32>
    %314 = arith.mulf %311, %313 : vector<16x128xf32>
    %315 = arith.addf %309, %314 : vector<16x128xf32>
    %c5_169 = arith.constant 5 : index
    %c1_170 = arith.constant 1 : index
    %c0_171 = arith.constant 0 : index
    %316 = vector.load %arg7[%c5_169, %c1_170, %c0_171] : memref<18x18x128xf32, #tpu.memory_space<vmem>>, vector<1x16x128xf32>
    %317 = vector.shape_cast %316 : vector<1x16x128xf32> to vector<16x128xf32>
    %318 = vector.shape_cast %9 : vector<128xf32> to vector<1x128xf32>
    %319 = vector.broadcast %318 : vector<1x128xf32> to vector<16x128xf32>
    %320 = arith.mulf %317, %319 : vector<16x128xf32>
    %321 = arith.addf %315, %320 : vector<16x128xf32>
    %c5_172 = arith.constant 5 : index
    %c2_173 = arith.constant 2 : index
    %c0_174 = arith.constant 0 : index
    %322 = vector.load %arg7[%c5_172, %c2_173, %c0_174] : memref<18x18x128xf32, #tpu.memory_space<vmem>>, vector<1x16x128xf32>
    %323 = vector.shape_cast %322 : vector<1x16x128xf32> to vector<16x128xf32>
    %324 = vector.shape_cast %11 : vector<128xf32> to vector<1x128xf32>
    %325 = vector.broadcast %324 : vector<1x128xf32> to vector<16x128xf32>
    %326 = arith.mulf %323, %325 : vector<16x128xf32>
    %327 = arith.addf %321, %326 : vector<16x128xf32>
    %c6_175 = arith.constant 6 : index
    %c0_176 = arith.constant 0 : index
    %c0_177 = arith.constant 0 : index
    %328 = vector.load %arg7[%c6_175, %c0_176, %c0_177] : memref<18x18x128xf32, #tpu.memory_space<vmem>>, vector<1x16x128xf32>
    %329 = vector.shape_cast %328 : vector<1x16x128xf32> to vector<16x128xf32>
    %330 = vector.shape_cast %13 : vector<128xf32> to vector<1x128xf32>
    %331 = vector.broadcast %330 : vector<1x128xf32> to vector<16x128xf32>
    %332 = arith.mulf %329, %331 : vector<16x128xf32>
    %333 = arith.addf %327, %332 : vector<16x128xf32>
    %c6_178 = arith.constant 6 : index
    %c1_179 = arith.constant 1 : index
    %c0_180 = arith.constant 0 : index
    %334 = vector.load %arg7[%c6_178, %c1_179, %c0_180] : memref<18x18x128xf32, #tpu.memory_space<vmem>>, vector<1x16x128xf32>
    %335 = vector.shape_cast %334 : vector<1x16x128xf32> to vector<16x128xf32>
    %336 = vector.shape_cast %15 : vector<128xf32> to vector<1x128xf32>
    %337 = vector.broadcast %336 : vector<1x128xf32> to vector<16x128xf32>
    %338 = arith.mulf %335, %337 : vector<16x128xf32>
    %339 = arith.addf %333, %338 : vector<16x128xf32>
    %c6_181 = arith.constant 6 : index
    %c2_182 = arith.constant 2 : index
    %c0_183 = arith.constant 0 : index
    %340 = vector.load %arg7[%c6_181, %c2_182, %c0_183] : memref<18x18x128xf32, #tpu.memory_space<vmem>>, vector<1x16x128xf32>
    %341 = vector.shape_cast %340 : vector<1x16x128xf32> to vector<16x128xf32>
    %342 = vector.shape_cast %17 : vector<128xf32> to vector<1x128xf32>
    %343 = vector.broadcast %342 : vector<1x128xf32> to vector<16x128xf32>
    %344 = arith.mulf %341, %343 : vector<16x128xf32>
    %345 = arith.addf %339, %344 : vector<16x128xf32>
    %c7_184 = arith.constant 7 : index
    %c0_185 = arith.constant 0 : index
    %c0_186 = arith.constant 0 : index
    %346 = vector.load %arg7[%c7_184, %c0_185, %c0_186] : memref<18x18x128xf32, #tpu.memory_space<vmem>>, vector<1x16x128xf32>
    %347 = vector.shape_cast %346 : vector<1x16x128xf32> to vector<16x128xf32>
    %348 = vector.shape_cast %19 : vector<128xf32> to vector<1x128xf32>
    %349 = vector.broadcast %348 : vector<1x128xf32> to vector<16x128xf32>
    %350 = arith.mulf %347, %349 : vector<16x128xf32>
    %351 = arith.addf %345, %350 : vector<16x128xf32>
    %c7_187 = arith.constant 7 : index
    %c1_188 = arith.constant 1 : index
    %c0_189 = arith.constant 0 : index
    %352 = vector.load %arg7[%c7_187, %c1_188, %c0_189] : memref<18x18x128xf32, #tpu.memory_space<vmem>>, vector<1x16x128xf32>
    %353 = vector.shape_cast %352 : vector<1x16x128xf32> to vector<16x128xf32>
    %354 = vector.shape_cast %21 : vector<128xf32> to vector<1x128xf32>
    %355 = vector.broadcast %354 : vector<1x128xf32> to vector<16x128xf32>
    %356 = arith.mulf %353, %355 : vector<16x128xf32>
    %357 = arith.addf %351, %356 : vector<16x128xf32>
    %c7_190 = arith.constant 7 : index
    %c2_191 = arith.constant 2 : index
    %c0_192 = arith.constant 0 : index
    %358 = vector.load %arg7[%c7_190, %c2_191, %c0_192] : memref<18x18x128xf32, #tpu.memory_space<vmem>>, vector<1x16x128xf32>
    %359 = vector.shape_cast %358 : vector<1x16x128xf32> to vector<16x128xf32>
    %360 = vector.shape_cast %23 : vector<128xf32> to vector<1x128xf32>
    %361 = vector.broadcast %360 : vector<1x128xf32> to vector<16x128xf32>
    %362 = arith.mulf %359, %361 : vector<16x128xf32>
    %363 = arith.addf %357, %362 : vector<16x128xf32>
    %364 = arith.truncf %363 : vector<16x128xf32> to vector<16x128xbf16>
    %c80 = arith.constant 80 : index
    %c0_193 = arith.constant 0 : index
    %365 = vector.load %arg8[%c80, %c0_193] : memref<256x128xbf16, #tpu.memory_space<vmem>>, vector<16x128xbf16>
    tpu.vector_store %arg8[%c80, %c0_193], %364 {strides = array<i32>} : memref<256x128xbf16, #tpu.memory_space<vmem>>, vector<16x128xbf16>,
    %cst_194 = arith.constant 0.000000e+00 : f32
    %366 = vector.broadcast %cst_194 : f32 to vector<16x128xf32>
    %c6_195 = arith.constant 6 : index
    %c0_196 = arith.constant 0 : index
    %c0_197 = arith.constant 0 : index
    %367 = vector.load %arg7[%c6_195, %c0_196, %c0_197] : memref<18x18x128xf32, #tpu.memory_space<vmem>>, vector<1x16x128xf32>
    %368 = vector.shape_cast %367 : vector<1x16x128xf32> to vector<16x128xf32>
    %369 = vector.shape_cast %7 : vector<128xf32> to vector<1x128xf32>
    %370 = vector.broadcast %369 : vector<1x128xf32> to vector<16x128xf32>
    %371 = arith.mulf %368, %370 : vector<16x128xf32>
    %372 = arith.addf %366, %371 : vector<16x128xf32>
    %c6_198 = arith.constant 6 : index
    %c1_199 = arith.constant 1 : index
    %c0_200 = arith.constant 0 : index
    %373 = vector.load %arg7[%c6_198, %c1_199, %c0_200] : memref<18x18x128xf32, #tpu.memory_space<vmem>>, vector<1x16x128xf32>
    %374 = vector.shape_cast %373 : vector<1x16x128xf32> to vector<16x128xf32>
    %375 = vector.shape_cast %9 : vector<128xf32> to vector<1x128xf32>
    %376 = vector.broadcast %375 : vector<1x128xf32> to vector<16x128xf32>
    %377 = arith.mulf %374, %376 : vector<16x128xf32>
    %378 = arith.addf %372, %377 : vector<16x128xf32>
    %c6_201 = arith.constant 6 : index
    %c2_202 = arith.constant 2 : index
    %c0_203 = arith.constant 0 : index
    %379 = vector.load %arg7[%c6_201, %c2_202, %c0_203] : memref<18x18x128xf32, #tpu.memory_space<vmem>>, vector<1x16x128xf32>
    %380 = vector.shape_cast %379 : vector<1x16x128xf32> to vector<16x128xf32>
    %381 = vector.shape_cast %11 : vector<128xf32> to vector<1x128xf32>
    %382 = vector.broadcast %381 : vector<1x128xf32> to vector<16x128xf32>
    %383 = arith.mulf %380, %382 : vector<16x128xf32>
    %384 = arith.addf %378, %383 : vector<16x128xf32>
    %c7_204 = arith.constant 7 : index
    %c0_205 = arith.constant 0 : index
    %c0_206 = arith.constant 0 : index
    %385 = vector.load %arg7[%c7_204, %c0_205, %c0_206] : memref<18x18x128xf32, #tpu.memory_space<vmem>>, vector<1x16x128xf32>
    %386 = vector.shape_cast %385 : vector<1x16x128xf32> to vector<16x128xf32>
    %387 = vector.shape_cast %13 : vector<128xf32> to vector<1x128xf32>
    %388 = vector.broadcast %387 : vector<1x128xf32> to vector<16x128xf32>
    %389 = arith.mulf %386, %388 : vector<16x128xf32>
    %390 = arith.addf %384, %389 : vector<16x128xf32>
    %c7_207 = arith.constant 7 : index
    %c1_208 = arith.constant 1 : index
    %c0_209 = arith.constant 0 : index
    %391 = vector.load %arg7[%c7_207, %c1_208, %c0_209] : memref<18x18x128xf32, #tpu.memory_space<vmem>>, vector<1x16x128xf32>
    %392 = vector.shape_cast %391 : vector<1x16x128xf32> to vector<16x128xf32>
    %393 = vector.shape_cast %15 : vector<128xf32> to vector<1x128xf32>
    %394 = vector.broadcast %393 : vector<1x128xf32> to vector<16x128xf32>
    %395 = arith.mulf %392, %394 : vector<16x128xf32>
    %396 = arith.addf %390, %395 : vector<16x128xf32>
    %c7_210 = arith.constant 7 : index
    %c2_211 = arith.constant 2 : index
    %c0_212 = arith.constant 0 : index
    %397 = vector.load %arg7[%c7_210, %c2_211, %c0_212] : memref<18x18x128xf32, #tpu.memory_space<vmem>>, vector<1x16x128xf32>
    %398 = vector.shape_cast %397 : vector<1x16x128xf32> to vector<16x128xf32>
    %399 = vector.shape_cast %17 : vector<128xf32> to vector<1x128xf32>
    %400 = vector.broadcast %399 : vector<1x128xf32> to vector<16x128xf32>
    %401 = arith.mulf %398, %400 : vector<16x128xf32>
    %402 = arith.addf %396, %401 : vector<16x128xf32>
    %c8_213 = arith.constant 8 : index
    %c0_214 = arith.constant 0 : index
    %c0_215 = arith.constant 0 : index
    %403 = vector.load %arg7[%c8_213, %c0_214, %c0_215] : memref<18x18x128xf32, #tpu.memory_space<vmem>>, vector<1x16x128xf32>
    %404 = vector.shape_cast %403 : vector<1x16x128xf32> to vector<16x128xf32>
    %405 = vector.shape_cast %19 : vector<128xf32> to vector<1x128xf32>
    %406 = vector.broadcast %405 : vector<1x128xf32> to vector<16x128xf32>
    %407 = arith.mulf %404, %406 : vector<16x128xf32>
    %408 = arith.addf %402, %407 : vector<16x128xf32>
    %c8_216 = arith.constant 8 : index
    %c1_217 = arith.constant 1 : index
    %c0_218 = arith.constant 0 : index
    %409 = vector.load %arg7[%c8_216, %c1_217, %c0_218] : memref<18x18x128xf32, #tpu.memory_space<vmem>>, vector<1x16x128xf32>
    %410 = vector.shape_cast %409 : vector<1x16x128xf32> to vector<16x128xf32>
    %411 = vector.shape_cast %21 : vector<128xf32> to vector<1x128xf32>
    %412 = vector.broadcast %411 : vector<1x128xf32> to vector<16x128xf32>
    %413 = arith.mulf %410, %412 : vector<16x128xf32>
    %414 = arith.addf %408, %413 : vector<16x128xf32>
    %c8_219 = arith.constant 8 : index
    %c2_220 = arith.constant 2 : index
    %c0_221 = arith.constant 0 : index
    %415 = vector.load %arg7[%c8_219, %c2_220, %c0_221] : memref<18x18x128xf32, #tpu.memory_space<vmem>>, vector<1x16x128xf32>
    %416 = vector.shape_cast %415 : vector<1x16x128xf32> to vector<16x128xf32>
    %417 = vector.shape_cast %23 : vector<128xf32> to vector<1x128xf32>
    %418 = vector.broadcast %417 : vector<1x128xf32> to vector<16x128xf32>
    %419 = arith.mulf %416, %418 : vector<16x128xf32>
    %420 = arith.addf %414, %419 : vector<16x128xf32>
    %421 = arith.truncf %420 : vector<16x128xf32> to vector<16x128xbf16>
    %c96 = arith.constant 96 : index
    %c0_222 = arith.constant 0 : index
    %422 = vector.load %arg8[%c96, %c0_222] : memref<256x128xbf16, #tpu.memory_space<vmem>>, vector<16x128xbf16>
    tpu.vector_store %arg8[%c96, %c0_222], %421 {strides = array<i32>} : memref<256x128xbf16, #tpu.memory_space<vmem>>, vector<16x128xbf16>,
    %cst_223 = arith.constant 0.000000e+00 : f32
    %423 = vector.broadcast %cst_223 : f32 to vector<16x128xf32>
    %c7_224 = arith.constant 7 : index
    %c0_225 = arith.constant 0 : index
    %c0_226 = arith.constant 0 : index
    %424 = vector.load %arg7[%c7_224, %c0_225, %c0_226] : memref<18x18x128xf32, #tpu.memory_space<vmem>>, vector<1x16x128xf32>
    %425 = vector.shape_cast %424 : vector<1x16x128xf32> to vector<16x128xf32>
    %426 = vector.shape_cast %7 : vector<128xf32> to vector<1x128xf32>
    %427 = vector.broadcast %426 : vector<1x128xf32> to vector<16x128xf32>
    %428 = arith.mulf %425, %427 : vector<16x128xf32>
    %429 = arith.addf %423, %428 : vector<16x128xf32>
    %c7_227 = arith.constant 7 : index
    %c1_228 = arith.constant 1 : index
    %c0_229 = arith.constant 0 : index
    %430 = vector.load %arg7[%c7_227, %c1_228, %c0_229] : memref<18x18x128xf32, #tpu.memory_space<vmem>>, vector<1x16x128xf32>
    %431 = vector.shape_cast %430 : vector<1x16x128xf32> to vector<16x128xf32>
    %432 = vector.shape_cast %9 : vector<128xf32> to vector<1x128xf32>
    %433 = vector.broadcast %432 : vector<1x128xf32> to vector<16x128xf32>
    %434 = arith.mulf %431, %433 : vector<16x128xf32>
    %435 = arith.addf %429, %434 : vector<16x128xf32>
    %c7_230 = arith.constant 7 : index
    %c2_231 = arith.constant 2 : index
    %c0_232 = arith.constant 0 : index
    %436 = vector.load %arg7[%c7_230, %c2_231, %c0_232] : memref<18x18x128xf32, #tpu.memory_space<vmem>>, vector<1x16x128xf32>
    %437 = vector.shape_cast %436 : vector<1x16x128xf32> to vector<16x128xf32>
    %438 = vector.shape_cast %11 : vector<128xf32> to vector<1x128xf32>
    %439 = vector.broadcast %438 : vector<1x128xf32> to vector<16x128xf32>
    %440 = arith.mulf %437, %439 : vector<16x128xf32>
    %441 = arith.addf %435, %440 : vector<16x128xf32>
    %c8_233 = arith.constant 8 : index
    %c0_234 = arith.constant 0 : index
    %c0_235 = arith.constant 0 : index
    %442 = vector.load %arg7[%c8_233, %c0_234, %c0_235] : memref<18x18x128xf32, #tpu.memory_space<vmem>>, vector<1x16x128xf32>
    %443 = vector.shape_cast %442 : vector<1x16x128xf32> to vector<16x128xf32>
    %444 = vector.shape_cast %13 : vector<128xf32> to vector<1x128xf32>
    %445 = vector.broadcast %444 : vector<1x128xf32> to vector<16x128xf32>
    %446 = arith.mulf %443, %445 : vector<16x128xf32>
    %447 = arith.addf %441, %446 : vector<16x128xf32>
    %c8_236 = arith.constant 8 : index
    %c1_237 = arith.constant 1 : index
    %c0_238 = arith.constant 0 : index
    %448 = vector.load %arg7[%c8_236, %c1_237, %c0_238] : memref<18x18x128xf32, #tpu.memory_space<vmem>>, vector<1x16x128xf32>
    %449 = vector.shape_cast %448 : vector<1x16x128xf32> to vector<16x128xf32>
    %450 = vector.shape_cast %15 : vector<128xf32> to vector<1x128xf32>
    %451 = vector.broadcast %450 : vector<1x128xf32> to vector<16x128xf32>
    %452 = arith.mulf %449, %451 : vector<16x128xf32>
    %453 = arith.addf %447, %452 : vector<16x128xf32>
    %c8_239 = arith.constant 8 : index
    %c2_240 = arith.constant 2 : index
    %c0_241 = arith.constant 0 : index
    %454 = vector.load %arg7[%c8_239, %c2_240, %c0_241] : memref<18x18x128xf32, #tpu.memory_space<vmem>>, vector<1x16x128xf32>
    %455 = vector.shape_cast %454 : vector<1x16x128xf32> to vector<16x128xf32>
    %456 = vector.shape_cast %17 : vector<128xf32> to vector<1x128xf32>
    %457 = vector.broadcast %456 : vector<1x128xf32> to vector<16x128xf32>
    %458 = arith.mulf %455, %457 : vector<16x128xf32>
    %459 = arith.addf %453, %458 : vector<16x128xf32>
    %c9 = arith.constant 9 : index
    %c0_242 = arith.constant 0 : index
    %c0_243 = arith.constant 0 : index
    %460 = vector.load %arg7[%c9, %c0_242, %c0_243] : memref<18x18x128xf32, #tpu.memory_space<vmem>>, vector<1x16x128xf32>
    %461 = vector.shape_cast %460 : vector<1x16x128xf32> to vector<16x128xf32>
    %462 = vector.shape_cast %19 : vector<128xf32> to vector<1x128xf32>
    %463 = vector.broadcast %462 : vector<1x128xf32> to vector<16x128xf32>
    %464 = arith.mulf %461, %463 : vector<16x128xf32>
    %465 = arith.addf %459, %464 : vector<16x128xf32>
    %c9_244 = arith.constant 9 : index
    %c1_245 = arith.constant 1 : index
    %c0_246 = arith.constant 0 : index
    %466 = vector.load %arg7[%c9_244, %c1_245, %c0_246] : memref<18x18x128xf32, #tpu.memory_space<vmem>>, vector<1x16x128xf32>
    %467 = vector.shape_cast %466 : vector<1x16x128xf32> to vector<16x128xf32>
    %468 = vector.shape_cast %21 : vector<128xf32> to vector<1x128xf32>
    %469 = vector.broadcast %468 : vector<1x128xf32> to vector<16x128xf32>
    %470 = arith.mulf %467, %469 : vector<16x128xf32>
    %471 = arith.addf %465, %470 : vector<16x128xf32>
    %c9_247 = arith.constant 9 : index
    %c2_248 = arith.constant 2 : index
    %c0_249 = arith.constant 0 : index
    %472 = vector.load %arg7[%c9_247, %c2_248, %c0_249] : memref<18x18x128xf32, #tpu.memory_space<vmem>>, vector<1x16x128xf32>
    %473 = vector.shape_cast %472 : vector<1x16x128xf32> to vector<16x128xf32>
    %474 = vector.shape_cast %23 : vector<128xf32> to vector<1x128xf32>
    %475 = vector.broadcast %474 : vector<1x128xf32> to vector<16x128xf32>
    %476 = arith.mulf %473, %475 : vector<16x128xf32>
    %477 = arith.addf %471, %476 : vector<16x128xf32>
    %478 = arith.truncf %477 : vector<16x128xf32> to vector<16x128xbf16>
    %c112 = arith.constant 112 : index
    %c0_250 = arith.constant 0 : index
    %479 = vector.load %arg8[%c112, %c0_250] : memref<256x128xbf16, #tpu.memory_space<vmem>>, vector<16x128xbf16>
    tpu.vector_store %arg8[%c112, %c0_250], %478 {strides = array<i32>} : memref<256x128xbf16, #tpu.memory_space<vmem>>, vector<16x128xbf16>,
    %cst_251 = arith.constant 0.000000e+00 : f32
    %480 = vector.broadcast %cst_251 : f32 to vector<16x128xf32>
    %c8_252 = arith.constant 8 : index
    %c0_253 = arith.constant 0 : index
    %c0_254 = arith.constant 0 : index
    %481 = vector.load %arg7[%c8_252, %c0_253, %c0_254] : memref<18x18x128xf32, #tpu.memory_space<vmem>>, vector<1x16x128xf32>
    %482 = vector.shape_cast %481 : vector<1x16x128xf32> to vector<16x128xf32>
    %483 = vector.shape_cast %7 : vector<128xf32> to vector<1x128xf32>
    %484 = vector.broadcast %483 : vector<1x128xf32> to vector<16x128xf32>
    %485 = arith.mulf %482, %484 : vector<16x128xf32>
    %486 = arith.addf %480, %485 : vector<16x128xf32>
    %c8_255 = arith.constant 8 : index
    %c1_256 = arith.constant 1 : index
    %c0_257 = arith.constant 0 : index
    %487 = vector.load %arg7[%c8_255, %c1_256, %c0_257] : memref<18x18x128xf32, #tpu.memory_space<vmem>>, vector<1x16x128xf32>
    %488 = vector.shape_cast %487 : vector<1x16x128xf32> to vector<16x128xf32>
    %489 = vector.shape_cast %9 : vector<128xf32> to vector<1x128xf32>
    %490 = vector.broadcast %489 : vector<1x128xf32> to vector<16x128xf32>
    %491 = arith.mulf %488, %490 : vector<16x128xf32>
    %492 = arith.addf %486, %491 : vector<16x128xf32>
    %c8_258 = arith.constant 8 : index
    %c2_259 = arith.constant 2 : index
    %c0_260 = arith.constant 0 : index
    %493 = vector.load %arg7[%c8_258, %c2_259, %c0_260] : memref<18x18x128xf32, #tpu.memory_space<vmem>>, vector<1x16x128xf32>
    %494 = vector.shape_cast %493 : vector<1x16x128xf32> to vector<16x128xf32>
    %495 = vector.shape_cast %11 : vector<128xf32> to vector<1x128xf32>
    %496 = vector.broadcast %495 : vector<1x128xf32> to vector<16x128xf32>
    %497 = arith.mulf %494, %496 : vector<16x128xf32>
    %498 = arith.addf %492, %497 : vector<16x128xf32>
    %c9_261 = arith.constant 9 : index
    %c0_262 = arith.constant 0 : index
    %c0_263 = arith.constant 0 : index
    %499 = vector.load %arg7[%c9_261, %c0_262, %c0_263] : memref<18x18x128xf32, #tpu.memory_space<vmem>>, vector<1x16x128xf32>
    %500 = vector.shape_cast %499 : vector<1x16x128xf32> to vector<16x128xf32>
    %501 = vector.shape_cast %13 : vector<128xf32> to vector<1x128xf32>
    %502 = vector.broadcast %501 : vector<1x128xf32> to vector<16x128xf32>
    %503 = arith.mulf %500, %502 : vector<16x128xf32>
    %504 = arith.addf %498, %503 : vector<16x128xf32>
    %c9_264 = arith.constant 9 : index
    %c1_265 = arith.constant 1 : index
    %c0_266 = arith.constant 0 : index
    %505 = vector.load %arg7[%c9_264, %c1_265, %c0_266] : memref<18x18x128xf32, #tpu.memory_space<vmem>>, vector<1x16x128xf32>
    %506 = vector.shape_cast %505 : vector<1x16x128xf32> to vector<16x128xf32>
    %507 = vector.shape_cast %15 : vector<128xf32> to vector<1x128xf32>
    %508 = vector.broadcast %507 : vector<1x128xf32> to vector<16x128xf32>
    %509 = arith.mulf %506, %508 : vector<16x128xf32>
    %510 = arith.addf %504, %509 : vector<16x128xf32>
    %c9_267 = arith.constant 9 : index
    %c2_268 = arith.constant 2 : index
    %c0_269 = arith.constant 0 : index
    %511 = vector.load %arg7[%c9_267, %c2_268, %c0_269] : memref<18x18x128xf32, #tpu.memory_space<vmem>>, vector<1x16x128xf32>
    %512 = vector.shape_cast %511 : vector<1x16x128xf32> to vector<16x128xf32>
    %513 = vector.shape_cast %17 : vector<128xf32> to vector<1x128xf32>
    %514 = vector.broadcast %513 : vector<1x128xf32> to vector<16x128xf32>
    %515 = arith.mulf %512, %514 : vector<16x128xf32>
    %516 = arith.addf %510, %515 : vector<16x128xf32>
    %c10 = arith.constant 10 : index
    %c0_270 = arith.constant 0 : index
    %c0_271 = arith.constant 0 : index
    %517 = vector.load %arg7[%c10, %c0_270, %c0_271] : memref<18x18x128xf32, #tpu.memory_space<vmem>>, vector<1x16x128xf32>
    %518 = vector.shape_cast %517 : vector<1x16x128xf32> to vector<16x128xf32>
    %519 = vector.shape_cast %19 : vector<128xf32> to vector<1x128xf32>
    %520 = vector.broadcast %519 : vector<1x128xf32> to vector<16x128xf32>
    %521 = arith.mulf %518, %520 : vector<16x128xf32>
    %522 = arith.addf %516, %521 : vector<16x128xf32>
    %c10_272 = arith.constant 10 : index
    %c1_273 = arith.constant 1 : index
    %c0_274 = arith.constant 0 : index
    %523 = vector.load %arg7[%c10_272, %c1_273, %c0_274] : memref<18x18x128xf32, #tpu.memory_space<vmem>>, vector<1x16x128xf32>
    %524 = vector.shape_cast %523 : vector<1x16x128xf32> to vector<16x128xf32>
    %525 = vector.shape_cast %21 : vector<128xf32> to vector<1x128xf32>
    %526 = vector.broadcast %525 : vector<1x128xf32> to vector<16x128xf32>
    %527 = arith.mulf %524, %526 : vector<16x128xf32>
    %528 = arith.addf %522, %527 : vector<16x128xf32>
    %c10_275 = arith.constant 10 : index
    %c2_276 = arith.constant 2 : index
    %c0_277 = arith.constant 0 : index
    %529 = vector.load %arg7[%c10_275, %c2_276, %c0_277] : memref<18x18x128xf32, #tpu.memory_space<vmem>>, vector<1x16x128xf32>
    %530 = vector.shape_cast %529 : vector<1x16x128xf32> to vector<16x128xf32>
    %531 = vector.shape_cast %23 : vector<128xf32> to vector<1x128xf32>
    %532 = vector.broadcast %531 : vector<1x128xf32> to vector<16x128xf32>
    %533 = arith.mulf %530, %532 : vector<16x128xf32>
    %534 = arith.addf %528, %533 : vector<16x128xf32>
    %535 = arith.truncf %534 : vector<16x128xf32> to vector<16x128xbf16>
    %c128 = arith.constant 128 : index
    %c0_278 = arith.constant 0 : index
    %536 = vector.load %arg8[%c128, %c0_278] : memref<256x128xbf16, #tpu.memory_space<vmem>>, vector<16x128xbf16>
    tpu.vector_store %arg8[%c128, %c0_278], %535 {strides = array<i32>} : memref<256x128xbf16, #tpu.memory_space<vmem>>, vector<16x128xbf16>,
    %cst_279 = arith.constant 0.000000e+00 : f32
    %537 = vector.broadcast %cst_279 : f32 to vector<16x128xf32>
    %c9_280 = arith.constant 9 : index
    %c0_281 = arith.constant 0 : index
    %c0_282 = arith.constant 0 : index
    %538 = vector.load %arg7[%c9_280, %c0_281, %c0_282] : memref<18x18x128xf32, #tpu.memory_space<vmem>>, vector<1x16x128xf32>
    %539 = vector.shape_cast %538 : vector<1x16x128xf32> to vector<16x128xf32>
    %540 = vector.shape_cast %7 : vector<128xf32> to vector<1x128xf32>
    %541 = vector.broadcast %540 : vector<1x128xf32> to vector<16x128xf32>
    %542 = arith.mulf %539, %541 : vector<16x128xf32>
    %543 = arith.addf %537, %542 : vector<16x128xf32>
    %c9_283 = arith.constant 9 : index
    %c1_284 = arith.constant 1 : index
    %c0_285 = arith.constant 0 : index
    %544 = vector.load %arg7[%c9_283, %c1_284, %c0_285] : memref<18x18x128xf32, #tpu.memory_space<vmem>>, vector<1x16x128xf32>
    %545 = vector.shape_cast %544 : vector<1x16x128xf32> to vector<16x128xf32>
    %546 = vector.shape_cast %9 : vector<128xf32> to vector<1x128xf32>
    %547 = vector.broadcast %546 : vector<1x128xf32> to vector<16x128xf32>
    %548 = arith.mulf %545, %547 : vector<16x128xf32>
    %549 = arith.addf %543, %548 : vector<16x128xf32>
    %c9_286 = arith.constant 9 : index
    %c2_287 = arith.constant 2 : index
    %c0_288 = arith.constant 0 : index
    %550 = vector.load %arg7[%c9_286, %c2_287, %c0_288] : memref<18x18x128xf32, #tpu.memory_space<vmem>>, vector<1x16x128xf32>
    %551 = vector.shape_cast %550 : vector<1x16x128xf32> to vector<16x128xf32>
    %552 = vector.shape_cast %11 : vector<128xf32> to vector<1x128xf32>
    %553 = vector.broadcast %552 : vector<1x128xf32> to vector<16x128xf32>
    %554 = arith.mulf %551, %553 : vector<16x128xf32>
    %555 = arith.addf %549, %554 : vector<16x128xf32>
    %c10_289 = arith.constant 10 : index
    %c0_290 = arith.constant 0 : index
    %c0_291 = arith.constant 0 : index
    %556 = vector.load %arg7[%c10_289, %c0_290, %c0_291] : memref<18x18x128xf32, #tpu.memory_space<vmem>>, vector<1x16x128xf32>
    %557 = vector.shape_cast %556 : vector<1x16x128xf32> to vector<16x128xf32>
    %558 = vector.shape_cast %13 : vector<128xf32> to vector<1x128xf32>
    %559 = vector.broadcast %558 : vector<1x128xf32> to vector<16x128xf32>
    %560 = arith.mulf %557, %559 : vector<16x128xf32>
    %561 = arith.addf %555, %560 : vector<16x128xf32>
    %c10_292 = arith.constant 10 : index
    %c1_293 = arith.constant 1 : index
    %c0_294 = arith.constant 0 : index
    %562 = vector.load %arg7[%c10_292, %c1_293, %c0_294] : memref<18x18x128xf32, #tpu.memory_space<vmem>>, vector<1x16x128xf32>
    %563 = vector.shape_cast %562 : vector<1x16x128xf32> to vector<16x128xf32>
    %564 = vector.shape_cast %15 : vector<128xf32> to vector<1x128xf32>
    %565 = vector.broadcast %564 : vector<1x128xf32> to vector<16x128xf32>
    %566 = arith.mulf %563, %565 : vector<16x128xf32>
    %567 = arith.addf %561, %566 : vector<16x128xf32>
    %c10_295 = arith.constant 10 : index
    %c2_296 = arith.constant 2 : index
    %c0_297 = arith.constant 0 : index
    %568 = vector.load %arg7[%c10_295, %c2_296, %c0_297] : memref<18x18x128xf32, #tpu.memory_space<vmem>>, vector<1x16x128xf32>
    %569 = vector.shape_cast %568 : vector<1x16x128xf32> to vector<16x128xf32>
    %570 = vector.shape_cast %17 : vector<128xf32> to vector<1x128xf32>
    %571 = vector.broadcast %570 : vector<1x128xf32> to vector<16x128xf32>
    %572 = arith.mulf %569, %571 : vector<16x128xf32>
    %573 = arith.addf %567, %572 : vector<16x128xf32>
    %c11 = arith.constant 11 : index
    %c0_298 = arith.constant 0 : index
    %c0_299 = arith.constant 0 : index
    %574 = vector.load %arg7[%c11, %c0_298, %c0_299] : memref<18x18x128xf32, #tpu.memory_space<vmem>>, vector<1x16x128xf32>
    %575 = vector.shape_cast %574 : vector<1x16x128xf32> to vector<16x128xf32>
    %576 = vector.shape_cast %19 : vector<128xf32> to vector<1x128xf32>
    %577 = vector.broadcast %576 : vector<1x128xf32> to vector<16x128xf32>
    %578 = arith.mulf %575, %577 : vector<16x128xf32>
    %579 = arith.addf %573, %578 : vector<16x128xf32>
    %c11_300 = arith.constant 11 : index
    %c1_301 = arith.constant 1 : index
    %c0_302 = arith.constant 0 : index
    %580 = vector.load %arg7[%c11_300, %c1_301, %c0_302] : memref<18x18x128xf32, #tpu.memory_space<vmem>>, vector<1x16x128xf32>
    %581 = vector.shape_cast %580 : vector<1x16x128xf32> to vector<16x128xf32>
    %582 = vector.shape_cast %21 : vector<128xf32> to vector<1x128xf32>
    %583 = vector.broadcast %582 : vector<1x128xf32> to vector<16x128xf32>
    %584 = arith.mulf %581, %583 : vector<16x128xf32>
    %585 = arith.addf %579, %584 : vector<16x128xf32>
    %c11_303 = arith.constant 11 : index
    %c2_304 = arith.constant 2 : index
    %c0_305 = arith.constant 0 : index
    %586 = vector.load %arg7[%c11_303, %c2_304, %c0_305] : memref<18x18x128xf32, #tpu.memory_space<vmem>>, vector<1x16x128xf32>
    %587 = vector.shape_cast %586 : vector<1x16x128xf32> to vector<16x128xf32>
    %588 = vector.shape_cast %23 : vector<128xf32> to vector<1x128xf32>
    %589 = vector.broadcast %588 : vector<1x128xf32> to vector<16x128xf32>
    %590 = arith.mulf %587, %589 : vector<16x128xf32>
    %591 = arith.addf %585, %590 : vector<16x128xf32>
    %592 = arith.truncf %591 : vector<16x128xf32> to vector<16x128xbf16>
    %c144 = arith.constant 144 : index
    %c0_306 = arith.constant 0 : index
    %593 = vector.load %arg8[%c144, %c0_306] : memref<256x128xbf16, #tpu.memory_space<vmem>>, vector<16x128xbf16>
    tpu.vector_store %arg8[%c144, %c0_306], %592 {strides = array<i32>} : memref<256x128xbf16, #tpu.memory_space<vmem>>, vector<16x128xbf16>,
    %cst_307 = arith.constant 0.000000e+00 : f32
    %594 = vector.broadcast %cst_307 : f32 to vector<16x128xf32>
    %c10_308 = arith.constant 10 : index
    %c0_309 = arith.constant 0 : index
    %c0_310 = arith.constant 0 : index
    %595 = vector.load %arg7[%c10_308, %c0_309, %c0_310] : memref<18x18x128xf32, #tpu.memory_space<vmem>>, vector<1x16x128xf32>
    %596 = vector.shape_cast %595 : vector<1x16x128xf32> to vector<16x128xf32>
    %597 = vector.shape_cast %7 : vector<128xf32> to vector<1x128xf32>
    %598 = vector.broadcast %597 : vector<1x128xf32> to vector<16x128xf32>
    %599 = arith.mulf %596, %598 : vector<16x128xf32>
    %600 = arith.addf %594, %599 : vector<16x128xf32>
    %c10_311 = arith.constant 10 : index
    %c1_312 = arith.constant 1 : index
    %c0_313 = arith.constant 0 : index
    %601 = vector.load %arg7[%c10_311, %c1_312, %c0_313] : memref<18x18x128xf32, #tpu.memory_space<vmem>>, vector<1x16x128xf32>
    %602 = vector.shape_cast %601 : vector<1x16x128xf32> to vector<16x128xf32>
    %603 = vector.shape_cast %9 : vector<128xf32> to vector<1x128xf32>
    %604 = vector.broadcast %603 : vector<1x128xf32> to vector<16x128xf32>
    %605 = arith.mulf %602, %604 : vector<16x128xf32>
    %606 = arith.addf %600, %605 : vector<16x128xf32>
    %c10_314 = arith.constant 10 : index
    %c2_315 = arith.constant 2 : index
    %c0_316 = arith.constant 0 : index
    %607 = vector.load %arg7[%c10_314, %c2_315, %c0_316] : memref<18x18x128xf32, #tpu.memory_space<vmem>>, vector<1x16x128xf32>
    %608 = vector.shape_cast %607 : vector<1x16x128xf32> to vector<16x128xf32>
    %609 = vector.shape_cast %11 : vector<128xf32> to vector<1x128xf32>
    %610 = vector.broadcast %609 : vector<1x128xf32> to vector<16x128xf32>
    %611 = arith.mulf %608, %610 : vector<16x128xf32>
    %612 = arith.addf %606, %611 : vector<16x128xf32>
    %c11_317 = arith.constant 11 : index
    %c0_318 = arith.constant 0 : index
    %c0_319 = arith.constant 0 : index
    %613 = vector.load %arg7[%c11_317, %c0_318, %c0_319] : memref<18x18x128xf32, #tpu.memory_space<vmem>>, vector<1x16x128xf32>
    %614 = vector.shape_cast %613 : vector<1x16x128xf32> to vector<16x128xf32>
    %615 = vector.shape_cast %13 : vector<128xf32> to vector<1x128xf32>
    %616 = vector.broadcast %615 : vector<1x128xf32> to vector<16x128xf32>
    %617 = arith.mulf %614, %616 : vector<16x128xf32>
    %618 = arith.addf %612, %617 : vector<16x128xf32>
    %c11_320 = arith.constant 11 : index
    %c1_321 = arith.constant 1 : index
    %c0_322 = arith.constant 0 : index
    %619 = vector.load %arg7[%c11_320, %c1_321, %c0_322] : memref<18x18x128xf32, #tpu.memory_space<vmem>>, vector<1x16x128xf32>
    %620 = vector.shape_cast %619 : vector<1x16x128xf32> to vector<16x128xf32>
    %621 = vector.shape_cast %15 : vector<128xf32> to vector<1x128xf32>
    %622 = vector.broadcast %621 : vector<1x128xf32> to vector<16x128xf32>
    %623 = arith.mulf %620, %622 : vector<16x128xf32>
    %624 = arith.addf %618, %623 : vector<16x128xf32>
    %c11_323 = arith.constant 11 : index
    %c2_324 = arith.constant 2 : index
    %c0_325 = arith.constant 0 : index
    %625 = vector.load %arg7[%c11_323, %c2_324, %c0_325] : memref<18x18x128xf32, #tpu.memory_space<vmem>>, vector<1x16x128xf32>
    %626 = vector.shape_cast %625 : vector<1x16x128xf32> to vector<16x128xf32>
    %627 = vector.shape_cast %17 : vector<128xf32> to vector<1x128xf32>
    %628 = vector.broadcast %627 : vector<1x128xf32> to vector<16x128xf32>
    %629 = arith.mulf %626, %628 : vector<16x128xf32>
    %630 = arith.addf %624, %629 : vector<16x128xf32>
    %c12 = arith.constant 12 : index
    %c0_326 = arith.constant 0 : index
    %c0_327 = arith.constant 0 : index
    %631 = vector.load %arg7[%c12, %c0_326, %c0_327] : memref<18x18x128xf32, #tpu.memory_space<vmem>>, vector<1x16x128xf32>
    %632 = vector.shape_cast %631 : vector<1x16x128xf32> to vector<16x128xf32>
    %633 = vector.shape_cast %19 : vector<128xf32> to vector<1x128xf32>
    %634 = vector.broadcast %633 : vector<1x128xf32> to vector<16x128xf32>
    %635 = arith.mulf %632, %634 : vector<16x128xf32>
    %636 = arith.addf %630, %635 : vector<16x128xf32>
    %c12_328 = arith.constant 12 : index
    %c1_329 = arith.constant 1 : index
    %c0_330 = arith.constant 0 : index
    %637 = vector.load %arg7[%c12_328, %c1_329, %c0_330] : memref<18x18x128xf32, #tpu.memory_space<vmem>>, vector<1x16x128xf32>
    %638 = vector.shape_cast %637 : vector<1x16x128xf32> to vector<16x128xf32>
    %639 = vector.shape_cast %21 : vector<128xf32> to vector<1x128xf32>
    %640 = vector.broadcast %639 : vector<1x128xf32> to vector<16x128xf32>
    %641 = arith.mulf %638, %640 : vector<16x128xf32>
    %642 = arith.addf %636, %641 : vector<16x128xf32>
    %c12_331 = arith.constant 12 : index
    %c2_332 = arith.constant 2 : index
    %c0_333 = arith.constant 0 : index
    %643 = vector.load %arg7[%c12_331, %c2_332, %c0_333] : memref<18x18x128xf32, #tpu.memory_space<vmem>>, vector<1x16x128xf32>
    %644 = vector.shape_cast %643 : vector<1x16x128xf32> to vector<16x128xf32>
    %645 = vector.shape_cast %23 : vector<128xf32> to vector<1x128xf32>
    %646 = vector.broadcast %645 : vector<1x128xf32> to vector<16x128xf32>
    %647 = arith.mulf %644, %646 : vector<16x128xf32>
    %648 = arith.addf %642, %647 : vector<16x128xf32>
    %649 = arith.truncf %648 : vector<16x128xf32> to vector<16x128xbf16>
    %c160 = arith.constant 160 : index
    %c0_334 = arith.constant 0 : index
    %650 = vector.load %arg8[%c160, %c0_334] : memref<256x128xbf16, #tpu.memory_space<vmem>>, vector<16x128xbf16>
    tpu.vector_store %arg8[%c160, %c0_334], %649 {strides = array<i32>} : memref<256x128xbf16, #tpu.memory_space<vmem>>, vector<16x128xbf16>,
    %cst_335 = arith.constant 0.000000e+00 : f32
    %651 = vector.broadcast %cst_335 : f32 to vector<16x128xf32>
    %c11_336 = arith.constant 11 : index
    %c0_337 = arith.constant 0 : index
    %c0_338 = arith.constant 0 : index
    %652 = vector.load %arg7[%c11_336, %c0_337, %c0_338] : memref<18x18x128xf32, #tpu.memory_space<vmem>>, vector<1x16x128xf32>
    %653 = vector.shape_cast %652 : vector<1x16x128xf32> to vector<16x128xf32>
    %654 = vector.shape_cast %7 : vector<128xf32> to vector<1x128xf32>
    %655 = vector.broadcast %654 : vector<1x128xf32> to vector<16x128xf32>
    %656 = arith.mulf %653, %655 : vector<16x128xf32>
    %657 = arith.addf %651, %656 : vector<16x128xf32>
    %c11_339 = arith.constant 11 : index
    %c1_340 = arith.constant 1 : index
    %c0_341 = arith.constant 0 : index
    %658 = vector.load %arg7[%c11_339, %c1_340, %c0_341] : memref<18x18x128xf32, #tpu.memory_space<vmem>>, vector<1x16x128xf32>
    %659 = vector.shape_cast %658 : vector<1x16x128xf32> to vector<16x128xf32>
    %660 = vector.shape_cast %9 : vector<128xf32> to vector<1x128xf32>
    %661 = vector.broadcast %660 : vector<1x128xf32> to vector<16x128xf32>
    %662 = arith.mulf %659, %661 : vector<16x128xf32>
    %663 = arith.addf %657, %662 : vector<16x128xf32>
    %c11_342 = arith.constant 11 : index
    %c2_343 = arith.constant 2 : index
    %c0_344 = arith.constant 0 : index
    %664 = vector.load %arg7[%c11_342, %c2_343, %c0_344] : memref<18x18x128xf32, #tpu.memory_space<vmem>>, vector<1x16x128xf32>
    %665 = vector.shape_cast %664 : vector<1x16x128xf32> to vector<16x128xf32>
    %666 = vector.shape_cast %11 : vector<128xf32> to vector<1x128xf32>
    %667 = vector.broadcast %666 : vector<1x128xf32> to vector<16x128xf32>
    %668 = arith.mulf %665, %667 : vector<16x128xf32>
    %669 = arith.addf %663, %668 : vector<16x128xf32>
    %c12_345 = arith.constant 12 : index
    %c0_346 = arith.constant 0 : index
    %c0_347 = arith.constant 0 : index
    %670 = vector.load %arg7[%c12_345, %c0_346, %c0_347] : memref<18x18x128xf32, #tpu.memory_space<vmem>>, vector<1x16x128xf32>
    %671 = vector.shape_cast %670 : vector<1x16x128xf32> to vector<16x128xf32>
    %672 = vector.shape_cast %13 : vector<128xf32> to vector<1x128xf32>
    %673 = vector.broadcast %672 : vector<1x128xf32> to vector<16x128xf32>
    %674 = arith.mulf %671, %673 : vector<16x128xf32>
    %675 = arith.addf %669, %674 : vector<16x128xf32>
    %c12_348 = arith.constant 12 : index
    %c1_349 = arith.constant 1 : index
    %c0_350 = arith.constant 0 : index
    %676 = vector.load %arg7[%c12_348, %c1_349, %c0_350] : memref<18x18x128xf32, #tpu.memory_space<vmem>>, vector<1x16x128xf32>
    %677 = vector.shape_cast %676 : vector<1x16x128xf32> to vector<16x128xf32>
    %678 = vector.shape_cast %15 : vector<128xf32> to vector<1x128xf32>
    %679 = vector.broadcast %678 : vector<1x128xf32> to vector<16x128xf32>
    %680 = arith.mulf %677, %679 : vector<16x128xf32>
    %681 = arith.addf %675, %680 : vector<16x128xf32>
    %c12_351 = arith.constant 12 : index
    %c2_352 = arith.constant 2 : index
    %c0_353 = arith.constant 0 : index
    %682 = vector.load %arg7[%c12_351, %c2_352, %c0_353] : memref<18x18x128xf32, #tpu.memory_space<vmem>>, vector<1x16x128xf32>
    %683 = vector.shape_cast %682 : vector<1x16x128xf32> to vector<16x128xf32>
    %684 = vector.shape_cast %17 : vector<128xf32> to vector<1x128xf32>
    %685 = vector.broadcast %684 : vector<1x128xf32> to vector<16x128xf32>
    %686 = arith.mulf %683, %685 : vector<16x128xf32>
    %687 = arith.addf %681, %686 : vector<16x128xf32>
    %c13 = arith.constant 13 : index
    %c0_354 = arith.constant 0 : index
    %c0_355 = arith.constant 0 : index
    %688 = vector.load %arg7[%c13, %c0_354, %c0_355] : memref<18x18x128xf32, #tpu.memory_space<vmem>>, vector<1x16x128xf32>
    %689 = vector.shape_cast %688 : vector<1x16x128xf32> to vector<16x128xf32>
    %690 = vector.shape_cast %19 : vector<128xf32> to vector<1x128xf32>
    %691 = vector.broadcast %690 : vector<1x128xf32> to vector<16x128xf32>
    %692 = arith.mulf %689, %691 : vector<16x128xf32>
    %693 = arith.addf %687, %692 : vector<16x128xf32>
    %c13_356 = arith.constant 13 : index
    %c1_357 = arith.constant 1 : index
    %c0_358 = arith.constant 0 : index
    %694 = vector.load %arg7[%c13_356, %c1_357, %c0_358] : memref<18x18x128xf32, #tpu.memory_space<vmem>>, vector<1x16x128xf32>
    %695 = vector.shape_cast %694 : vector<1x16x128xf32> to vector<16x128xf32>
    %696 = vector.shape_cast %21 : vector<128xf32> to vector<1x128xf32>
    %697 = vector.broadcast %696 : vector<1x128xf32> to vector<16x128xf32>
    %698 = arith.mulf %695, %697 : vector<16x128xf32>
    %699 = arith.addf %693, %698 : vector<16x128xf32>
    %c13_359 = arith.constant 13 : index
    %c2_360 = arith.constant 2 : index
    %c0_361 = arith.constant 0 : index
    %700 = vector.load %arg7[%c13_359, %c2_360, %c0_361] : memref<18x18x128xf32, #tpu.memory_space<vmem>>, vector<1x16x128xf32>
    %701 = vector.shape_cast %700 : vector<1x16x128xf32> to vector<16x128xf32>
    %702 = vector.shape_cast %23 : vector<128xf32> to vector<1x128xf32>
    %703 = vector.broadcast %702 : vector<1x128xf32> to vector<16x128xf32>
    %704 = arith.mulf %701, %703 : vector<16x128xf32>
    %705 = arith.addf %699, %704 : vector<16x128xf32>
    %706 = arith.truncf %705 : vector<16x128xf32> to vector<16x128xbf16>
    %c176 = arith.constant 176 : index
    %c0_362 = arith.constant 0 : index
    %707 = vector.load %arg8[%c176, %c0_362] : memref<256x128xbf16, #tpu.memory_space<vmem>>, vector<16x128xbf16>
    tpu.vector_store %arg8[%c176, %c0_362], %706 {strides = array<i32>} : memref<256x128xbf16, #tpu.memory_space<vmem>>, vector<16x128xbf16>,
    %cst_363 = arith.constant 0.000000e+00 : f32
    %708 = vector.broadcast %cst_363 : f32 to vector<16x128xf32>
    %c12_364 = arith.constant 12 : index
    %c0_365 = arith.constant 0 : index
    %c0_366 = arith.constant 0 : index
    %709 = vector.load %arg7[%c12_364, %c0_365, %c0_366] : memref<18x18x128xf32, #tpu.memory_space<vmem>>, vector<1x16x128xf32>
    %710 = vector.shape_cast %709 : vector<1x16x128xf32> to vector<16x128xf32>
    %711 = vector.shape_cast %7 : vector<128xf32> to vector<1x128xf32>
    %712 = vector.broadcast %711 : vector<1x128xf32> to vector<16x128xf32>
    %713 = arith.mulf %710, %712 : vector<16x128xf32>
    %714 = arith.addf %708, %713 : vector<16x128xf32>
    %c12_367 = arith.constant 12 : index
    %c1_368 = arith.constant 1 : index
    %c0_369 = arith.constant 0 : index
    %715 = vector.load %arg7[%c12_367, %c1_368, %c0_369] : memref<18x18x128xf32, #tpu.memory_space<vmem>>, vector<1x16x128xf32>
    %716 = vector.shape_cast %715 : vector<1x16x128xf32> to vector<16x128xf32>
    %717 = vector.shape_cast %9 : vector<128xf32> to vector<1x128xf32>
    %718 = vector.broadcast %717 : vector<1x128xf32> to vector<16x128xf32>
    %719 = arith.mulf %716, %718 : vector<16x128xf32>
    %720 = arith.addf %714, %719 : vector<16x128xf32>
    %c12_370 = arith.constant 12 : index
    %c2_371 = arith.constant 2 : index
    %c0_372 = arith.constant 0 : index
    %721 = vector.load %arg7[%c12_370, %c2_371, %c0_372] : memref<18x18x128xf32, #tpu.memory_space<vmem>>, vector<1x16x128xf32>
    %722 = vector.shape_cast %721 : vector<1x16x128xf32> to vector<16x128xf32>
    %723 = vector.shape_cast %11 : vector<128xf32> to vector<1x128xf32>
    %724 = vector.broadcast %723 : vector<1x128xf32> to vector<16x128xf32>
    %725 = arith.mulf %722, %724 : vector<16x128xf32>
    %726 = arith.addf %720, %725 : vector<16x128xf32>
    %c13_373 = arith.constant 13 : index
    %c0_374 = arith.constant 0 : index
    %c0_375 = arith.constant 0 : index
    %727 = vector.load %arg7[%c13_373, %c0_374, %c0_375] : memref<18x18x128xf32, #tpu.memory_space<vmem>>, vector<1x16x128xf32>
    %728 = vector.shape_cast %727 : vector<1x16x128xf32> to vector<16x128xf32>
    %729 = vector.shape_cast %13 : vector<128xf32> to vector<1x128xf32>
    %730 = vector.broadcast %729 : vector<1x128xf32> to vector<16x128xf32>
    %731 = arith.mulf %728, %730 : vector<16x128xf32>
    %732 = arith.addf %726, %731 : vector<16x128xf32>
    %c13_376 = arith.constant 13 : index
    %c1_377 = arith.constant 1 : index
    %c0_378 = arith.constant 0 : index
    %733 = vector.load %arg7[%c13_376, %c1_377, %c0_378] : memref<18x18x128xf32, #tpu.memory_space<vmem>>, vector<1x16x128xf32>
    %734 = vector.shape_cast %733 : vector<1x16x128xf32> to vector<16x128xf32>
    %735 = vector.shape_cast %15 : vector<128xf32> to vector<1x128xf32>
    %736 = vector.broadcast %735 : vector<1x128xf32> to vector<16x128xf32>
    %737 = arith.mulf %734, %736 : vector<16x128xf32>
    %738 = arith.addf %732, %737 : vector<16x128xf32>
    %c13_379 = arith.constant 13 : index
    %c2_380 = arith.constant 2 : index
    %c0_381 = arith.constant 0 : index
    %739 = vector.load %arg7[%c13_379, %c2_380, %c0_381] : memref<18x18x128xf32, #tpu.memory_space<vmem>>, vector<1x16x128xf32>
    %740 = vector.shape_cast %739 : vector<1x16x128xf32> to vector<16x128xf32>
    %741 = vector.shape_cast %17 : vector<128xf32> to vector<1x128xf32>
    %742 = vector.broadcast %741 : vector<1x128xf32> to vector<16x128xf32>
    %743 = arith.mulf %740, %742 : vector<16x128xf32>
    %744 = arith.addf %738, %743 : vector<16x128xf32>
    %c14 = arith.constant 14 : index
    %c0_382 = arith.constant 0 : index
    %c0_383 = arith.constant 0 : index
    %745 = vector.load %arg7[%c14, %c0_382, %c0_383] : memref<18x18x128xf32, #tpu.memory_space<vmem>>, vector<1x16x128xf32>
    %746 = vector.shape_cast %745 : vector<1x16x128xf32> to vector<16x128xf32>
    %747 = vector.shape_cast %19 : vector<128xf32> to vector<1x128xf32>
    %748 = vector.broadcast %747 : vector<1x128xf32> to vector<16x128xf32>
    %749 = arith.mulf %746, %748 : vector<16x128xf32>
    %750 = arith.addf %744, %749 : vector<16x128xf32>
    %c14_384 = arith.constant 14 : index
    %c1_385 = arith.constant 1 : index
    %c0_386 = arith.constant 0 : index
    %751 = vector.load %arg7[%c14_384, %c1_385, %c0_386] : memref<18x18x128xf32, #tpu.memory_space<vmem>>, vector<1x16x128xf32>
    %752 = vector.shape_cast %751 : vector<1x16x128xf32> to vector<16x128xf32>
    %753 = vector.shape_cast %21 : vector<128xf32> to vector<1x128xf32>
    %754 = vector.broadcast %753 : vector<1x128xf32> to vector<16x128xf32>
    %755 = arith.mulf %752, %754 : vector<16x128xf32>
    %756 = arith.addf %750, %755 : vector<16x128xf32>
    %c14_387 = arith.constant 14 : index
    %c2_388 = arith.constant 2 : index
    %c0_389 = arith.constant 0 : index
    %757 = vector.load %arg7[%c14_387, %c2_388, %c0_389] : memref<18x18x128xf32, #tpu.memory_space<vmem>>, vector<1x16x128xf32>
    %758 = vector.shape_cast %757 : vector<1x16x128xf32> to vector<16x128xf32>
    %759 = vector.shape_cast %23 : vector<128xf32> to vector<1x128xf32>
    %760 = vector.broadcast %759 : vector<1x128xf32> to vector<16x128xf32>
    %761 = arith.mulf %758, %760 : vector<16x128xf32>
    %762 = arith.addf %756, %761 : vector<16x128xf32>
    %763 = arith.truncf %762 : vector<16x128xf32> to vector<16x128xbf16>
    %c192 = arith.constant 192 : index
    %c0_390 = arith.constant 0 : index
    %764 = vector.load %arg8[%c192, %c0_390] : memref<256x128xbf16, #tpu.memory_space<vmem>>, vector<16x128xbf16>
    tpu.vector_store %arg8[%c192, %c0_390], %763 {strides = array<i32>} : memref<256x128xbf16, #tpu.memory_space<vmem>>, vector<16x128xbf16>,
    %cst_391 = arith.constant 0.000000e+00 : f32
    %765 = vector.broadcast %cst_391 : f32 to vector<16x128xf32>
    %c13_392 = arith.constant 13 : index
    %c0_393 = arith.constant 0 : index
    %c0_394 = arith.constant 0 : index
    %766 = vector.load %arg7[%c13_392, %c0_393, %c0_394] : memref<18x18x128xf32, #tpu.memory_space<vmem>>, vector<1x16x128xf32>
    %767 = vector.shape_cast %766 : vector<1x16x128xf32> to vector<16x128xf32>
    %768 = vector.shape_cast %7 : vector<128xf32> to vector<1x128xf32>
    %769 = vector.broadcast %768 : vector<1x128xf32> to vector<16x128xf32>
    %770 = arith.mulf %767, %769 : vector<16x128xf32>
    %771 = arith.addf %765, %770 : vector<16x128xf32>
    %c13_395 = arith.constant 13 : index
    %c1_396 = arith.constant 1 : index
    %c0_397 = arith.constant 0 : index
    %772 = vector.load %arg7[%c13_395, %c1_396, %c0_397] : memref<18x18x128xf32, #tpu.memory_space<vmem>>, vector<1x16x128xf32>
    %773 = vector.shape_cast %772 : vector<1x16x128xf32> to vector<16x128xf32>
    %774 = vector.shape_cast %9 : vector<128xf32> to vector<1x128xf32>
    %775 = vector.broadcast %774 : vector<1x128xf32> to vector<16x128xf32>
    %776 = arith.mulf %773, %775 : vector<16x128xf32>
    %777 = arith.addf %771, %776 : vector<16x128xf32>
    %c13_398 = arith.constant 13 : index
    %c2_399 = arith.constant 2 : index
    %c0_400 = arith.constant 0 : index
    %778 = vector.load %arg7[%c13_398, %c2_399, %c0_400] : memref<18x18x128xf32, #tpu.memory_space<vmem>>, vector<1x16x128xf32>
    %779 = vector.shape_cast %778 : vector<1x16x128xf32> to vector<16x128xf32>
    %780 = vector.shape_cast %11 : vector<128xf32> to vector<1x128xf32>
    %781 = vector.broadcast %780 : vector<1x128xf32> to vector<16x128xf32>
    %782 = arith.mulf %779, %781 : vector<16x128xf32>
    %783 = arith.addf %777, %782 : vector<16x128xf32>
    %c14_401 = arith.constant 14 : index
    %c0_402 = arith.constant 0 : index
    %c0_403 = arith.constant 0 : index
    %784 = vector.load %arg7[%c14_401, %c0_402, %c0_403] : memref<18x18x128xf32, #tpu.memory_space<vmem>>, vector<1x16x128xf32>
    %785 = vector.shape_cast %784 : vector<1x16x128xf32> to vector<16x128xf32>
    %786 = vector.shape_cast %13 : vector<128xf32> to vector<1x128xf32>
    %787 = vector.broadcast %786 : vector<1x128xf32> to vector<16x128xf32>
    %788 = arith.mulf %785, %787 : vector<16x128xf32>
    %789 = arith.addf %783, %788 : vector<16x128xf32>
    %c14_404 = arith.constant 14 : index
    %c1_405 = arith.constant 1 : index
    %c0_406 = arith.constant 0 : index
    %790 = vector.load %arg7[%c14_404, %c1_405, %c0_406] : memref<18x18x128xf32, #tpu.memory_space<vmem>>, vector<1x16x128xf32>
    %791 = vector.shape_cast %790 : vector<1x16x128xf32> to vector<16x128xf32>
    %792 = vector.shape_cast %15 : vector<128xf32> to vector<1x128xf32>
    %793 = vector.broadcast %792 : vector<1x128xf32> to vector<16x128xf32>
    %794 = arith.mulf %791, %793 : vector<16x128xf32>
    %795 = arith.addf %789, %794 : vector<16x128xf32>
    %c14_407 = arith.constant 14 : index
    %c2_408 = arith.constant 2 : index
    %c0_409 = arith.constant 0 : index
    %796 = vector.load %arg7[%c14_407, %c2_408, %c0_409] : memref<18x18x128xf32, #tpu.memory_space<vmem>>, vector<1x16x128xf32>
    %797 = vector.shape_cast %796 : vector<1x16x128xf32> to vector<16x128xf32>
    %798 = vector.shape_cast %17 : vector<128xf32> to vector<1x128xf32>
    %799 = vector.broadcast %798 : vector<1x128xf32> to vector<16x128xf32>
    %800 = arith.mulf %797, %799 : vector<16x128xf32>
    %801 = arith.addf %795, %800 : vector<16x128xf32>
    %c15 = arith.constant 15 : index
    %c0_410 = arith.constant 0 : index
    %c0_411 = arith.constant 0 : index
    %802 = vector.load %arg7[%c15, %c0_410, %c0_411] : memref<18x18x128xf32, #tpu.memory_space<vmem>>, vector<1x16x128xf32>
    %803 = vector.shape_cast %802 : vector<1x16x128xf32> to vector<16x128xf32>
    %804 = vector.shape_cast %19 : vector<128xf32> to vector<1x128xf32>
    %805 = vector.broadcast %804 : vector<1x128xf32> to vector<16x128xf32>
    %806 = arith.mulf %803, %805 : vector<16x128xf32>
    %807 = arith.addf %801, %806 : vector<16x128xf32>
    %c15_412 = arith.constant 15 : index
    %c1_413 = arith.constant 1 : index
    %c0_414 = arith.constant 0 : index
    %808 = vector.load %arg7[%c15_412, %c1_413, %c0_414] : memref<18x18x128xf32, #tpu.memory_space<vmem>>, vector<1x16x128xf32>
    %809 = vector.shape_cast %808 : vector<1x16x128xf32> to vector<16x128xf32>
    %810 = vector.shape_cast %21 : vector<128xf32> to vector<1x128xf32>
    %811 = vector.broadcast %810 : vector<1x128xf32> to vector<16x128xf32>
    %812 = arith.mulf %809, %811 : vector<16x128xf32>
    %813 = arith.addf %807, %812 : vector<16x128xf32>
    %c15_415 = arith.constant 15 : index
    %c2_416 = arith.constant 2 : index
    %c0_417 = arith.constant 0 : index
    %814 = vector.load %arg7[%c15_415, %c2_416, %c0_417] : memref<18x18x128xf32, #tpu.memory_space<vmem>>, vector<1x16x128xf32>
    %815 = vector.shape_cast %814 : vector<1x16x128xf32> to vector<16x128xf32>
    %816 = vector.shape_cast %23 : vector<128xf32> to vector<1x128xf32>
    %817 = vector.broadcast %816 : vector<1x128xf32> to vector<16x128xf32>
    %818 = arith.mulf %815, %817 : vector<16x128xf32>
    %819 = arith.addf %813, %818 : vector<16x128xf32>
    %820 = arith.truncf %819 : vector<16x128xf32> to vector<16x128xbf16>
    %c208 = arith.constant 208 : index
    %c0_418 = arith.constant 0 : index
    %821 = vector.load %arg8[%c208, %c0_418] : memref<256x128xbf16, #tpu.memory_space<vmem>>, vector<16x128xbf16>
    tpu.vector_store %arg8[%c208, %c0_418], %820 {strides = array<i32>} : memref<256x128xbf16, #tpu.memory_space<vmem>>, vector<16x128xbf16>,
    %cst_419 = arith.constant 0.000000e+00 : f32
    %822 = vector.broadcast %cst_419 : f32 to vector<16x128xf32>
    %c14_420 = arith.constant 14 : index
    %c0_421 = arith.constant 0 : index
    %c0_422 = arith.constant 0 : index
    %823 = vector.load %arg7[%c14_420, %c0_421, %c0_422] : memref<18x18x128xf32, #tpu.memory_space<vmem>>, vector<1x16x128xf32>
    %824 = vector.shape_cast %823 : vector<1x16x128xf32> to vector<16x128xf32>
    %825 = vector.shape_cast %7 : vector<128xf32> to vector<1x128xf32>
    %826 = vector.broadcast %825 : vector<1x128xf32> to vector<16x128xf32>
    %827 = arith.mulf %824, %826 : vector<16x128xf32>
    %828 = arith.addf %822, %827 : vector<16x128xf32>
    %c14_423 = arith.constant 14 : index
    %c1_424 = arith.constant 1 : index
    %c0_425 = arith.constant 0 : index
    %829 = vector.load %arg7[%c14_423, %c1_424, %c0_425] : memref<18x18x128xf32, #tpu.memory_space<vmem>>, vector<1x16x128xf32>
    %830 = vector.shape_cast %829 : vector<1x16x128xf32> to vector<16x128xf32>
    %831 = vector.shape_cast %9 : vector<128xf32> to vector<1x128xf32>
    %832 = vector.broadcast %831 : vector<1x128xf32> to vector<16x128xf32>
    %833 = arith.mulf %830, %832 : vector<16x128xf32>
    %834 = arith.addf %828, %833 : vector<16x128xf32>
    %c14_426 = arith.constant 14 : index
    %c2_427 = arith.constant 2 : index
    %c0_428 = arith.constant 0 : index
    %835 = vector.load %arg7[%c14_426, %c2_427, %c0_428] : memref<18x18x128xf32, #tpu.memory_space<vmem>>, vector<1x16x128xf32>
    %836 = vector.shape_cast %835 : vector<1x16x128xf32> to vector<16x128xf32>
    %837 = vector.shape_cast %11 : vector<128xf32> to vector<1x128xf32>
    %838 = vector.broadcast %837 : vector<1x128xf32> to vector<16x128xf32>
    %839 = arith.mulf %836, %838 : vector<16x128xf32>
    %840 = arith.addf %834, %839 : vector<16x128xf32>
    %c15_429 = arith.constant 15 : index
    %c0_430 = arith.constant 0 : index
    %c0_431 = arith.constant 0 : index
    %841 = vector.load %arg7[%c15_429, %c0_430, %c0_431] : memref<18x18x128xf32, #tpu.memory_space<vmem>>, vector<1x16x128xf32>
    %842 = vector.shape_cast %841 : vector<1x16x128xf32> to vector<16x128xf32>
    %843 = vector.shape_cast %13 : vector<128xf32> to vector<1x128xf32>
    %844 = vector.broadcast %843 : vector<1x128xf32> to vector<16x128xf32>
    %845 = arith.mulf %842, %844 : vector<16x128xf32>
    %846 = arith.addf %840, %845 : vector<16x128xf32>
    %c15_432 = arith.constant 15 : index
    %c1_433 = arith.constant 1 : index
    %c0_434 = arith.constant 0 : index
    %847 = vector.load %arg7[%c15_432, %c1_433, %c0_434] : memref<18x18x128xf32, #tpu.memory_space<vmem>>, vector<1x16x128xf32>
    %848 = vector.shape_cast %847 : vector<1x16x128xf32> to vector<16x128xf32>
    %849 = vector.shape_cast %15 : vector<128xf32> to vector<1x128xf32>
    %850 = vector.broadcast %849 : vector<1x128xf32> to vector<16x128xf32>
    %851 = arith.mulf %848, %850 : vector<16x128xf32>
    %852 = arith.addf %846, %851 : vector<16x128xf32>
    %c15_435 = arith.constant 15 : index
    %c2_436 = arith.constant 2 : index
    %c0_437 = arith.constant 0 : index
    %853 = vector.load %arg7[%c15_435, %c2_436, %c0_437] : memref<18x18x128xf32, #tpu.memory_space<vmem>>, vector<1x16x128xf32>
    %854 = vector.shape_cast %853 : vector<1x16x128xf32> to vector<16x128xf32>
    %855 = vector.shape_cast %17 : vector<128xf32> to vector<1x128xf32>
    %856 = vector.broadcast %855 : vector<1x128xf32> to vector<16x128xf32>
    %857 = arith.mulf %854, %856 : vector<16x128xf32>
    %858 = arith.addf %852, %857 : vector<16x128xf32>
    %c16_438 = arith.constant 16 : index
    %c0_439 = arith.constant 0 : index
    %c0_440 = arith.constant 0 : index
    %859 = vector.load %arg7[%c16_438, %c0_439, %c0_440] : memref<18x18x128xf32, #tpu.memory_space<vmem>>, vector<1x16x128xf32>
    %860 = vector.shape_cast %859 : vector<1x16x128xf32> to vector<16x128xf32>
    %861 = vector.shape_cast %19 : vector<128xf32> to vector<1x128xf32>
    %862 = vector.broadcast %861 : vector<1x128xf32> to vector<16x128xf32>
    %863 = arith.mulf %860, %862 : vector<16x128xf32>
    %864 = arith.addf %858, %863 : vector<16x128xf32>
    %c16_441 = arith.constant 16 : index
    %c1_442 = arith.constant 1 : index
    %c0_443 = arith.constant 0 : index
    %865 = vector.load %arg7[%c16_441, %c1_442, %c0_443] : memref<18x18x128xf32, #tpu.memory_space<vmem>>, vector<1x16x128xf32>
    %866 = vector.shape_cast %865 : vector<1x16x128xf32> to vector<16x128xf32>
    %867 = vector.shape_cast %21 : vector<128xf32> to vector<1x128xf32>
    %868 = vector.broadcast %867 : vector<1x128xf32> to vector<16x128xf32>
    %869 = arith.mulf %866, %868 : vector<16x128xf32>
    %870 = arith.addf %864, %869 : vector<16x128xf32>
    %c16_444 = arith.constant 16 : index
    %c2_445 = arith.constant 2 : index
    %c0_446 = arith.constant 0 : index
    %871 = vector.load %arg7[%c16_444, %c2_445, %c0_446] : memref<18x18x128xf32, #tpu.memory_space<vmem>>, vector<1x16x128xf32>
    %872 = vector.shape_cast %871 : vector<1x16x128xf32> to vector<16x128xf32>
    %873 = vector.shape_cast %23 : vector<128xf32> to vector<1x128xf32>
    %874 = vector.broadcast %873 : vector<1x128xf32> to vector<16x128xf32>
    %875 = arith.mulf %872, %874 : vector<16x128xf32>
    %876 = arith.addf %870, %875 : vector<16x128xf32>
    %877 = arith.truncf %876 : vector<16x128xf32> to vector<16x128xbf16>
    %c224 = arith.constant 224 : index
    %c0_447 = arith.constant 0 : index
    %878 = vector.load %arg8[%c224, %c0_447] : memref<256x128xbf16, #tpu.memory_space<vmem>>, vector<16x128xbf16>
    tpu.vector_store %arg8[%c224, %c0_447], %877 {strides = array<i32>} : memref<256x128xbf16, #tpu.memory_space<vmem>>, vector<16x128xbf16>,
    %cst_448 = arith.constant 0.000000e+00 : f32
    %879 = vector.broadcast %cst_448 : f32 to vector<16x128xf32>
    %c15_449 = arith.constant 15 : index
    %c0_450 = arith.constant 0 : index
    %c0_451 = arith.constant 0 : index
    %880 = vector.load %arg7[%c15_449, %c0_450, %c0_451] : memref<18x18x128xf32, #tpu.memory_space<vmem>>, vector<1x16x128xf32>
    %881 = vector.shape_cast %880 : vector<1x16x128xf32> to vector<16x128xf32>
    %882 = vector.shape_cast %7 : vector<128xf32> to vector<1x128xf32>
    %883 = vector.broadcast %882 : vector<1x128xf32> to vector<16x128xf32>
    %884 = arith.mulf %881, %883 : vector<16x128xf32>
    %885 = arith.addf %879, %884 : vector<16x128xf32>
    %c15_452 = arith.constant 15 : index
    %c1_453 = arith.constant 1 : index
    %c0_454 = arith.constant 0 : index
    %886 = vector.load %arg7[%c15_452, %c1_453, %c0_454] : memref<18x18x128xf32, #tpu.memory_space<vmem>>, vector<1x16x128xf32>
    %887 = vector.shape_cast %886 : vector<1x16x128xf32> to vector<16x128xf32>
    %888 = vector.shape_cast %9 : vector<128xf32> to vector<1x128xf32>
    %889 = vector.broadcast %888 : vector<1x128xf32> to vector<16x128xf32>
    %890 = arith.mulf %887, %889 : vector<16x128xf32>
    %891 = arith.addf %885, %890 : vector<16x128xf32>
    %c15_455 = arith.constant 15 : index
    %c2_456 = arith.constant 2 : index
    %c0_457 = arith.constant 0 : index
    %892 = vector.load %arg7[%c15_455, %c2_456, %c0_457] : memref<18x18x128xf32, #tpu.memory_space<vmem>>, vector<1x16x128xf32>
    %893 = vector.shape_cast %892 : vector<1x16x128xf32> to vector<16x128xf32>
    %894 = vector.shape_cast %11 : vector<128xf32> to vector<1x128xf32>
    %895 = vector.broadcast %894 : vector<1x128xf32> to vector<16x128xf32>
    %896 = arith.mulf %893, %895 : vector<16x128xf32>
    %897 = arith.addf %891, %896 : vector<16x128xf32>
    %c16_458 = arith.constant 16 : index
    %c0_459 = arith.constant 0 : index
    %c0_460 = arith.constant 0 : index
    %898 = vector.load %arg7[%c16_458, %c0_459, %c0_460] : memref<18x18x128xf32, #tpu.memory_space<vmem>>, vector<1x16x128xf32>
    %899 = vector.shape_cast %898 : vector<1x16x128xf32> to vector<16x128xf32>
    %900 = vector.shape_cast %13 : vector<128xf32> to vector<1x128xf32>
    %901 = vector.broadcast %900 : vector<1x128xf32> to vector<16x128xf32>
    %902 = arith.mulf %899, %901 : vector<16x128xf32>
    %903 = arith.addf %897, %902 : vector<16x128xf32>
    %c16_461 = arith.constant 16 : index
    %c1_462 = arith.constant 1 : index
    %c0_463 = arith.constant 0 : index
    %904 = vector.load %arg7[%c16_461, %c1_462, %c0_463] : memref<18x18x128xf32, #tpu.memory_space<vmem>>, vector<1x16x128xf32>
    %905 = vector.shape_cast %904 : vector<1x16x128xf32> to vector<16x128xf32>
    %906 = vector.shape_cast %15 : vector<128xf32> to vector<1x128xf32>
    %907 = vector.broadcast %906 : vector<1x128xf32> to vector<16x128xf32>
    %908 = arith.mulf %905, %907 : vector<16x128xf32>
    %909 = arith.addf %903, %908 : vector<16x128xf32>
    %c16_464 = arith.constant 16 : index
    %c2_465 = arith.constant 2 : index
    %c0_466 = arith.constant 0 : index
    %910 = vector.load %arg7[%c16_464, %c2_465, %c0_466] : memref<18x18x128xf32, #tpu.memory_space<vmem>>, vector<1x16x128xf32>
    %911 = vector.shape_cast %910 : vector<1x16x128xf32> to vector<16x128xf32>
    %912 = vector.shape_cast %17 : vector<128xf32> to vector<1x128xf32>
    %913 = vector.broadcast %912 : vector<1x128xf32> to vector<16x128xf32>
    %914 = arith.mulf %911, %913 : vector<16x128xf32>
    %915 = arith.addf %909, %914 : vector<16x128xf32>
    %c17 = arith.constant 17 : index
    %c0_467 = arith.constant 0 : index
    %c0_468 = arith.constant 0 : index
    %916 = vector.load %arg7[%c17, %c0_467, %c0_468] : memref<18x18x128xf32, #tpu.memory_space<vmem>>, vector<1x16x128xf32>
    %917 = vector.shape_cast %916 : vector<1x16x128xf32> to vector<16x128xf32>
    %918 = vector.shape_cast %19 : vector<128xf32> to vector<1x128xf32>
    %919 = vector.broadcast %918 : vector<1x128xf32> to vector<16x128xf32>
    %920 = arith.mulf %917, %919 : vector<16x128xf32>
    %921 = arith.addf %915, %920 : vector<16x128xf32>
    %c17_469 = arith.constant 17 : index
    %c1_470 = arith.constant 1 : index
    %c0_471 = arith.constant 0 : index
    %922 = vector.load %arg7[%c17_469, %c1_470, %c0_471] : memref<18x18x128xf32, #tpu.memory_space<vmem>>, vector<1x16x128xf32>
    %923 = vector.shape_cast %922 : vector<1x16x128xf32> to vector<16x128xf32>
    %924 = vector.shape_cast %21 : vector<128xf32> to vector<1x128xf32>
    %925 = vector.broadcast %924 : vector<1x128xf32> to vector<16x128xf32>
    %926 = arith.mulf %923, %925 : vector<16x128xf32>
    %927 = arith.addf %921, %926 : vector<16x128xf32>
    %c17_472 = arith.constant 17 : index
    %c2_473 = arith.constant 2 : index
    %c0_474 = arith.constant 0 : index
    %928 = vector.load %arg7[%c17_472, %c2_473, %c0_474] : memref<18x18x128xf32, #tpu.memory_space<vmem>>, vector<1x16x128xf32>
    %929 = vector.shape_cast %928 : vector<1x16x128xf32> to vector<16x128xf32>
    %930 = vector.shape_cast %23 : vector<128xf32> to vector<1x128xf32>
    %931 = vector.broadcast %930 : vector<1x128xf32> to vector<16x128xf32>
    %932 = arith.mulf %929, %931 : vector<16x128xf32>
    %933 = arith.addf %927, %932 : vector<16x128xf32>
    %934 = arith.truncf %933 : vector<16x128xf32> to vector<16x128xbf16>
    %c240 = arith.constant 240 : index
    %c0_475 = arith.constant 0 : index
    %935 = vector.load %arg8[%c240, %c0_475] : memref<256x128xbf16, #tpu.memory_space<vmem>>, vector<16x128xbf16>
    tpu.vector_store %arg8[%c240, %c0_475], %934 {strides = array<i32>} : memref<256x128xbf16, #tpu.memory_space<vmem>>, vector<16x128xbf16>,
    %c0_476 = arith.constant 0 : index
    %c0_477 = arith.constant 0 : index
    %936 = vector.load %arg8[%c0_476, %c0_477] : memref<256x128xbf16, #tpu.memory_space<vmem>>, vector<256x32xbf16>
    %937 = arith.extf %936 : vector<256x32xbf16> to vector<256x32xf32>
    %c0_478 = arith.constant 0 : index
    %c32_479 = arith.constant 32 : index
    %938 = vector.load %arg8[%c0_478, %c32_479] : memref<256x128xbf16, #tpu.memory_space<vmem>>, vector<256x32xbf16>
    %939 = arith.extf %938 : vector<256x32xbf16> to vector<256x32xf32>
    %940 = arith.mulf %937, %937 : vector<256x32xf32>
    %cst_480 = arith.constant dense<0.000000e+00> : vector<32xf32>
    %941 = vector.multi_reduction <add>, %940, %cst_480 [0] : vector<256x32xf32> to vector<32xf32>
    %942 = vector.shape_cast %941 : vector<32xf32> to vector<1x32xf32>
    %cst_481 = arith.constant 1.000000e-24 : f32
    %943 = vector.broadcast %cst_481 : f32 to vector<1x32xf32>
    %944 = arith.maximumf %942, %943 : vector<1x32xf32>
    %945 = math.rsqrt %944 : vector<1x32xf32>
    %946 = vector.broadcast %945 : vector<1x32xf32> to vector<256x32xf32>
    %947 = arith.mulf %937, %946 : vector<256x32xf32>
    %948 = arith.truncf %947 : vector<256x32xf32> to vector<256x32xbf16>
    %949 = arith.mulf %939, %939 : vector<256x32xf32>
    %cst_482 = arith.constant dense<0.000000e+00> : vector<32xf32>
    %950 = vector.multi_reduction <add>, %949, %cst_482 [0] : vector<256x32xf32> to vector<32xf32>
    %951 = vector.shape_cast %950 : vector<32xf32> to vector<1x32xf32>
    %cst_483 = arith.constant 1.000000e-24 : f32
    %952 = vector.broadcast %cst_483 : f32 to vector<1x32xf32>
    %953 = arith.maximumf %951, %952 : vector<1x32xf32>
    %954 = math.rsqrt %953 : vector<1x32xf32>
    %955 = vector.broadcast %954 : vector<1x32xf32> to vector<256x32xf32>
    %956 = arith.mulf %939, %955 : vector<256x32xf32>
    %957 = arith.truncf %956 : vector<256x32xf32> to vector<256x32xbf16>
    %cst_484 = arith.constant dense<0.000000e+00> : vector<32x32xf32>
    %958 = tpu.matmul %948, %957, %cst_484 {dimension_numbers = #tpu.dot_dimension_numbers<[0], [0], [1], [1], [0, 1, 1, 1], [], []>} : vector<256x32xbf16>, vector<256x32xbf16>, vector<32x32xf32> -> vector<32x32xf32>
    %c0_485 = arith.constant 0 : index
    %c0_486 = arith.constant 0 : index
    %959 = vector.load %arg2[%c0_485, %c0_486] : memref<32x1xf32, #tpu.memory_space<vmem>>, vector<32x1xf32>
    %960 = vector.broadcast %959 : vector<32x1xf32> to vector<32x32xf32>
    %961 = arith.mulf %958, %960 : vector<32x32xf32>
    %c0_487 = arith.constant 0 : index
    %c0_488 = arith.constant 0 : index
    %962 = vector.load %arg3[%c0_487, %c0_488] : memref<32x32xf32, #tpu.memory_space<vmem>>, vector<32x32xf32>
    %963 = arith.addf %961, %962 : vector<32x32xf32>
    %964 = vector.extract_strided_slice %963 {offsets = [0, 0], sizes = [8, 8], strides = [1, 1]} : vector<32x32xf32> to vector<8x8xf32>
    %965 = vector.extract_strided_slice %963 {offsets = [8, 8], sizes = [8, 8], strides = [1, 1]} : vector<32x32xf32> to vector<8x8xf32>
    %966 = vector.extract_strided_slice %963 {offsets = [16, 16], sizes = [8, 8], strides = [1, 1]} : vector<32x32xf32> to vector<8x8xf32>
    %967 = vector.extract_strided_slice %963 {offsets = [24, 24], sizes = [8, 8], strides = [1, 1]} : vector<32x32xf32> to vector<8x8xf32>
    %968 = tpu.concatenate %964, %965, %966, %967 in 0 : vector<8x8xf32>, vector<8x8xf32>, vector<8x8xf32>, vector<8x8xf32> -> vector<32x8xf32>
    %cst_489 = arith.constant 0.000000e+00 : f32
    %969 = vector.broadcast %cst_489 : f32 to vector<32x8xf32>
    %970 = vector.extract_strided_slice %968 {offsets = [0, 0], sizes = [32, 1], strides = [1, 1]} : vector<32x8xf32> to vector<32x1xf32>
    %971 = vector.broadcast %970 : vector<32x1xf32> to vector<32x8xf32>
    %972 = arith.cmpf ogt, %971, %968 : vector<32x8xf32>
    %973 = arith.extui %972 : vector<32x8xi1> to vector<32x8xi32>
    %974 = arith.sitofp %973 : vector<32x8xi32> to vector<32x8xf32>
    %975 = arith.addf %969, %974 : vector<32x8xf32>
    %976 = vector.extract_strided_slice %968 {offsets = [0, 1], sizes = [32, 1], strides = [1, 1]} : vector<32x8xf32> to vector<32x1xf32>
    %977 = vector.broadcast %976 : vector<32x1xf32> to vector<32x8xf32>
    %978 = arith.cmpf ogt, %977, %968 : vector<32x8xf32>
    %979 = arith.extui %978 : vector<32x8xi1> to vector<32x8xi32>
    %980 = arith.sitofp %979 : vector<32x8xi32> to vector<32x8xf32>
    %981 = arith.addf %975, %980 : vector<32x8xf32>
    %982 = vector.extract_strided_slice %968 {offsets = [0, 2], sizes = [32, 1], strides = [1, 1]} : vector<32x8xf32> to vector<32x1xf32>
    %983 = vector.broadcast %982 : vector<32x1xf32> to vector<32x8xf32>
    %984 = arith.cmpf ogt, %983, %968 : vector<32x8xf32>
    %985 = arith.extui %984 : vector<32x8xi1> to vector<32x8xi32>
    %986 = arith.sitofp %985 : vector<32x8xi32> to vector<32x8xf32>
    %987 = arith.addf %981, %986 : vector<32x8xf32>
    %988 = vector.extract_strided_slice %968 {offsets = [0, 3], sizes = [32, 1], strides = [1, 1]} : vector<32x8xf32> to vector<32x1xf32>
    %989 = vector.broadcast %988 : vector<32x1xf32> to vector<32x8xf32>
    %990 = arith.cmpf ogt, %989, %968 : vector<32x8xf32>
    %991 = arith.extui %990 : vector<32x8xi1> to vector<32x8xi32>
    %992 = arith.sitofp %991 : vector<32x8xi32> to vector<32x8xf32>
    %993 = arith.addf %987, %992 : vector<32x8xf32>
    %994 = vector.extract_strided_slice %968 {offsets = [0, 4], sizes = [32, 1], strides = [1, 1]} : vector<32x8xf32> to vector<32x1xf32>
    %995 = vector.broadcast %994 : vector<32x1xf32> to vector<32x8xf32>
    %996 = arith.cmpf ogt, %995, %968 : vector<32x8xf32>
    %997 = arith.extui %996 : vector<32x8xi1> to vector<32x8xi32>
    %998 = arith.sitofp %997 : vector<32x8xi32> to vector<32x8xf32>
    %999 = arith.addf %993, %998 : vector<32x8xf32>
    %1000 = vector.extract_strided_slice %968 {offsets = [0, 5], sizes = [32, 1], strides = [1, 1]} : vector<32x8xf32> to vector<32x1xf32>
    %1001 = vector.broadcast %1000 : vector<32x1xf32> to vector<32x8xf32>
    %1002 = arith.cmpf ogt, %1001, %968 : vector<32x8xf32>
    %1003 = arith.extui %1002 : vector<32x8xi1> to vector<32x8xi32>
    %1004 = arith.sitofp %1003 : vector<32x8xi32> to vector<32x8xf32>
    %1005 = arith.addf %999, %1004 : vector<32x8xf32>
    %1006 = vector.extract_strided_slice %968 {offsets = [0, 6], sizes = [32, 1], strides = [1, 1]} : vector<32x8xf32> to vector<32x1xf32>
    %1007 = vector.broadcast %1006 : vector<32x1xf32> to vector<32x8xf32>
    %1008 = arith.cmpf ogt, %1007, %968 : vector<32x8xf32>
    %1009 = arith.extui %1008 : vector<32x8xi1> to vector<32x8xi32>
    %1010 = arith.sitofp %1009 : vector<32x8xi32> to vector<32x8xf32>
    %1011 = arith.addf %1005, %1010 : vector<32x8xf32>
    %1012 = vector.extract_strided_slice %968 {offsets = [0, 7], sizes = [32, 1], strides = [1, 1]} : vector<32x8xf32> to vector<32x1xf32>
    %1013 = vector.broadcast %1012 : vector<32x1xf32> to vector<32x8xf32>
    %1014 = arith.cmpf ogt, %1013, %968 : vector<32x8xf32>
    %1015 = arith.extui %1014 : vector<32x8xi1> to vector<32x8xi32>
    %1016 = arith.sitofp %1015 : vector<32x8xi32> to vector<32x8xf32>
    %1017 = arith.addf %1011, %1016 : vector<32x8xf32>
    %cst_490 = arith.constant dense<0xFF800000> : vector<32xf32>
    %1018 = vector.multi_reduction <maximumf>, %963, %cst_490 [1] : vector<32x32xf32> to vector<32xf32>
    %1019 = vector.shape_cast %1018 : vector<32xf32> to vector<32x1xf32>
    %1020 = vector.broadcast %1019 : vector<32x1xf32> to vector<32x32xf32>
    %1021 = arith.subf %963, %1020 : vector<32x32xf32>
    %1022 = math.exp %1021 : vector<32x32xf32>
    %cst_491 = arith.constant 0.000000e+00 : f32
    %1023 = vector.broadcast %cst_491 : f32 to vector<32x32xf32>
    %cst_492 = arith.constant 4.000000e+00 : f32
    %1024 = vector.broadcast %cst_492 : f32 to vector<32x8xf32>
    %1025 = arith.cmpf olt, %1017, %1024 : vector<32x8xf32>
    %cst_493 = arith.constant 0x7F800000 : f32
    %1026 = vector.broadcast %cst_493 : f32 to vector<32x8xf32>
    %1027 = arith.select %1025, %968, %1026 : vector<32x8xi1>, vector<32x8xf32>
    %cst_494 = arith.constant dense<0x7F800000> : vector<32xf32>
    %1028 = vector.multi_reduction <minimumf>, %1027, %cst_494 [1] : vector<32x8xf32> to vector<32xf32>
    %1029 = vector.shape_cast %1028 : vector<32xf32> to vector<32x1xf32>
    %1030 = vector.broadcast %1029 : vector<32x1xf32> to vector<32x32xf32>
    %1031 = arith.cmpf oge, %963, %1030 : vector<32x32xf32>
    %1032 = arith.extui %1031 : vector<32x32xi1> to vector<32x32xi32>
    %1033 = arith.sitofp %1032 : vector<32x32xi32> to vector<32x32xf32>
    %1034 = arith.mulf %1033, %1022 : vector<32x32xf32>
    %cst_495 = arith.constant dense<0.000000e+00> : vector<32xf32>
    %1035 = vector.multi_reduction <add>, %1034, %cst_495 [1] : vector<32x32xf32> to vector<32xf32>
    %1036 = vector.shape_cast %1035 : vector<32xf32> to vector<32x1xf32>
    %c0_496 = arith.constant 0 : index
    %1037 = memref.load %arg1[%c0_496] : memref<4xf32, #tpu.memory_space<smem>>
    %1038 = tpu.reciprocal %1036 : vector<32x1xf32> -> vector<32x1xf32>
    %1039 = vector.broadcast %1038 : vector<32x1xf32> to vector<32x32xf32>
    %1040 = arith.mulf %1033, %1039 : vector<32x32xf32>
    %1041 = vector.broadcast %1037 : f32 to vector<32x32xf32>
    %1042 = arith.mulf %1041, %1040 : vector<32x32xf32>
    %1043 = arith.addf %1023, %1042 : vector<32x32xf32>
    %cst_497 = arith.constant 5.000000e+00 : f32
    %1044 = vector.broadcast %cst_497 : f32 to vector<32x8xf32>
    %1045 = arith.cmpf olt, %1017, %1044 : vector<32x8xf32>
    %cst_498 = arith.constant 0x7F800000 : f32
    %1046 = vector.broadcast %cst_498 : f32 to vector<32x8xf32>
    %1047 = arith.select %1045, %968, %1046 : vector<32x8xi1>, vector<32x8xf32>
    %cst_499 = arith.constant dense<0x7F800000> : vector<32xf32>
    %1048 = vector.multi_reduction <minimumf>, %1047, %cst_499 [1] : vector<32x8xf32> to vector<32xf32>
    %1049 = vector.shape_cast %1048 : vector<32xf32> to vector<32x1xf32>
    %1050 = vector.broadcast %1049 : vector<32x1xf32> to vector<32x32xf32>
    %1051 = arith.cmpf oge, %963, %1050 : vector<32x32xf32>
    %1052 = arith.extui %1051 : vector<32x32xi1> to vector<32x32xi32>
    %1053 = arith.sitofp %1052 : vector<32x32xi32> to vector<32x32xf32>
    %1054 = arith.mulf %1053, %1022 : vector<32x32xf32>
    %cst_500 = arith.constant dense<0.000000e+00> : vector<32xf32>
    %1055 = vector.multi_reduction <add>, %1054, %cst_500 [1] : vector<32x32xf32> to vector<32xf32>
    %1056 = vector.shape_cast %1055 : vector<32xf32> to vector<32x1xf32>
    %c1_501 = arith.constant 1 : index
    %1057 = memref.load %arg1[%c1_501] : memref<4xf32, #tpu.memory_space<smem>>
    %1058 = tpu.reciprocal %1056 : vector<32x1xf32> -> vector<32x1xf32>
    %1059 = vector.broadcast %1058 : vector<32x1xf32> to vector<32x32xf32>
    %1060 = arith.mulf %1053, %1059 : vector<32x32xf32>
    %1061 = vector.broadcast %1057 : f32 to vector<32x32xf32>
    %1062 = arith.mulf %1061, %1060 : vector<32x32xf32>
    %1063 = arith.addf %1043, %1062 : vector<32x32xf32>
    %cst_502 = arith.constant 6.000000e+00 : f32
    %1064 = vector.broadcast %cst_502 : f32 to vector<32x8xf32>
    %1065 = arith.cmpf olt, %1017, %1064 : vector<32x8xf32>
    %cst_503 = arith.constant 0x7F800000 : f32
    %1066 = vector.broadcast %cst_503 : f32 to vector<32x8xf32>
    %1067 = arith.select %1065, %968, %1066 : vector<32x8xi1>, vector<32x8xf32>
    %cst_504 = arith.constant dense<0x7F800000> : vector<32xf32>
    %1068 = vector.multi_reduction <minimumf>, %1067, %cst_504 [1] : vector<32x8xf32> to vector<32xf32>
    %1069 = vector.shape_cast %1068 : vector<32xf32> to vector<32x1xf32>
    %1070 = vector.broadcast %1069 : vector<32x1xf32> to vector<32x32xf32>
    %1071 = arith.cmpf oge, %963, %1070 : vector<32x32xf32>
    %1072 = arith.extui %1071 : vector<32x32xi1> to vector<32x32xi32>
    %1073 = arith.sitofp %1072 : vector<32x32xi32> to vector<32x32xf32>
    %1074 = arith.mulf %1073, %1022 : vector<32x32xf32>
    %cst_505 = arith.constant dense<0.000000e+00> : vector<32xf32>
    %1075 = vector.multi_reduction <add>, %1074, %cst_505 [1] : vector<32x32xf32> to vector<32xf32>
    %1076 = vector.shape_cast %1075 : vector<32xf32> to vector<32x1xf32>
    %c2_506 = arith.constant 2 : index
    %1077 = memref.load %arg1[%c2_506] : memref<4xf32, #tpu.memory_space<smem>>
    %1078 = tpu.reciprocal %1076 : vector<32x1xf32> -> vector<32x1xf32>
    %1079 = vector.broadcast %1078 : vector<32x1xf32> to vector<32x32xf32>
    %1080 = arith.mulf %1073, %1079 : vector<32x32xf32>
    %1081 = vector.broadcast %1077 : f32 to vector<32x32xf32>
    %1082 = arith.mulf %1081, %1080 : vector<32x32xf32>
    %1083 = arith.addf %1063, %1082 : vector<32x32xf32>
    %cst_507 = arith.constant 6.000000e+00 : f32
    %1084 = vector.broadcast %cst_507 : f32 to vector<32x8xf32>
    %1085 = arith.cmpf olt, %1017, %1084 : vector<32x8xf32>
    %cst_508 = arith.constant 0x7F800000 : f32
    %1086 = vector.broadcast %cst_508 : f32 to vector<32x8xf32>
    %1087 = arith.select %1085, %968, %1086 : vector<32x8xi1>, vector<32x8xf32>
    %cst_509 = arith.constant dense<0x7F800000> : vector<32xf32>
    %1088 = vector.multi_reduction <minimumf>, %1087, %cst_509 [1] : vector<32x8xf32> to vector<32xf32>
    %1089 = vector.shape_cast %1088 : vector<32xf32> to vector<32x1xf32>
    %1090 = vector.broadcast %1089 : vector<32x1xf32> to vector<32x32xf32>
    %1091 = arith.cmpf oge, %963, %1090 : vector<32x32xf32>
    %1092 = arith.extui %1091 : vector<32x32xi1> to vector<32x32xi32>
    %1093 = arith.sitofp %1092 : vector<32x32xi32> to vector<32x32xf32>
    %1094 = arith.mulf %1093, %1022 : vector<32x32xf32>
    %cst_510 = arith.constant dense<0.000000e+00> : vector<32xf32>
    %1095 = vector.multi_reduction <add>, %1094, %cst_510 [1] : vector<32x32xf32> to vector<32xf32>
    %1096 = vector.shape_cast %1095 : vector<32xf32> to vector<32x1xf32>
    %c3_511 = arith.constant 3 : index
    %1097 = memref.load %arg1[%c3_511] : memref<4xf32, #tpu.memory_space<smem>>
    %1098 = tpu.reciprocal %1096 : vector<32x1xf32> -> vector<32x1xf32>
    %1099 = vector.broadcast %1098 : vector<32x1xf32> to vector<32x32xf32>
    %1100 = arith.mulf %1093, %1099 : vector<32x32xf32>
    %1101 = vector.broadcast %1097 : f32 to vector<32x32xf32>
    %1102 = arith.mulf %1101, %1100 : vector<32x32xf32>
    %1103 = arith.addf %1083, %1102 : vector<32x32xf32>
    %1104 = arith.mulf %1103, %1022 : vector<32x32xf32>
    %cst_512 = arith.constant 0.000000e+00 : f32
    %1105 = vector.broadcast %cst_512 : f32 to vector<96x32xf32>
    %1106 = tpu.concatenate %1104, %1105 in 0 : vector<32x32xf32>, vector<96x32xf32> -> vector<128x32xf32>
    %c0_513 = arith.constant 0 : index
    %c64_514 = arith.constant 64 : index
    %1107 = vector.load %arg8[%c0_513, %c64_514] : memref<256x128xbf16, #tpu.memory_space<vmem>>, vector<256x32xbf16>
    %1108 = arith.truncf %1106 : vector<128x32xf32> to vector<128x32xbf16>
    %cst_515 = arith.constant dense<0.000000e+00> : vector<256x128xf32>
    %1109 = tpu.matmul %1107, %1108, %cst_515 {dimension_numbers = #tpu.dot_dimension_numbers<[1], [1], [0], [0], [0, 0, 1, 0], [], []>} : vector<256x32xbf16>, vector<128x32xbf16>, vector<256x128xf32> -> vector<256x128xf32>
    %1110 = arith.truncf %1109 : vector<256x128xf32> to vector<256x128xbf16>
    %c0_516 = arith.constant 0 : index
    %c0_517 = arith.constant 0 : index
    %c0_518 = arith.constant 0 : index
    %1111 = vector.load %arg6[%c0_516, %c0_517, %c0_518] : memref<1x256x128xbf16, #tpu.memory_space<vmem>>, vector<1x256x128xbf16>
    %1112 = vector.shape_cast %1111 : vector<1x256x128xbf16> to vector<256x128xbf16>
    %1113 = vector.shape_cast %1110 : vector<256x128xbf16> to vector<1x256x128xbf16>
    tpu.vector_store %arg6[%c0_516, %c0_517, %c0_518], %1113 {strides = array<i32>} : memref<1x256x128xbf16, #tpu.memory_space<vmem>>, vector<1x256x128xbf16>,
    return
  }
  func.func @transform_0(%arg0: i32) -> i32 {
    %c0_i32 = arith.constant 0 : i32
    %c0_i32_0 = arith.constant 0 : i32
    return %c0_i32 : i32
  }
  func.func @transform_1(%arg0: i32) -> (i32, i32) {
    %c0_i32 = arith.constant 0 : i32
    %c0_i32_0 = arith.constant 0 : i32
    %c0_i32_1 = arith.constant 0 : i32
    return %c0_i32, %c0_i32_0 : i32, i32
  }
  func.func @transform_2(%arg0: i32) -> (i32, i32) {
    %c0_i32 = arith.constant 0 : i32
    %c0_i32_0 = arith.constant 0 : i32
    %c0_i32_1 = arith.constant 0 : i32
    return %c0_i32, %c0_i32_0 : i32, i32
  }
  func.func @transform_3(%arg0: i32) -> (i32, i32, i32, i32) {
    %c0_i32 = arith.constant 0 : i32
    %c0_i32_0 = arith.constant 0 : i32
    %c0_i32_1 = arith.constant 0 : i32
    %c0_i32_2 = arith.constant 0 : i32
    return %arg0, %c0_i32, %c0_i32_0, %c0_i32_1 : i32, i32, i32, i32
  }
  func.func @transform_4(%arg0: i32) -> (i32, i32) {
    %c0_i32 = arith.constant 0 : i32
    %c0_i32_0 = arith.constant 0 : i32
    %c0_i32_1 = arith.constant 0 : i32
    return %c0_i32, %c0_i32_0 : i32, i32
  }
  func.func @transform_5(%arg0: i32) -> (i32, i32, i32) {
    %c0_i32 = arith.constant 0 : i32
    %c0_i32_0 = arith.constant 0 : i32
    %c0_i32_1 = arith.constant 0 : i32
    return %arg0, %c0_i32, %c0_i32_0 : i32, i32, i32
  }
}

</mosaic_0001>

<llo_original>
// kernel: attention_forward.5
$region0: #{attention_forward.5}
  #allocation0 [shape = 'u32[]', space=smem, size = 0x4, offset = 0x4, fixed_abs, tag = 'smem constant byte address 0x4 - core index']
  #allocation1 [shape = 'u32[144,128]{1,0:T(1,128)}', space=vmem, size = 0x12000, scoped, tag = 'internal scratch']
  %s0 = inlined_call_operand.vmem [shape: bf16[2,256,128], index: 0, kind: input, shape index: {}]
  %s1 = inlined_call_operand.vmem [shape: bf16[32,128], index: 1, kind: input, shape index: {}]
  %s2 = inlined_call_operand.vmem [shape: f32[2,32,256], index: 2, kind: output, shape index: {}]
  %s3 = sld [smem:[#allocation0]]
  $region75: #{attention_forward.5} parent=0
    _
  %s5 = ssub.s32 1, %s3
  %s6 = scalar_select 0, %s5, %s3
  $region1: #{attention_forward.5} parent=0
    #allocation2 [shape = 'u8[32768]{0}', space=vmem, size = 0x8000, scoped, tag = 'output window, operand 0']
    loop: start=0, step=1, limit=6
    $region2: #{attention_forward.5} parent=1 // loop_pre_header
      _
    $region3: #{attention_forward.5} parent=1 // loop_header
      %s8 = sphi 0, %s12
      %p9 = scmp.ge.s32.totalorder %s8, 6
      %s15 = sphi 0, %s27
      %s16 = sphi 0, %s23
      %s17 = sphi 0, %s15
      %s18 = sphi 0, %s16
      %s19 = sphi 0, %s17
      %s20 = sphi 0, %s18
      %s32 = sphi 0, %s34
      %s35 = sphi 0, %s32
      %s36 = sphi 0, %s35
      %s52 = sphi 0, %s36
      %s56 = sphi 0, %s56
      %s58 = sphi 0, %s56
      %s59 = sphi 0, %s58
      %s73 = sphi 0, %s59
      %s81 = sphi 0, %s83
      %s84 = sphi 0, %s81
      %s85 = sphi 0, %s84
      %s101 = sphi 0, %s85
    $region4: #{attention_forward.5} parent=1 // loop_header_branch
      %11 = sbr.rel (%p9) target = $region8
    $region5: #{attention_forward.5} parent=1 // loop_body
      %s13 = ssub.s32 %s8, 1
      %s14 = ssub.s32 %s8, 2
      %s21 = sadd.s32 1, %s16
      %p22 = scmp.ge.s32.totalorder %s21, 2
      %s23 = scalar_select %p22, 0, %s21
      %s24 = sadd.s32 1, %s15
      %s25 = scalar_select %p22, %s24, %s15
      %p26 = scmp.ge.s32.totalorder %s25, 2
      %s27 = scalar_select %p26, 0, %s25
      %s28 = ssub.s32 %s15, %s27
      %s29 = ssub.s32 %s16, %s23
      %s30 = sor.u32 %s28, %s29
      %p31 = scmp.eq.s32.totalorder %s30, 0
      %s33 = sadd.s32 %s32, 1
      %s34 = scalar_select %p31, %s32, %s33
      %p37 = pneg %p31
      %p38 = scmp.eq.s32.totalorder %s8, 3
      %p39 = por %p37, %p38
      %p40 = scmp.ne.s32.totalorder %s32, %s35
      %p41 = scmp.eq.s32.totalorder %s8, 0
      %p42 = por %p40, %p41
      %p43 = scmp.ne.s32.totalorder %s32, %s35
      %p44 = scmp.eq.s32.totalorder %s13, 3
      %p45 = por %p43, %p44
      %p46 = scmp.ne.s32.totalorder %s35, %s36
      %p47 = scmp.eq.s32.totalorder %s13, 0
      %p48 = por %p46, %p47
      %p49 = scmp.ne.s32.totalorder %s35, %s36
      %p50 = scmp.eq.s32.totalorder %s14, 3
      %p51 = por %p49, %p50
      %p53 = scmp.ne.s32.totalorder %s36, %s52
      %p54 = scmp.eq.s32.totalorder %s14, 0
      %p55 = por %p53, %p54
      %s57 = sadd.s32 %s56, 1
      %p60 = scmp.eq.s32.totalorder %s8, 3
      %p61 = scmp.ne.s32.totalorder %s56, %s58
      %p62 = scmp.eq.s32.totalorder %s8, 0
      %p63 = por %p61, %p62
      %p64 = scmp.ne.s32.totalorder %s56, %s58
      %p65 = scmp.eq.s32.totalorder %s13, 3
      %p66 = por %p64, %p65
      %p67 = scmp.ne.s32.totalorder %s58, %s59
      %p68 = scmp.eq.s32.totalorder %s13, 0
      %p69 = por %p67, %p68
      %p70 = scmp.ne.s32.totalorder %s58, %s59
      %p71 = scmp.eq.s32.totalorder %s14, 3
      %p72 = por %p70, %p71
      %p74 = scmp.ne.s32.totalorder %s59, %s73
      %p75 = scmp.eq.s32.totalorder %s14, 0
      %p76 = por %p74, %p75
      %s77 = ssub.s32 %s15, %s27
      %s78 = ssub.s32 %s16, %s23
      %s79 = sor.u32 %s77, %s78
      %p80 = scmp.eq.s32.totalorder %s79, 0
      %s82 = sadd.s32 %s81, 1
      %s83 = scalar_select %p80, %s81, %s82
      %p86 = pneg %p80
      %p87 = scmp.eq.s32.totalorder %s8, 3
      %p88 = por %p86, %p87
      %p89 = scmp.ne.s32.totalorder %s81, %s84
      %p90 = scmp.eq.s32.totalorder %s8, 0
      %p91 = por %p89, %p90
      %p92 = scmp.ne.s32.totalorder %s81, %s84
      %p93 = scmp.eq.s32.totalorder %s13, 3
      %p94 = por %p92, %p93
      %p95 = scmp.ne.s32.totalorder %s84, %s85
      %p96 = scmp.eq.s32.totalorder %s13, 0
      %p97 = por %p95, %p96
      %p98 = scmp.ne.s32.totalorder %s84, %s85
      %p99 = scmp.eq.s32.totalorder %s14, 3
      %p100 = por %p98, %p99
      %p102 = scmp.ne.s32.totalorder %s85, %s101
      %p103 = scmp.eq.s32.totalorder %s14, 0
      %p104 = por %p102, %p103
      %p105 = scmp.le.s32.totalorder 1, %s8
      %p106 = scmp.lt.s32.totalorder %s8, 5
      %p107 = pnand %p105, %p106
      %p108 = pneg %p107
      // Predicated region
      $region9: #{attention_forward.5} parent=5 // pred_check
        _
      $region10: #{attention_forward.5} parent=5 // pred_check_branch
        %110 = sbr.rel (%p107) target = $region12
      $region11: #{attention_forward.5} parent=5 // pred_region
        %s111 = ssub.s32 %s8, 1
        // Predicated region
        $region13: #{attention_forward.5} parent=11 // pred_check
          %p112 = pneg %p69
        $region14: #{attention_forward.5} parent=11 // pred_check_branch
          %114 = sbr.rel (%p112) target = $region16
        $region15: #{attention_forward.5} parent=11 // pred_region
          _
        $region16: #{attention_forward.5} parent=11 // pred_fallthru
          _
      $region12: #{attention_forward.5} parent=5 // pred_fallthru
        _
      %p115 = scmp.lt.s32.totalorder %s8, 4
      // Predicated region
      $region17: #{attention_forward.5} parent=5 // pred_check
        %p116 = pneg %p115
      $region18: #{attention_forward.5} parent=5 // pred_check_branch
        %118 = sbr.rel (%p116) target = $region20
      $region19: #{attention_forward.5} parent=5 // pred_region
        // Predicated region
        $region21: #{attention_forward.5} parent=19 // pred_check
          %p119 = pneg %p42
        $region22: #{attention_forward.5} parent=19 // pred_check_branch
          %121 = sbr.rel (%p119) target = $region24
        $region23: #{attention_forward.5} parent=19 // pred_region
          %s122 = smul.u32 16, %s16
          %p123 = scmp.lt.s32.totalorder %s15, 1
          %s124 = scalar_select %p123, %s15, 1
          %p125 = scmp.lt.s32.totalorder %s122, 31
          %s126 = scalar_select %p125, %s122, 31
          %s127 = smul.addr %s124, 32
          %s128 = sadd.s32 %s126, %s127
          %s129 = smul.addr %s128, 4
          %s130 = scalar_lea.vmem %s0, %s129
          %s131 = smul.u32 16, %s16
        $region24: #{attention_forward.5} parent=19 // pred_fallthru
          _
      $region20: #{attention_forward.5} parent=5 // pred_fallthru
        _
      %p132 = scmp.le.s32.totalorder 1, %s8
      %p133 = scmp.lt.s32.totalorder %s8, 5
      %p134 = pnand %p132, %p133
      %p135 = pneg %p134
      // Predicated region
      $region25: #{attention_forward.5} parent=5 // pred_check
        _
      $region26: #{attention_forward.5} parent=5 // pred_check_branch
        %137 = sbr.rel (%p134) target = $region28
      $region27: #{attention_forward.5} parent=5 // pred_region
        %s138 = ssub.s32 %s8, 1
        %s139 = smul.u32 16, %s18
        %p140 = scmp.lt.s32.totalorder %s17, 1
        %s141 = scalar_select %p140, %s17, 1
        %p142 = scmp.lt.s32.totalorder %s139, 31
        %s143 = scalar_select %p142, %s139, 31
        %s144 = smul.addr %s141, 32
        %s145 = sadd.s32 %s143, %s144
        %s146 = smul.addr %s145, 4
        %s147 = scalar_lea.vmem %s0, %s146
        %p148 = pneg %p48
        %p149 = pneg %p45
        %p150 = pneg %p69
        %p151 = pneg %p66
        %p152 = pneg %p97
        %p153 = pneg %p94
        %s154 = sand.u32 %s84, 1
        %s155 = sand.u32 %s84, 1
        %s156 = smul.addr %s155, 32
        %s157 = scalar_lea.vmem [#allocation2], %s156
        %s158 = smul.u32 16, %s18
        %p159 = scmp.lt.s32.totalorder %s17, 1
        %s160 = scalar_select %p159, %s17, 1
        %p161 = scmp.lt.s32.totalorder %s158, 31
        %s162 = scalar_select %p161, %s158, 31
        %s163 = smul.addr %s160, 32
        %s164 = sadd.s32 %s162, %s163
        %s165 = smul.addr %s164, 4
        %s166 = scalar_lea.vmem %s0, %s165
        %s167 = smul.u32 16, %s18
        %v169 = vld [vmem:[%s1] sm:$0xf]
        %v170 = vld [vmem:[%s1 + $0x4] sm:$0xf]
        %v171 = vld [vmem:[%s1 + $0x8] sm:$0xf]
        %v172 = vld [vmem:[%s1 + $0xc] sm:$0xf]
        %v173 = vld [vmem:[%s166] sm:$0xf]
        %v174 = vld [vmem:[%s166 + $0x4] sm:$0xf]
        %v175 = vld [vmem:[%s166 + $0x8] sm:$0xf]
        %v176 = vld [vmem:[%s166 + $0xc] sm:$0xf]
        %v177 = vld [vmem:[%s166 + $0x10] sm:$0xf]
        %v178 = vld [vmem:[%s166 + $0x14] sm:$0xf]
        %v179 = vld [vmem:[%s166 + $0x18] sm:$0xf]
        %v180 = vld [vmem:[%s166 + $0x1c] sm:$0xf]
        %v181 = vld [vmem:[%s166 + $0x20] sm:$0xf]
        %v182 = vld [vmem:[%s166 + $0x24] sm:$0xf]
        %v183 = vld [vmem:[%s166 + $0x28] sm:$0xf]
        %v184 = vld [vmem:[%s166 + $0x2c] sm:$0xf]
        %v185 = vld [vmem:[%s166 + $0x30] sm:$0xf]
        %v186 = vld [vmem:[%s166 + $0x34] sm:$0xf]
        %v187 = vld [vmem:[%s166 + $0x38] sm:$0xf]
        %v188 = vld [vmem:[%s166 + $0x3c] sm:$0xf]
        %v193 = vunpack.c.l.b16 %v169
        %v194 = vunpack.c.l.b16 %v170
        %v195 = vunpack.c.l.b16 %v171
        %v196 = vunpack.c.l.b16 %v172
        %v197 = vpack.c.b16 %v194, %v193
        %v198 = vpack.c.b16 %v196, %v195
        %v217 = vunpack.c.l.b16 %v173
        %v218 = vunpack.c.l.b16 %v174
        %v219 = vunpack.c.l.b16 %v175
        %v220 = vunpack.c.l.b16 %v176
        %v221 = vunpack.c.l.b16 %v177
        %v222 = vunpack.c.l.b16 %v178
        %v223 = vunpack.c.l.b16 %v179
        %v224 = vunpack.c.l.b16 %v180
        %v225 = vunpack.c.l.b16 %v181
        %v226 = vunpack.c.l.b16 %v182
        %v227 = vunpack.c.l.b16 %v183
        %v228 = vunpack.c.l.b16 %v184
        %v229 = vunpack.c.l.b16 %v185
        %v230 = vunpack.c.l.b16 %v186
        %v231 = vunpack.c.l.b16 %v187
        %v232 = vunpack.c.l.b16 %v188
        %v233 = vpack.c.b16 %v218, %v217
        %v234 = vpack.c.b16 %v220, %v219
        %v235 = vpack.c.b16 %v222, %v221
        %v236 = vpack.c.b16 %v224, %v223
        %v237 = vpack.c.b16 %v226, %v225
        %v238 = vpack.c.b16 %v228, %v227
        %v239 = vpack.c.b16 %v230, %v229
        %v240 = vpack.c.b16 %v232, %v231
        %249 = vmatprep.subr.bf16.mxu0 0
        %250 = vmatpush1.bf16.xpose.msra.mxu0 %v240
        %251 = vmatprep.subr.bf16.mxu0 0
        %252 = vmatpush1.bf16.xpose.msra.mxu0 %v239
        %253 = vmatprep.subr.bf16.mxu0 0
        %254 = vmatpush1.bf16.xpose.msra.mxu0 %v238
        %255 = vmatprep.subr.bf16.mxu0 0
        %256 = vmatpush1.bf16.xpose.msra.mxu0 %v237
        %257 = vmatprep.subr.bf16.mxu0 0
        %258 = vmatpush1.bf16.xpose.msra.mxu0 %v236
        %259 = vmatprep.subr.bf16.mxu0 0
        %260 = vmatpush1.bf16.xpose.msra.mxu0 %v235
        %261 = vmatprep.subr.bf16.mxu0 0
        %262 = vmatpush1.bf16.xpose.msra.mxu0 %v234
        %263 = vmatprep.subr.bf16.mxu0 0
        %264 = vmatpush1.bf16.xpose.msra.mxu0 %v233
        %265 = vmatprep.subr.bf16.mxu0 0
        %266 = vmatpush2.bf16.xpose.msra.mxu0 0
        %267 = vmatprep.subr.bf16.mxu0 0
        %268 = vmatpush2.bf16.xpose.msra.mxu0 0
        %269 = vmatprep.subr.bf16.mxu0 0
        %270 = vmatpush2.bf16.xpose.msra.mxu0 0
        %271 = vmatprep.subr.bf16.mxu0 0
        %272 = vmatpush2.bf16.xpose.msra.mxu0 0
        %273 = vmatprep.subr.bf16.mxu0 0
        %274 = vmatpush2.bf16.xpose.msra.mxu0 0
        %275 = vmatprep.subr.bf16.mxu0 0
        %276 = vmatpush2.bf16.xpose.msra.mxu0 0
        %277 = vmatprep.subr.bf16.mxu0 0
        %278 = vmatpush2.bf16.xpose.msra.mxu0 0
        %279 = vmatprep.subr.bf16.mxu0 0
        %280 = vmatpush2.bf16.xpose.msra.mxu0 0
        %281 = vmatprep.mubr.bf16.mxu0 0
        %282 = vmatmul.mubr.bf16.gmra.mxu0 %v197
        %v283 = vpop.f32.mrf.mxu0
        %v284 = vadd.f32 0.0, %v283
        %v285 = vpop.f32.mrf.mxu0
        %v286 = vpop.f32.mrf.mxu0
        %v287 = vadd.f32 0.0, %v286
        %v288 = vpop.f32.mrf.mxu0
        %289 = vmatprep.mubr.bf16.mxu0 0
        %290 = vmatmul.mubr.bf16.gmra.mxu0 %v198
        %v291 = vpop.f32.mrf.mxu0
        %v292 = vadd.f32 0.0, %v291
        %v293 = vpop.f32.mrf.mxu0
        %v294 = vpop.f32.mrf.mxu0
        %v295 = vadd.f32 0.0, %v294
        %v296 = vpop.f32.mrf.mxu0
        %297 = vdwg.mxu0
        %298 = vst [vmem:[%s157] sm:$0xff] %v284
        %299 = vst [vmem:[%s157 + $0x8] sm:$0xff] %v287
        %300 = vst [vmem:[%s157 + $0x10] sm:$0xff] %v292
        %301 = vst [vmem:[%s157 + $0x18] sm:$0xff] %v295
        %s302 = sand.u32 %s84, 1
        %s303 = sand.u32 %s84, 1
        %s304 = smul.addr %s303, 32
        %s305 = scalar_lea.vmem [#allocation2], %s304
        // Predicated region
        $region29: #{attention_forward.5} parent=27 // pred_check
          %p306 = pneg %p94
        $region30: #{attention_forward.5} parent=27 // pred_check_branch
          %308 = sbr.rel (%p306) target = $region32
        $region31: #{attention_forward.5} parent=27 // pred_region
          %s309 = smul.addr %s17, 8
          %s310 = sadd.s32 %s18, %s309
          %s311 = smul.addr %s310, 8
          %s312 = scalar_lea.vmem %s2, %s311
          // Predicated region
          $region33: #{attention_forward.5} parent=31 // pred_check
            _
          $region34: #{attention_forward.5} parent=31 // pred_check_branch
            %314 = sbr.rel (0) target = $region36
          $region35: #{attention_forward.5} parent=31 // pred_region
            // Predicated region
            $region37: #{attention_forward.5} parent=35 // pred_check
              _
            $region38: #{attention_forward.5} parent=35 // pred_check_branch
              %316 = sbr.rel (0) target = $region40
            $region39: #{attention_forward.5} parent=35 // pred_region
              // Predicated region
              $region52: #{attention_forward.5} parent=39 // pred_check
                _
              $region53: #{attention_forward.5} parent=39 // pred_check_branch
                %338 = sbr.rel (0) target = $region55
              $region54: #{attention_forward.5} parent=39 // pred_region
                loop: start=0, step=1, limit=1
                $region56: #{attention_forward.5} parent=54 // loop_pre_header
                  _
                $region57: #{attention_forward.5} parent=54 // loop_header
                  %s340 = sphi 0, %s344
                  %p341 = scmp.ge.s32.totalorder %s340, 1
                  %s345 = sphi %s305, %s305
                  %s346 = sphi %s312, %s312
                $region58: #{attention_forward.5} parent=54 // loop_header_branch
                  %343 = sbr.rel (%p341) target = $region62
                $region59: #{attention_forward.5} parent=54 // loop_body
                  %v347 = vld [vmem:[%s345] sm:$0xff]
                  %348 = vst [vmem:[%s346] sm:$0xff] %v347
                  %v349 = vld [vmem:[%s345 + $0x8] sm:$0xff]
                  %350 = vst [vmem:[%s346 + $0x10] sm:$0xff] %v349
                  %v351 = vld [vmem:[%s345 + $0x10] sm:$0xff]
                  %352 = vst [vmem:[%s346 + $0x20] sm:$0xff] %v351
                  %v353 = vld [vmem:[%s345 + $0x18] sm:$0xff]
                  %354 = vst [vmem:[%s346 + $0x30] sm:$0xff] %v353
                $region60: #{attention_forward.5} parent=54 // loop_footer
                  %s344 = sadd.s32 1, %s340
                $region61: #{attention_forward.5} parent=54 // loop_footer_branch
                  %339 = sbr.rel target = $region57
                $region62: #{attention_forward.5} parent=54 // loop_exit
                  _
              $region55: #{attention_forward.5} parent=39 // pred_fallthru
                _
              // Predicated region
              $region63: #{attention_forward.5} parent=39 // pred_check
                _
              $region64: #{attention_forward.5} parent=39 // pred_check_branch
                %356 = sbr.rel target = $region66
              $region65: #{attention_forward.5} parent=39 // pred_region
                _
              $region66: #{attention_forward.5} parent=39 // pred_fallthru
                _
            $region40: #{attention_forward.5} parent=35 // pred_fallthru
              _
            // Predicated region
            $region41: #{attention_forward.5} parent=35 // pred_check
              _
            $region42: #{attention_forward.5} parent=35 // pred_check_branch
              %318 = sbr.rel target = $region44
            $region43: #{attention_forward.5} parent=35 // pred_region
              %s320 = ssub.s32 256, 1
              loop: start=0, step=1, limit=1
              $region45: #{attention_forward.5} parent=43 // loop_pre_header
                _
              $region46: #{attention_forward.5} parent=43 // loop_header
                %s322 = sphi 0, %s326
                %p323 = scmp.ge.s32.totalorder %s322, 1
                %s327 = sphi %s305, %s305
                %s328 = sphi %s312, %s312
              $region47: #{attention_forward.5} parent=43 // loop_header_branch
                %325 = sbr.rel (%p323) target = $region51
              $region48: #{attention_forward.5} parent=43 // loop_body
                %v329 = vld [vmem:[%s327] sm:%s320]
                %330 = vst [vmem:[%s328] sm:%s320] %v329
                %v331 = vld [vmem:[%s327 + $0x8] sm:%s320]
                %332 = vst [vmem:[%s328 + $0x10] sm:%s320] %v331
                %v333 = vld [vmem:[%s327 + $0x10] sm:%s320]
                %334 = vst [vmem:[%s328 + $0x20] sm:%s320] %v333
                %v335 = vld [vmem:[%s327 + $0x18] sm:%s320]
                %336 = vst [vmem:[%s328 + $0x30] sm:%s320] %v335
              $region49: #{attention_forward.5} parent=43 // loop_footer
                %s326 = sadd.s32 1, %s322
              $region50: #{attention_forward.5} parent=43 // loop_footer_branch
                %321 = sbr.rel target = $region46
              $region51: #{attention_forward.5} parent=43 // loop_exit
                _
            $region44: #{attention_forward.5} parent=35 // pred_fallthru
              _
          $region36: #{attention_forward.5} parent=31 // pred_fallthru
            _
          %357 = vnop
        $region32: #{attention_forward.5} parent=27 // pred_fallthru
          _
      $region28: #{attention_forward.5} parent=5 // pred_fallthru
        _
      %p358 = scmp.le.s32.totalorder 2, %s8
      // Predicated region
      $region67: #{attention_forward.5} parent=5 // pred_check
        %p359 = pneg %p358
      $region68: #{attention_forward.5} parent=5 // pred_check_branch
        %361 = sbr.rel (%p359) target = $region70
      $region69: #{attention_forward.5} parent=5 // pred_region
        %s362 = ssub.s32 %s8, 2
        // Predicated region
        $region71: #{attention_forward.5} parent=69 // pred_check
          %p363 = pneg %p100
        $region72: #{attention_forward.5} parent=69 // pred_check_branch
          %365 = sbr.rel (%p363) target = $region74
        $region73: #{attention_forward.5} parent=69 // pred_region
          %s366 = sand.u32 %s85, 1
          %s367 = sand.u32 %s85, 1
          %s368 = smul.addr %s367, 32
          %s369 = scalar_lea.vmem [#allocation2], %s368
        $region74: #{attention_forward.5} parent=69 // pred_fallthru
          _
      $region70: #{attention_forward.5} parent=5 // pred_fallthru
        _
    $region6: #{attention_forward.5} parent=1 // loop_footer
      %s12 = sadd.s32 1, %s8
    $region7: #{attention_forward.5} parent=1 // loop_footer_branch
      %7 = sbr.rel target = $region3
    $region8: #{attention_forward.5} parent=1 // loop_exit
      _

// kernel: attention_forward.3
$region0: #{attention_forward.3}
  #allocation0 [shape = 'u32[]', space=smem, size = 0x4, offset = 0x4, fixed_abs, tag = 'smem constant byte address 0x4 - core index']
  #allocation1 [shape = 'u32[144,128]{1,0:T(1,128)}', space=vmem, size = 0x12000, scoped, tag = 'internal scratch']
  %s0 = inlined_call_operand.vmem [shape: f32[2,32,256], index: 0, kind: input, shape index: {}]
  %s1 = inlined_call_operand.vmem [shape: bf16[32,128], index: 1, kind: input, shape index: {}]
  %s2 = inlined_call_operand.vmem [shape: bf16[2,256,128], index: 2, kind: output, shape index: {}]
  %s3 = sld [smem:[#allocation0]]
  $region79: #{attention_forward.3} parent=0
    _
  %s5 = ssub.s32 1, %s3
  %s6 = scalar_select 0, %s5, %s3
  $region1: #{attention_forward.3} parent=0
    #allocation2 [shape = 'u8[32768]{0}', space=vmem, size = 0x8000, scoped, tag = 'input window, operand 0']
    loop: start=0, step=1, limit=6
    $region2: #{attention_forward.3} parent=1 // loop_pre_header
      _
    $region3: #{attention_forward.3} parent=1 // loop_header
      %s8 = sphi 0, %s12
      %p9 = scmp.ge.s32.totalorder %s8, 6
      %s15 = sphi 0, %s27
      %s16 = sphi 0, %s23
      %s17 = sphi 0, %s15
      %s18 = sphi 0, %s16
      %s19 = sphi 0, %s17
      %s20 = sphi 0, %s18
      %s32 = sphi 0, %s34
      %s35 = sphi 0, %s32
      %s36 = sphi 0, %s35
      %s52 = sphi 0, %s36
      %s56 = sphi 0, %s56
      %s58 = sphi 0, %s56
      %s59 = sphi 0, %s58
      %s73 = sphi 0, %s59
      %s81 = sphi 0, %s83
      %s84 = sphi 0, %s81
      %s85 = sphi 0, %s84
      %s101 = sphi 0, %s85
    $region4: #{attention_forward.3} parent=1 // loop_header_branch
      %11 = sbr.rel (%p9) target = $region8
    $region5: #{attention_forward.3} parent=1 // loop_body
      %s13 = ssub.s32 %s8, 1
      %s14 = ssub.s32 %s8, 2
      %s21 = sadd.s32 1, %s16
      %p22 = scmp.ge.s32.totalorder %s21, 2
      %s23 = scalar_select %p22, 0, %s21
      %s24 = sadd.s32 1, %s15
      %s25 = scalar_select %p22, %s24, %s15
      %p26 = scmp.ge.s32.totalorder %s25, 2
      %s27 = scalar_select %p26, 0, %s25
      %s28 = ssub.s32 %s15, %s27
      %s29 = ssub.s32 %s16, %s23
      %s30 = sor.u32 %s28, %s29
      %p31 = scmp.eq.s32.totalorder %s30, 0
      %s33 = sadd.s32 %s32, 1
      %s34 = scalar_select %p31, %s32, %s33
      %p37 = pneg %p31
      %p38 = scmp.eq.s32.totalorder %s8, 3
      %p39 = por %p37, %p38
      %p40 = scmp.ne.s32.totalorder %s32, %s35
      %p41 = scmp.eq.s32.totalorder %s8, 0
      %p42 = por %p40, %p41
      %p43 = scmp.ne.s32.totalorder %s32, %s35
      %p44 = scmp.eq.s32.totalorder %s13, 3
      %p45 = por %p43, %p44
      %p46 = scmp.ne.s32.totalorder %s35, %s36
      %p47 = scmp.eq.s32.totalorder %s13, 0
      %p48 = por %p46, %p47
      %p49 = scmp.ne.s32.totalorder %s35, %s36
      %p50 = scmp.eq.s32.totalorder %s14, 3
      %p51 = por %p49, %p50
      %p53 = scmp.ne.s32.totalorder %s36, %s52
      %p54 = scmp.eq.s32.totalorder %s14, 0
      %p55 = por %p53, %p54
      %s57 = sadd.s32 %s56, 1
      %p60 = scmp.eq.s32.totalorder %s8, 3
      %p61 = scmp.ne.s32.totalorder %s56, %s58
      %p62 = scmp.eq.s32.totalorder %s8, 0
      %p63 = por %p61, %p62
      %p64 = scmp.ne.s32.totalorder %s56, %s58
      %p65 = scmp.eq.s32.totalorder %s13, 3
      %p66 = por %p64, %p65
      %p67 = scmp.ne.s32.totalorder %s58, %s59
      %p68 = scmp.eq.s32.totalorder %s13, 0
      %p69 = por %p67, %p68
      %p70 = scmp.ne.s32.totalorder %s58, %s59
      %p71 = scmp.eq.s32.totalorder %s14, 3
      %p72 = por %p70, %p71
      %p74 = scmp.ne.s32.totalorder %s59, %s73
      %p75 = scmp.eq.s32.totalorder %s14, 0
      %p76 = por %p74, %p75
      %s77 = ssub.s32 %s15, %s27
      %s78 = ssub.s32 %s16, %s23
      %s79 = sor.u32 %s77, %s78
      %p80 = scmp.eq.s32.totalorder %s79, 0
      %s82 = sadd.s32 %s81, 1
      %s83 = scalar_select %p80, %s81, %s82
      %p86 = pneg %p80
      %p87 = scmp.eq.s32.totalorder %s8, 3
      %p88 = por %p86, %p87
      %p89 = scmp.ne.s32.totalorder %s81, %s84
      %p90 = scmp.eq.s32.totalorder %s8, 0
      %p91 = por %p89, %p90
      %p92 = scmp.ne.s32.totalorder %s81, %s84
      %p93 = scmp.eq.s32.totalorder %s13, 3
      %p94 = por %p92, %p93
      %p95 = scmp.ne.s32.totalorder %s84, %s85
      %p96 = scmp.eq.s32.totalorder %s13, 0
      %p97 = por %p95, %p96
      %p98 = scmp.ne.s32.totalorder %s84, %s85
      %p99 = scmp.eq.s32.totalorder %s14, 3
      %p100 = por %p98, %p99
      %p102 = scmp.ne.s32.totalorder %s85, %s101
      %p103 = scmp.eq.s32.totalorder %s14, 0
      %p104 = por %p102, %p103
      %p105 = scmp.le.s32.totalorder 1, %s8
      %p106 = scmp.lt.s32.totalorder %s8, 5
      %p107 = pnand %p105, %p106
      %p108 = pneg %p107
      // Predicated region
      $region9: #{attention_forward.3} parent=5 // pred_check
        _
      $region10: #{attention_forward.3} parent=5 // pred_check_branch
        %110 = sbr.rel (%p107) target = $region12
      $region11: #{attention_forward.3} parent=5 // pred_region
        %s111 = ssub.s32 %s8, 1
        // Predicated region
        $region13: #{attention_forward.3} parent=11 // pred_check
          %p112 = pneg %p69
        $region14: #{attention_forward.3} parent=11 // pred_check_branch
          %114 = sbr.rel (%p112) target = $region16
        $region15: #{attention_forward.3} parent=11 // pred_region
          _
        $region16: #{attention_forward.3} parent=11 // pred_fallthru
          _
      $region12: #{attention_forward.3} parent=5 // pred_fallthru
        _
      %p115 = scmp.lt.s32.totalorder %s8, 4
      // Predicated region
      $region17: #{attention_forward.3} parent=5 // pred_check
        %p116 = pneg %p115
      $region18: #{attention_forward.3} parent=5 // pred_check_branch
        %118 = sbr.rel (%p116) target = $region20
      $region19: #{attention_forward.3} parent=5 // pred_region
        // Predicated region
        $region21: #{attention_forward.3} parent=19 // pred_check
          %p119 = pneg %p42
        $region22: #{attention_forward.3} parent=19 // pred_check_branch
          %121 = sbr.rel (%p119) target = $region24
        $region23: #{attention_forward.3} parent=19 // pred_region
          %s122 = sand.u32 %s32, 1
          %s123 = sand.u32 %s32, 1
          %s124 = smul.addr %s123, 32
          %s125 = scalar_lea.vmem [#allocation2], %s124
          %s126 = smul.addr %s15, 8
          %s127 = sadd.s32 %s16, %s126
          %s128 = smul.addr %s127, 8
          %s129 = scalar_lea.vmem %s0, %s128
          // Predicated region
          $region25: #{attention_forward.3} parent=23 // pred_check
            _
          $region26: #{attention_forward.3} parent=23 // pred_check_branch
            %131 = sbr.rel (0) target = $region28
          $region27: #{attention_forward.3} parent=23 // pred_region
            // Predicated region
            $region29: #{attention_forward.3} parent=27 // pred_check
              _
            $region30: #{attention_forward.3} parent=27 // pred_check_branch
              %133 = sbr.rel (0) target = $region32
            $region31: #{attention_forward.3} parent=27 // pred_region
              // Predicated region
              $region44: #{attention_forward.3} parent=31 // pred_check
                _
              $region45: #{attention_forward.3} parent=31 // pred_check_branch
                %155 = sbr.rel (0) target = $region47
              $region46: #{attention_forward.3} parent=31 // pred_region
                loop: start=0, step=1, limit=1
                $region48: #{attention_forward.3} parent=46 // loop_pre_header
                  _
                $region49: #{attention_forward.3} parent=46 // loop_header
                  %s157 = sphi 0, %s161
                  %p158 = scmp.ge.s32.totalorder %s157, 1
                  %s162 = sphi %s129, %s129
                  %s163 = sphi %s125, %s125
                $region50: #{attention_forward.3} parent=46 // loop_header_branch
                  %160 = sbr.rel (%p158) target = $region54
                $region51: #{attention_forward.3} parent=46 // loop_body
                  %v164 = vld [vmem:[%s162] sm:$0xff]
                  %165 = vst [vmem:[%s163] sm:$0xff] %v164
                  %v166 = vld [vmem:[%s162 + $0x10] sm:$0xff]
                  %167 = vst [vmem:[%s163 + $0x8] sm:$0xff] %v166
                  %v168 = vld [vmem:[%s162 + $0x20] sm:$0xff]
                  %169 = vst [vmem:[%s163 + $0x10] sm:$0xff] %v168
                  %v170 = vld [vmem:[%s162 + $0x30] sm:$0xff]
                  %171 = vst [vmem:[%s163 + $0x18] sm:$0xff] %v170
                $region52: #{attention_forward.3} parent=46 // loop_footer
                  %s161 = sadd.s32 1, %s157
                $region53: #{attention_forward.3} parent=46 // loop_footer_branch
                  %156 = sbr.rel target = $region49
                $region54: #{attention_forward.3} parent=46 // loop_exit
                  _
              $region47: #{attention_forward.3} parent=31 // pred_fallthru
                _
              // Predicated region
              $region55: #{attention_forward.3} parent=31 // pred_check
                _
              $region56: #{attention_forward.3} parent=31 // pred_check_branch
                %173 = sbr.rel target = $region58
              $region57: #{attention_forward.3} parent=31 // pred_region
                _
              $region58: #{attention_forward.3} parent=31 // pred_fallthru
                _
            $region32: #{attention_forward.3} parent=27 // pred_fallthru
              _
            // Predicated region
            $region33: #{attention_forward.3} parent=27 // pred_check
              _
            $region34: #{attention_forward.3} parent=27 // pred_check_branch
              %135 = sbr.rel target = $region36
            $region35: #{attention_forward.3} parent=27 // pred_region
              %s137 = ssub.s32 256, 1
              loop: start=0, step=1, limit=1
              $region37: #{attention_forward.3} parent=35 // loop_pre_header
                _
              $region38: #{attention_forward.3} parent=35 // loop_header
                %s139 = sphi 0, %s143
                %p140 = scmp.ge.s32.totalorder %s139, 1
                %s144 = sphi %s129, %s129
                %s145 = sphi %s125, %s125
              $region39: #{attention_forward.3} parent=35 // loop_header_branch
                %142 = sbr.rel (%p140) target = $region43
              $region40: #{attention_forward.3} parent=35 // loop_body
                %v146 = vld [vmem:[%s144] sm:%s137]
                %147 = vst [vmem:[%s145] sm:%s137] %v146
                %v148 = vld [vmem:[%s144 + $0x10] sm:%s137]
                %149 = vst [vmem:[%s145 + $0x8] sm:%s137] %v148
                %v150 = vld [vmem:[%s144 + $0x20] sm:%s137]
                %151 = vst [vmem:[%s145 + $0x10] sm:%s137] %v150
                %v152 = vld [vmem:[%s144 + $0x30] sm:%s137]
                %153 = vst [vmem:[%s145 + $0x18] sm:%s137] %v152
              $region41: #{attention_forward.3} parent=35 // loop_footer
                %s143 = sadd.s32 1, %s139
              $region42: #{attention_forward.3} parent=35 // loop_footer_branch
                %138 = sbr.rel target = $region38
              $region43: #{attention_forward.3} parent=35 // loop_exit
                _
            $region36: #{attention_forward.3} parent=27 // pred_fallthru
              _
          $region28: #{attention_forward.3} parent=23 // pred_fallthru
            _
          %174 = vnop
        $region24: #{attention_forward.3} parent=19 // pred_fallthru
          _
      $region20: #{attention_forward.3} parent=5 // pred_fallthru
        _
      %p175 = scmp.le.s32.totalorder 1, %s8
      %p176 = scmp.lt.s32.totalorder %s8, 5
      %p177 = pnand %p175, %p176
      %p178 = pneg %p177
      // Predicated region
      $region59: #{attention_forward.3} parent=5 // pred_check
        _
      $region60: #{attention_forward.3} parent=5 // pred_check_branch
        %180 = sbr.rel (%p177) target = $region62
      $region61: #{attention_forward.3} parent=5 // pred_region
        %s181 = ssub.s32 %s8, 1
        %s182 = sand.u32 %s35, 1
        %s183 = sand.u32 %s35, 1
        %s184 = smul.addr %s183, 32
        %s185 = scalar_lea.vmem [#allocation2], %s184
        // Predicated region
        $region63: #{attention_forward.3} parent=61 // pred_check
          %p186 = pneg %p48
        $region64: #{attention_forward.3} parent=61 // pred_check_branch
          %188 = sbr.rel (%p186) target = $region66
        $region65: #{attention_forward.3} parent=61 // pred_region
          _
        $region66: #{attention_forward.3} parent=61 // pred_fallthru
          _
        %s189 = sand.u32 %s35, 1
        %s190 = sand.u32 %s35, 1
        %s191 = smul.addr %s190, 32
        %s192 = scalar_lea.vmem [#allocation2], %s191
        %p193 = pneg %p48
        %p194 = pneg %p45
        %p195 = pneg %p69
        %p196 = pneg %p66
        %p197 = pneg %p97
        %p198 = pneg %p94
        %s199 = smul.u32 16, %s18
        %p200 = scmp.lt.s32.totalorder %s17, 1
        %s201 = scalar_select %p200, %s17, 1
        %p202 = scmp.lt.s32.totalorder %s199, 31
        %s203 = scalar_select %p202, %s199, 31
        %s204 = smul.addr %s201, 32
        %s205 = sadd.s32 %s203, %s204
        %s206 = smul.addr %s205, 4
        %s207 = scalar_lea.vmem %s2, %s206
        %s208 = smul.u32 16, %s18
        %p209 = scmp.lt.s32.totalorder %s17, 1
        %s210 = scalar_select %p209, %s17, 1
        %p211 = scmp.lt.s32.totalorder %s208, 31
        %s212 = scalar_select %p211, %s208, 31
        %s213 = smul.addr %s210, 32
        %s214 = sadd.s32 %s212, %s213
        %s215 = smul.addr %s214, 4
        %s216 = scalar_lea.vmem %s2, %s215
        %s217 = smul.u32 16, %s18
        %v219 = vld [vmem:[%s185] sm:$0xff]
        %v220 = vld [vmem:[%s185 + $0x8] sm:$0xff]
        %v221 = vld [vmem:[%s185 + $0x10] sm:$0xff]
        %v222 = vld [vmem:[%s185 + $0x18] sm:$0xff]
        %v223 = vpack.c.bf16 %v220, %v219
        %v224 = vpack.c.bf16 %v222, %v221
        %v225 = vld [vmem:[%s1] sm:$0xf]
        %v226 = vld [vmem:[%s1 + $0x4] sm:$0xf]
        %v227 = vld [vmem:[%s1 + $0x8] sm:$0xf]
        %v228 = vld [vmem:[%s1 + $0xc] sm:$0xf]
        %229 = vxpose.xlu0.c.b16.start [1/8] %v223, 128
        %230 = vxpose.xlu0.c.b16.cont [2/8] %v224, 128
        %231 = vxpose.xlu0.c.b16.cont [3/8] 0, 128
        %232 = vxpose.xlu0.c.b16.cont [4/8] 0, 128
        %233 = vxpose.xlu0.c.b16.cont [5/8] 0, 128
        %234 = vxpose.xlu0.c.b16.cont [6/8] 0, 128
        %235 = vxpose.xlu0.c.b16.cont [7/8] 0, 128
        %236 = vxpose.xlu0.c.b16.end [8/8] 0, 128
        %v237 = vpop.trf.xlu0
        %v238 = vpop.trf.xlu0
        %v239 = vpop.trf.xlu0
        %v240 = vpop.trf.xlu0
        %v241 = vpop.trf.xlu0
        %v242 = vpop.trf.xlu0
        %v243 = vpop.trf.xlu0
        %v244 = vpop.trf.xlu0
        %v249 = vunpack.c.l.b16 %v225
        %v250 = vunpack.c.l.b16 %v226
        %v251 = vunpack.c.l.b16 %v227
        %v252 = vunpack.c.l.b16 %v228
        %v253 = vpack.c.b16 %v250, %v249
        %v254 = vpack.c.b16 %v252, %v251
        %vm257 = vcmask 261120
        %v259 = vsel %vm257, %v237, 0
        %v262 = vsel %vm257, %v238, 0
        %v265 = vsel %vm257, %v239, 0
        %v268 = vsel %vm257, %v240, 0
        %v271 = vsel %vm257, %v241, 0
        %v274 = vsel %vm257, %v242, 0
        %v277 = vsel %vm257, %v243, 0
        %v280 = vsel %vm257, %v244, 0
        %282 = vmatprep.subr.bf16.mxu0 0
        %283 = vmatpush1.bf16.msra.mxu0 0
        %284 = vmatprep.subr.bf16.mxu0 0
        %285 = vmatpush1.bf16.msra.mxu0 0
        %286 = vmatprep.subr.bf16.mxu0 0
        %287 = vmatpush1.bf16.msra.mxu0 0
        %288 = vmatprep.subr.bf16.mxu0 0
        %289 = vmatpush1.bf16.msra.mxu0 0
        %290 = vmatprep.subr.bf16.mxu0 0
        %291 = vmatpush1.bf16.msra.mxu0 0
        %292 = vmatprep.subr.bf16.mxu0 0
        %293 = vmatpush1.bf16.msra.mxu0 0
        %294 = vmatprep.subr.bf16.mxu0 0
        %295 = vmatpush1.bf16.msra.mxu0 %v254
        %296 = vmatprep.subr.bf16.mxu0 0
        %297 = vmatpush1.bf16.msra.mxu0 %v253
        %298 = vmatprep.subr.bf16.mxu0 0
        %299 = vmatpush2.bf16.msra.mxu0 0
        %300 = vmatprep.subr.bf16.mxu0 0
        %301 = vmatpush2.bf16.msra.mxu0 0
        %302 = vmatprep.subr.bf16.mxu0 0
        %303 = vmatpush2.bf16.msra.mxu0 0
        %304 = vmatprep.subr.bf16.mxu0 0
        %305 = vmatpush2.bf16.msra.mxu0 0
        %306 = vmatprep.subr.bf16.mxu0 0
        %307 = vmatpush2.bf16.msra.mxu0 0
        %308 = vmatprep.subr.bf16.mxu0 0
        %309 = vmatpush2.bf16.msra.mxu0 0
        %310 = vmatprep.subr.bf16.mxu0 0
        %311 = vmatpush2.bf16.msra.mxu0 0
        %312 = vmatprep.subr.bf16.mxu0 0
        %313 = vmatpush2.bf16.msra.mxu0 0
        %314 = vmatprep.mubr.bf16.mxu0 0
        %315 = vmatmul.mubr.bf16.gmra.mxu0 %v259
        %v316 = vpop.f32.mrf.mxu0
        %v317 = vadd.f32 0.0, %v316
        %v318 = vpop.f32.mrf.mxu0
        %v319 = vpop.f32.mrf.mxu0
        %v320 = vadd.f32 0.0, %v319
        %v321 = vpop.f32.mrf.mxu0
        %322 = vmatprep.mubr.bf16.mxu0 0
        %323 = vmatmul.mubr.bf16.gmra.mxu0 %v262
        %v324 = vpop.f32.mrf.mxu0
        %v325 = vadd.f32 0.0, %v324
        %v326 = vpop.f32.mrf.mxu0
        %v327 = vpop.f32.mrf.mxu0
        %v328 = vadd.f32 0.0, %v327
        %v329 = vpop.f32.mrf.mxu0
        %330 = vmatprep.mubr.bf16.mxu0 0
        %331 = vmatmul.mubr.bf16.gmra.mxu0 %v265
        %v332 = vpop.f32.mrf.mxu0
        %v333 = vadd.f32 0.0, %v332
        %v334 = vpop.f32.mrf.mxu0
        %v335 = vpop.f32.mrf.mxu0
        %v336 = vadd.f32 0.0, %v335
        %v337 = vpop.f32.mrf.mxu0
        %338 = vmatprep.mubr.bf16.mxu0 0
        %339 = vmatmul.mubr.bf16.gmra.mxu0 %v268
        %v340 = vpop.f32.mrf.mxu0
        %v341 = vadd.f32 0.0, %v340
        %v342 = vpop.f32.mrf.mxu0
        %v343 = vpop.f32.mrf.mxu0
        %v344 = vadd.f32 0.0, %v343
        %v345 = vpop.f32.mrf.mxu0
        %346 = vmatprep.mubr.bf16.mxu0 0
        %347 = vmatmul.mubr.bf16.gmra.mxu0 %v271
        %v348 = vpop.f32.mrf.mxu0
        %v349 = vadd.f32 0.0, %v348
        %v350 = vpop.f32.mrf.mxu0
        %v351 = vpop.f32.mrf.mxu0
        %v352 = vadd.f32 0.0, %v351
        %v353 = vpop.f32.mrf.mxu0
        %354 = vmatprep.mubr.bf16.mxu0 0
        %355 = vmatmul.mubr.bf16.gmra.mxu0 %v274
        %v356 = vpop.f32.mrf.mxu0
        %v357 = vadd.f32 0.0, %v356
        %v358 = vpop.f32.mrf.mxu0
        %v359 = vpop.f32.mrf.mxu0
        %v360 = vadd.f32 0.0, %v359
        %v361 = vpop.f32.mrf.mxu0
        %362 = vmatprep.mubr.bf16.mxu0 0
        %363 = vmatmul.mubr.bf16.gmra.mxu0 %v277
        %v364 = vpop.f32.mrf.mxu0
        %v365 = vadd.f32 0.0, %v364
        %v366 = vpop.f32.mrf.mxu0
        %v367 = vpop.f32.mrf.mxu0
        %v368 = vadd.f32 0.0, %v367
        %v369 = vpop.f32.mrf.mxu0
        %370 = vmatprep.mubr.bf16.mxu0 0
        %371 = vmatmul.mubr.bf16.gmra.mxu0 %v280
        %v372 = vpop.f32.mrf.mxu0
        %v373 = vadd.f32 0.0, %v372
        %v374 = vpop.f32.mrf.mxu0
        %v375 = vpop.f32.mrf.mxu0
        %v376 = vadd.f32 0.0, %v375
        %v377 = vpop.f32.mrf.mxu0
        %378 = vdwg.mxu0
        %v379 = vpack.c.bf16 %v320, %v317
        %v380 = vpack.c.bf16 %v328, %v325
        %v381 = vpack.c.bf16 %v336, %v333
        %v382 = vpack.c.bf16 %v344, %v341
        %v383 = vpack.c.bf16 %v352, %v349
        %v384 = vpack.c.bf16 %v360, %v357
        %v385 = vpack.c.bf16 %v368, %v365
        %v386 = vpack.c.bf16 %v376, %v373
        %v395 = vunpack.c.l.b16 %v379
        %v396 = vunpack.c.h.b16 %v379
        %v397 = vunpack.c.l.b16 %v380
        %v398 = vunpack.c.h.b16 %v380
        %v399 = vunpack.c.l.b16 %v381
        %v400 = vunpack.c.h.b16 %v381
        %v401 = vunpack.c.l.b16 %v382
        %v402 = vunpack.c.h.b16 %v382
        %v403 = vunpack.c.l.b16 %v383
        %v404 = vunpack.c.h.b16 %v383
        %v405 = vunpack.c.l.b16 %v384
        %v406 = vunpack.c.h.b16 %v384
        %v407 = vunpack.c.l.b16 %v385
        %v408 = vunpack.c.h.b16 %v385
        %v409 = vunpack.c.l.b16 %v386
        %v410 = vunpack.c.h.b16 %v386
        %v411 = vpack.c.b16 %v395, %v395
        %v412 = vpack.c.b16 %v396, %v396
        %v413 = vpack.c.b16 %v397, %v397
        %v414 = vpack.c.b16 %v398, %v398
        %v415 = vpack.c.b16 %v399, %v399
        %v416 = vpack.c.b16 %v400, %v400
        %v417 = vpack.c.b16 %v401, %v401
        %v418 = vpack.c.b16 %v402, %v402
        %v419 = vpack.c.b16 %v403, %v403
        %v420 = vpack.c.b16 %v404, %v404
        %v421 = vpack.c.b16 %v405, %v405
        %v422 = vpack.c.b16 %v406, %v406
        %v423 = vpack.c.b16 %v407, %v407
        %v424 = vpack.c.b16 %v408, %v408
        %v425 = vpack.c.b16 %v409, %v409
        %v426 = vpack.c.b16 %v410, %v410
        %443 = vst [vmem:[%s216] sm:$0xf] %v411
        %444 = vst [vmem:[%s216 + $0x4] sm:$0xf] %v412
        %445 = vst [vmem:[%s216 + $0x8] sm:$0xf] %v413
        %446 = vst [vmem:[%s216 + $0xc] sm:$0xf] %v414
        %447 = vst [vmem:[%s216 + $0x10] sm:$0xf] %v415
        %448 = vst [vmem:[%s216 + $0x14] sm:$0xf] %v416
        %449 = vst [vmem:[%s216 + $0x18] sm:$0xf] %v417
        %450 = vst [vmem:[%s216 + $0x1c] sm:$0xf] %v418
        %451 = vst [vmem:[%s216 + $0x20] sm:$0xf] %v419
        %452 = vst [vmem:[%s216 + $0x24] sm:$0xf] %v420
        %453 = vst [vmem:[%s216 + $0x28] sm:$0xf] %v421
        %454 = vst [vmem:[%s216 + $0x2c] sm:$0xf] %v422
        %455 = vst [vmem:[%s216 + $0x30] sm:$0xf] %v423
        %456 = vst [vmem:[%s216 + $0x34] sm:$0xf] %v424
        %457 = vst [vmem:[%s216 + $0x38] sm:$0xf] %v425
        %458 = vst [vmem:[%s216 + $0x3c] sm:$0xf] %v426
        %s459 = smul.u32 16, %s18
        %p460 = scmp.lt.s32.totalorder %s17, 1
        %s461 = scalar_select %p460, %s17, 1
        %p462 = scmp.lt.s32.totalorder %s459, 31
        %s463 = scalar_select %p462, %s459, 31
        %s464 = smul.addr %s461, 32
        %s465 = sadd.s32 %s463, %s464
        %s466 = smul.addr %s465, 4
        %s467 = scalar_lea.vmem %s2, %s466
        // Predicated region
        $region67: #{attention_forward.3} parent=61 // pred_check
          %p468 = pneg %p94
        $region68: #{attention_forward.3} parent=61 // pred_check_branch
          %470 = sbr.rel (%p468) target = $region70
        $region69: #{attention_forward.3} parent=61 // pred_region
          %s471 = smul.u32 16, %s18
        $region70: #{attention_forward.3} parent=61 // pred_fallthru
          _
      $region62: #{attention_forward.3} parent=5 // pred_fallthru
        _
      %p472 = scmp.le.s32.totalorder 2, %s8
      // Predicated region
      $region71: #{attention_forward.3} parent=5 // pred_check
        %p473 = pneg %p472
      $region72: #{attention_forward.3} parent=5 // pred_check_branch
        %475 = sbr.rel (%p473) target = $region74
      $region73: #{attention_forward.3} parent=5 // pred_region
        %s476 = ssub.s32 %s8, 2
        // Predicated region
        $region75: #{attention_forward.3} parent=73 // pred_check
          %p477 = pneg %p100
        $region76: #{attention_forward.3} parent=73 // pred_check_branch
          %479 = sbr.rel (%p477) target = $region78
        $region77: #{attention_forward.3} parent=73 // pred_region
          %s480 = smul.u32 16, %s20
          %p481 = scmp.lt.s32.totalorder %s19, 1
          %s482 = scalar_select %p481, %s19, 1
          %p483 = scmp.lt.s32.totalorder %s480, 31
          %s484 = scalar_select %p483, %s480, 31
          %s485 = smul.addr %s482, 32
          %s486 = sadd.s32 %s484, %s485
          %s487 = smul.addr %s486, 4
          %s488 = scalar_lea.vmem %s2, %s487
        $region78: #{attention_forward.3} parent=73 // pred_fallthru
          _
      $region74: #{attention_forward.3} parent=5 // pred_fallthru
        _
    $region6: #{attention_forward.3} parent=1 // loop_footer
      %s12 = sadd.s32 1, %s8
    $region7: #{attention_forward.3} parent=1 // loop_footer_branch
      %7 = sbr.rel target = $region3
    $region8: #{attention_forward.3} parent=1 // loop_exit
      _

// kernel: attention_forward.4
$region0: #{attention_forward.4}
  #allocation0 [shape = 'u32[]', space=smem, size = 0x4, offset = 0x4, fixed_abs, tag = 'smem constant byte address 0x4 - core index']
  #allocation1 [shape = 'u32[144,128]{1,0:T(1,128)}', space=vmem, size = 0x12000, scoped, tag = 'internal scratch']
  #allocation2 [shape = 'f32[18,18,128]{2,1,0:T(8,128)}', space=vmem, size = 0x36000, scoped, tag = 'scratch operand']
  #allocation3 [shape = 'bf16[256,128]{1,0:T(8,128)(2,1)}', space=vmem, size = 0x10000, scoped, tag = 'scratch operand']
  %s0 = inlined_call_operand.vmem [shape: f32[4], index: 0, kind: input, shape index: {}]
  %s1 = inlined_call_operand.vmem [shape: f32[32,1], index: 1, kind: input, shape index: {}]
  %s2 = inlined_call_operand.vmem [shape: f32[32,32], index: 2, kind: input, shape index: {}]
  %s3 = inlined_call_operand.vmem [shape: bf16[2,16,16,128], index: 3, kind: input, shape index: {}]
  %s4 = inlined_call_operand.vmem [shape: f32[9,128], index: 4, kind: input, shape index: {}]
  %s5 = inlined_call_operand.vmem [shape: bf16[2,256,128], index: 5, kind: output, shape index: {}]
  %s6 = sld [smem:[#allocation0]]
  $region57: #{attention_forward.4} parent=0
    _
  %s8 = ssub.s32 1, %s6
  %s9 = scalar_select 0, %s8, %s6
  $region1: #{attention_forward.4} parent=0
    #allocation4 [shape = 'u8[512]{0}', space=smem, size = 0x200, scoped, tag = 'input window, operand 0, single buffered']
    #allocation5 [shape = 's32[2]{0}', space=sflag, size = 0x8, scoped, tag = 'scoped memory for attention_forward.4']
    %10 = vsyncpa [#allocation5], 0
    loop: start=0, step=1, limit=4
    $region2: #{attention_forward.4} parent=1 // loop_pre_header
      _
    $region3: #{attention_forward.4} parent=1 // loop_header
      %s12 = sphi 0, %s16
      %p13 = scmp.ge.s32.totalorder %s12, 4
      %s20 = sphi 0, %s20
      %s22 = sphi 0, %s20
      %s23 = sphi 0, %s22
      %s37 = sphi 0, %s23
      %s41 = sphi 0, %s41
      %s43 = sphi 0, %s41
      %s44 = sphi 0, %s43
      %s58 = sphi 0, %s44
      %s62 = sphi 0, %s62
      %s64 = sphi 0, %s62
      %s65 = sphi 0, %s64
      %s79 = sphi 0, %s65
      %s85 = sphi 0, %s87
      %s88 = sphi 0, %s85
      %s89 = sphi 0, %s88
      %s105 = sphi 0, %s89
      %s109 = sphi 0, %s109
      %s111 = sphi 0, %s109
      %s112 = sphi 0, %s111
      %s126 = sphi 0, %s112
      %s132 = sphi 0, %s134
      %s135 = sphi 0, %s132
      %s136 = sphi 0, %s135
      %s152 = sphi 0, %s136
    $region4: #{attention_forward.4} parent=1 // loop_header_branch
      %15 = sbr.rel (%p13) target = $region8
    $region5: #{attention_forward.4} parent=1 // loop_body
      %s17 = ssub.s32 %s12, 1
      %s18 = ssub.s32 %s12, 2
      %s19 = sadd.s32 %s12, 1
      %s21 = sadd.s32 %s20, 1
      %p24 = scmp.eq.s32.totalorder %s12, 1
      %p25 = scmp.ne.s32.totalorder %s20, %s22
      %p26 = scmp.eq.s32.totalorder %s12, 0
      %p27 = por %p25, %p26
      %p28 = scmp.ne.s32.totalorder %s20, %s22
      %p29 = scmp.eq.s32.totalorder %s17, 1
      %p30 = por %p28, %p29
      %p31 = scmp.ne.s32.totalorder %s22, %s23
      %p32 = scmp.eq.s32.totalorder %s17, 0
      %p33 = por %p31, %p32
      %p34 = scmp.ne.s32.totalorder %s22, %s23
      %p35 = scmp.eq.s32.totalorder %s18, 1
      %p36 = por %p34, %p35
      %p38 = scmp.ne.s32.totalorder %s23, %s37
      %p39 = scmp.eq.s32.totalorder %s18, 0
      %p40 = por %p38, %p39
      %s42 = sadd.s32 %s41, 1
      %p45 = scmp.eq.s32.totalorder %s12, 1
      %p46 = scmp.ne.s32.totalorder %s41, %s43
      %p47 = scmp.eq.s32.totalorder %s12, 0
      %p48 = por %p46, %p47
      %p49 = scmp.ne.s32.totalorder %s41, %s43
      %p50 = scmp.eq.s32.totalorder %s17, 1
      %p51 = por %p49, %p50
      %p52 = scmp.ne.s32.totalorder %s43, %s44
      %p53 = scmp.eq.s32.totalorder %s17, 0
      %p54 = por %p52, %p53
      %p55 = scmp.ne.s32.totalorder %s43, %s44
      %p56 = scmp.eq.s32.totalorder %s18, 1
      %p57 = por %p55, %p56
      %p59 = scmp.ne.s32.totalorder %s44, %s58
      %p60 = scmp.eq.s32.totalorder %s18, 0
      %p61 = por %p59, %p60
      %s63 = sadd.s32 %s62, 1
      %p66 = scmp.eq.s32.totalorder %s12, 1
      %p67 = scmp.ne.s32.totalorder %s62, %s64
      %p68 = scmp.eq.s32.totalorder %s12, 0
      %p69 = por %p67, %p68
      %p70 = scmp.ne.s32.totalorder %s62, %s64
      %p71 = scmp.eq.s32.totalorder %s17, 1
      %p72 = por %p70, %p71
      %p73 = scmp.ne.s32.totalorder %s64, %s65
      %p74 = scmp.eq.s32.totalorder %s17, 0
      %p75 = por %p73, %p74
      %p76 = scmp.ne.s32.totalorder %s64, %s65
      %p77 = scmp.eq.s32.totalorder %s18, 1
      %p78 = por %p76, %p77
      %p80 = scmp.ne.s32.totalorder %s65, %s79
      %p81 = scmp.eq.s32.totalorder %s18, 0
      %p82 = por %p80, %p81
      %s83 = ssub.s32 %s12, %s19
      %p84 = scmp.eq.s32.totalorder %s83, 0
      %s86 = sadd.s32 %s85, 1
      %s87 = scalar_select %p84, %s85, %s86
      %p90 = pneg %p84
      %p91 = scmp.eq.s32.totalorder %s12, 1
      %p92 = por %p90, %p91
      %p93 = scmp.ne.s32.totalorder %s85, %s88
      %p94 = scmp.eq.s32.totalorder %s12, 0
      %p95 = por %p93, %p94
      %p96 = scmp.ne.s32.totalorder %s85, %s88
      %p97 = scmp.eq.s32.totalorder %s17, 1
      %p98 = por %p96, %p97
      %p99 = scmp.ne.s32.totalorder %s88, %s89
      %p100 = scmp.eq.s32.totalorder %s17, 0
      %p101 = por %p99, %p100
      %p102 = scmp.ne.s32.totalorder %s88, %s89
      %p103 = scmp.eq.s32.totalorder %s18, 1
      %p104 = por %p102, %p103
      %p106 = scmp.ne.s32.totalorder %s89, %s105
      %p107 = scmp.eq.s32.totalorder %s18, 0
      %p108 = por %p106, %p107
      %s110 = sadd.s32 %s109, 1
      %p113 = scmp.eq.s32.totalorder %s12, 1
      %p114 = scmp.ne.s32.totalorder %s109, %s111
      %p115 = scmp.eq.s32.totalorder %s12, 0
      %p116 = por %p114, %p115
      %p117 = scmp.ne.s32.totalorder %s109, %s111
      %p118 = scmp.eq.s32.totalorder %s17, 1
      %p119 = por %p117, %p118
      %p120 = scmp.ne.s32.totalorder %s111, %s112
      %p121 = scmp.eq.s32.totalorder %s17, 0
      %p122 = por %p120, %p121
      %p123 = scmp.ne.s32.totalorder %s111, %s112
      %p124 = scmp.eq.s32.totalorder %s18, 1
      %p125 = por %p123, %p124
      %p127 = scmp.ne.s32.totalorder %s112, %s126
      %p128 = scmp.eq.s32.totalorder %s18, 0
      %p129 = por %p127, %p128
      %s130 = ssub.s32 %s12, %s19
      %p131 = scmp.eq.s32.totalorder %s130, 0
      %s133 = sadd.s32 %s132, 1
      %s134 = scalar_select %p131, %s132, %s133
      %p137 = pneg %p131
      %p138 = scmp.eq.s32.totalorder %s12, 1
      %p139 = por %p137, %p138
      %p140 = scmp.ne.s32.totalorder %s132, %s135
      %p141 = scmp.eq.s32.totalorder %s12, 0
      %p142 = por %p140, %p141
      %p143 = scmp.ne.s32.totalorder %s132, %s135
      %p144 = scmp.eq.s32.totalorder %s17, 1
      %p145 = por %p143, %p144
      %p146 = scmp.ne.s32.totalorder %s135, %s136
      %p147 = scmp.eq.s32.totalorder %s17, 0
      %p148 = por %p146, %p147
      %p149 = scmp.ne.s32.totalorder %s135, %s136
      %p150 = scmp.eq.s32.totalorder %s18, 1
      %p151 = por %p149, %p150
      %p153 = scmp.ne.s32.totalorder %s136, %s152
      %p154 = scmp.eq.s32.totalorder %s18, 0
      %p155 = por %p153, %p154
      %p156 = scmp.le.s32.totalorder 1, %s12
      %p157 = scmp.lt.s32.totalorder %s12, 3
      %p158 = pnand %p156, %p157
      %p159 = pneg %p158
      // Predicated region
      $region9: #{attention_forward.4} parent=5 // pred_check
        _
      $region10: #{attention_forward.4} parent=5 // pred_check_branch
        %161 = sbr.rel (%p158) target = $region12
      $region11: #{attention_forward.4} parent=5 // pred_region
        %s162 = ssub.s32 %s12, 1
        // Predicated region
        $region13: #{attention_forward.4} parent=11 // pred_check
          %p163 = pneg %p33
        $region14: #{attention_forward.4} parent=11 // pred_check_branch
          %165 = sbr.rel (%p163) target = $region16
        $region15: #{attention_forward.4} parent=11 // pred_region
          %s167 = ssub.s32 16, 16
          %168 = vsyncadd [#allocation5], %s167
          %s170 = sshll.u32 %s0, 4
          %s171 = int_to_ptr.vmem [resolvable:$true] %s170
          %173 = dma.vmem_to_smem %s171, 16, [#allocation4], [#allocation5]
        $region16: #{attention_forward.4} parent=11 // pred_fallthru
          _
        // Predicated region
        $region17: #{attention_forward.4} parent=11 // pred_check
          %p174 = pneg %p54
        $region18: #{attention_forward.4} parent=11 // pred_check_branch
          %176 = sbr.rel (%p174) target = $region20
        $region19: #{attention_forward.4} parent=11 // pred_region
          _
        $region20: #{attention_forward.4} parent=11 // pred_fallthru
          _
        // Predicated region
        $region21: #{attention_forward.4} parent=11 // pred_check
          %p177 = pneg %p75
        $region22: #{attention_forward.4} parent=11 // pred_check_branch
          %179 = sbr.rel (%p177) target = $region24
        $region23: #{attention_forward.4} parent=11 // pred_region
          _
        $region24: #{attention_forward.4} parent=11 // pred_fallthru
          _
        // Predicated region
        $region25: #{attention_forward.4} parent=11 // pred_check
          %p180 = pneg %p122
        $region26: #{attention_forward.4} parent=11 // pred_check_branch
          %182 = sbr.rel (%p180) target = $region28
        $region27: #{attention_forward.4} parent=11 // pred_region
          _
        $region28: #{attention_forward.4} parent=11 // pred_fallthru
          _
      $region12: #{attention_forward.4} parent=5 // pred_fallthru
        _
      %p183 = scmp.lt.s32.totalorder %s12, 2
      // Predicated region
      $region29: #{attention_forward.4} parent=5 // pred_check
        %p184 = pneg %p183
      $region30: #{attention_forward.4} parent=5 // pred_check_branch
        %186 = sbr.rel (%p184) target = $region32
      $region31: #{attention_forward.4} parent=5 // pred_region
        // Predicated region
        $region33: #{attention_forward.4} parent=31 // pred_check
          %p187 = pneg %p95
        $region34: #{attention_forward.4} parent=31 // pred_check_branch
          %189 = sbr.rel (%p187) target = $region36
        $region35: #{attention_forward.4} parent=31 // pred_region
          %p190 = scmp.lt.s32.totalorder %s12, 1
          %s191 = scalar_select %p190, %s12, 1
          %s192 = smul.addr %s191, 32
          %s193 = smul.addr %s192, 4
          %s194 = scalar_lea.vmem %s3, %s193
        $region36: #{attention_forward.4} parent=31 // pred_fallthru
          _
      $region32: #{attention_forward.4} parent=5 // pred_fallthru
        _
      %p195 = scmp.le.s32.totalorder 1, %s12
      %p196 = scmp.lt.s32.totalorder %s12, 3
      %p197 = pnand %p195, %p196
      %p198 = pneg %p197
      // Predicated region
      $region37: #{attention_forward.4} parent=5 // pred_check
        _
      $region38: #{attention_forward.4} parent=5 // pred_check_branch
        %200 = sbr.rel (%p197) target = $region40
      $region39: #{attention_forward.4} parent=5 // pred_region
        %s201 = ssub.s32 %s12, 1
        // Predicated region
        $region41: #{attention_forward.4} parent=39 // pred_check
          %p202 = pneg %p33
        $region42: #{attention_forward.4} parent=39 // pred_check_branch
          %204 = sbr.rel (%p202) target = $region44
        $region43: #{attention_forward.4} parent=39 // pred_region
          %205 = dma.done [#allocation5], 16
        $region44: #{attention_forward.4} parent=39 // pred_fallthru
          _
        %206 = sfence
        %p207 = pneg %p33
        %p208 = pneg %p30
        %p209 = pneg %p54
        %p210 = pneg %p51
        %p211 = pneg %p75
        %p212 = pneg %p72
        %p213 = scmp.lt.s32.totalorder %s17, 1
        %s214 = scalar_select %p213, %s17, 1
        %s215 = smul.addr %s214, 32
        %s216 = smul.addr %s215, 4
        %s217 = scalar_lea.vmem %s3, %s216
        %p218 = pneg %p101
        %p219 = pneg %p98
        %p220 = pneg %p122
        %p221 = pneg %p119
        %p222 = pneg %p148
        %p223 = pneg %p145
        %p224 = scmp.lt.s32.totalorder %s17, 1
        %s225 = scalar_select %p224, %s17, 1
        %s226 = smul.addr %s225, 32
        %s227 = smul.addr %s226, 4
        %s228 = scalar_lea.vmem %s5, %s227
        %p229 = scmp.lt.s32.totalorder %s17, 1
        %s230 = scalar_select %p229, %s17, 1
        %s231 = smul.addr %s230, 32
        %s232 = smul.addr %s231, 4
        %s233 = scalar_lea.vmem %s3, %s232
        %p234 = scmp.lt.s32.totalorder %s17, 1
        %s235 = scalar_select %p234, %s17, 1
        %s236 = smul.addr %s235, 32
        %s237 = smul.addr %s236, 4
        %s238 = scalar_lea.vmem %s5, %s237
        %240 = vst [vmem:[#allocation2] sm:$0xff] 0.0
        %241 = vst [vmem:[#allocation2 + $0x8] sm:$0xff] 0.0
        %242 = vst [vmem:[#allocation2 + $0x10] sm:$0x3] 0.0
        %243 = vst [vmem:[#allocation2 + $0x18] sm:$0xff] 0.0
        %244 = vst [vmem:[#allocation2 + $0x20] sm:$0xff] 0.0
        %245 = vst [vmem:[#allocation2 + $0x28] sm:$0x3] 0.0
        %246 = vst [vmem:[#allocation2 + $0x30] sm:$0xff] 0.0
        %247 = vst [vmem:[#allocation2 + $0x38] sm:$0xff] 0.0
        %248 = vst [vmem:[#allocation2 + $0x40] sm:$0x3] 0.0
        %249 = vst [vmem:[#allocation2 + $0x48] sm:$0xff] 0.0
        %250 = vst [vmem:[#allocation2 + $0x50] sm:$0xff] 0.0
        %251 = vst [vmem:[#allocation2 + $0x58] sm:$0x3] 0.0
        %252 = vst [vmem:[#allocation2 + $0x60] sm:$0xff] 0.0
        %253 = vst [vmem:[#allocation2 + $0x68] sm:$0xff] 0.0
        %254 = vst [vmem:[#allocation2 + $0x70] sm:$0x3] 0.0
        %255 = vst [vmem:[#allocation2 + $0x78] sm:$0xff] 0.0
        %256 = vst [vmem:[#allocation2 + $0x80] sm:$0xff] 0.0
        %257 = vst [vmem:[#allocation2 + $0x88] sm:$0x3] 0.0
        %258 = vst [vmem:[#allocation2 + $0x90] sm:$0xff] 0.0
        %259 = vst [vmem:[#allocation2 + $0x98] sm:$0xff] 0.0
        %260 = vst [vmem:[#allocation2 + $0xa0] sm:$0x3] 0.0
        %261 = vst [vmem:[#allocation2 + $0xa8] sm:$0xff] 0.0
        %262 = vst [vmem:[#allocation2 + $0xb0] sm:$0xff] 0.0
        %263 = vst [vmem:[#allocation2 + $0xb8] sm:$0x3] 0.0
        %264 = vst [vmem:[#allocation2 + $0xc0] sm:$0xff] 0.0
        %265 = vst [vmem:[#allocation2 + $0xc8] sm:$0xff] 0.0
        %266 = vst [vmem:[#allocation2 + $0xd0] sm:$0x3] 0.0
        %267 = vst [vmem:[#allocation2 + $0xd8] sm:$0xff] 0.0
        %268 = vst [vmem:[#allocation2 + $0xe0] sm:$0xff] 0.0
        %269 = vst [vmem:[#allocation2 + $0xe8] sm:$0x3] 0.0
        %270 = vst [vmem:[#allocation2 + $0xf0] sm:$0xff] 0.0
        %271 = vst [vmem:[#allocation2 + $0xf8] sm:$0xff] 0.0
        %272 = vst [vmem:[#allocation2 + $0x100] sm:$0x3] 0.0
        %273 = vst [vmem:[#allocation2 + $0x108] sm:$0xff] 0.0
        %274 = vst [vmem:[#allocation2 + $0x110] sm:$0xff] 0.0
        %275 = vst [vmem:[#allocation2 + $0x118] sm:$0x3] 0.0
        %276 = vst [vmem:[#allocation2 + $0x120] sm:$0xff] 0.0
        %277 = vst [vmem:[#allocation2 + $0x128] sm:$0xff] 0.0
        %278 = vst [vmem:[#allocation2 + $0x130] sm:$0x3] 0.0
        %279 = vst [vmem:[#allocation2 + $0x138] sm:$0xff] 0.0
        %280 = vst [vmem:[#allocation2 + $0x140] sm:$0xff] 0.0
        %281 = vst [vmem:[#allocation2 + $0x148] sm:$0x3] 0.0
        %282 = vst [vmem:[#allocation2 + $0x150] sm:$0xff] 0.0
        %283 = vst [vmem:[#allocation2 + $0x158] sm:$0xff] 0.0
        %284 = vst [vmem:[#allocation2 + $0x160] sm:$0x3] 0.0
        %285 = vst [vmem:[#allocation2 + $0x168] sm:$0xff] 0.0
        %286 = vst [vmem:[#allocation2 + $0x170] sm:$0xff] 0.0
        %287 = vst [vmem:[#allocation2 + $0x178] sm:$0x3] 0.0
        %288 = vst [vmem:[#allocation2 + $0x180] sm:$0xff] 0.0
        %289 = vst [vmem:[#allocation2 + $0x188] sm:$0xff] 0.0
        %290 = vst [vmem:[#allocation2 + $0x190] sm:$0x3] 0.0
        %291 = vst [vmem:[#allocation2 + $0x198] sm:$0xff] 0.0
        %292 = vst [vmem:[#allocation2 + $0x1a0] sm:$0xff] 0.0
        %293 = vst [vmem:[#allocation2 + $0x1a8] sm:$0x3] 0.0
        %v294 = vld [vmem:[%s233] sm:$0xf]
        %v295 = vld [vmem:[%s233 + $0x4] sm:$0xf]
        %v296 = vld [vmem:[%s233 + $0x8] sm:$0xf]
        %v297 = vld [vmem:[%s233 + $0xc] sm:$0xf]
        %v298 = vld [vmem:[%s233 + $0x10] sm:$0xf]
        %v299 = vld [vmem:[%s233 + $0x14] sm:$0xf]
        %v300 = vld [vmem:[%s233 + $0x18] sm:$0xf]
        %v301 = vld [vmem:[%s233 + $0x1c] sm:$0xf]
        %v302 = vld [vmem:[%s233 + $0x20] sm:$0xf]
        %v303 = vld [vmem:[%s233 + $0x24] sm:$0xf]
        %v304 = vld [vmem:[%s233 + $0x28] sm:$0xf]
        %v305 = vld [vmem:[%s233 + $0x2c] sm:$0xf]
        %v306 = vld [vmem:[%s233 + $0x30] sm:$0xf]
        %v307 = vld [vmem:[%s233 + $0x34] sm:$0xf]
        %v308 = vld [vmem:[%s233 + $0x38] sm:$0xf]
        %v309 = vld [vmem:[%s233 + $0x3c] sm:$0xf]
        %v310 = vld [vmem:[%s233 + $0x40] sm:$0xf]
        %v311 = vld [vmem:[%s233 + $0x44] sm:$0xf]
        %v312 = vld [vmem:[%s233 + $0x48] sm:$0xf]
        %v313 = vld [vmem:[%s233 + $0x4c] sm:$0xf]
        %v314 = vld [vmem:[%s233 + $0x50] sm:$0xf]
        %v315 = vld [vmem:[%s233 + $0x54] sm:$0xf]
        %v316 = vld [vmem:[%s233 + $0x58] sm:$0xf]
        %v317 = vld [vmem:[%s233 + $0x5c] sm:$0xf]
        %v318 = vld [vmem:[%s233 + $0x60] sm:$0xf]
        %v319 = vld [vmem:[%s233 + $0x64] sm:$0xf]
        %v320 = vld [vmem:[%s233 + $0x68] sm:$0xf]
        %v321 = vld [vmem:[%s233 + $0x6c] sm:$0xf]
        %v322 = vld [vmem:[%s233 + $0x70] sm:$0xf]
        %v323 = vld [vmem:[%s233 + $0x74] sm:$0xf]
        %v324 = vld [vmem:[%s233 + $0x78] sm:$0xf]
        %v325 = vld [vmem:[%s233 + $0x7c] sm:$0xf]
        %v326 = vunpack.c.l.bf16 %v294
        %v327 = vunpack.c.l.bf16 %v295
        %v328 = vunpack.c.l.bf16 %v296
        %v329 = vunpack.c.l.bf16 %v297
        %v330 = vunpack.c.l.bf16 %v298
        %v331 = vunpack.c.l.bf16 %v299
        %v332 = vunpack.c.l.bf16 %v300
        %v333 = vunpack.c.l.bf16 %v301
        %v334 = vunpack.c.l.bf16 %v302
        %v335 = vunpack.c.l.bf16 %v303
        %v336 = vunpack.c.l.bf16 %v304
        %v337 = vunpack.c.l.bf16 %v305
        %v338 = vunpack.c.l.bf16 %v306
        %v339 = vunpack.c.l.bf16 %v307
        %v340 = vunpack.c.l.bf16 %v308
        %v341 = vunpack.c.l.bf16 %v309
        %v342 = vunpack.c.l.bf16 %v310
        %v343 = vunpack.c.l.bf16 %v311
        %v344 = vunpack.c.l.bf16 %v312
        %v345 = vunpack.c.l.bf16 %v313
        %v346 = vunpack.c.l.bf16 %v314
        %v347 = vunpack.c.l.bf16 %v315
        %v348 = vunpack.c.l.bf16 %v316
        %v349 = vunpack.c.l.bf16 %v317
        %v350 = vunpack.c.l.bf16 %v318
        %v351 = vunpack.c.l.bf16 %v319
        %v352 = vunpack.c.l.bf16 %v320
        %v353 = vunpack.c.l.bf16 %v321
        %v354 = vunpack.c.l.bf16 %v322
        %v355 = vunpack.c.l.bf16 %v323
        %v356 = vunpack.c.l.bf16 %v324
        %v357 = vunpack.c.l.bf16 %v325
        %s358 = scalar_lea.vmem [#allocation2], 24
        %359 = vst [vmem:[%s358 + $0x1] sm:$0xff] %v326
        %360 = vst [vmem:[%s358 + $0x9] sm:$0xff] %v327
        %361 = vst [vmem:[%s358 + $0x19] sm:$0xff] %v328
        %362 = vst [vmem:[%s358 + $0x21] sm:$0xff] %v329
        %363 = vst [vmem:[%s358 + $0x31] sm:$0xff] %v330
        %364 = vst [vmem:[%s358 + $0x39] sm:$0xff] %v331
        %365 = vst [vmem:[%s358 + $0x49] sm:$0xff] %v332
        %366 = vst [vmem:[%s358 + $0x51] sm:$0xff] %v333
        %367 = vst [vmem:[%s358 + $0x61] sm:$0xff] %v334
        %368 = vst [vmem:[%s358 + $0x69] sm:$0xff] %v335
        %369 = vst [vmem:[%s358 + $0x79] sm:$0xff] %v336
        %370 = vst [vmem:[%s358 + $0x81] sm:$0xff] %v337
        %371 = vst [vmem:[%s358 + $0x91] sm:$0xff] %v338
        %372 = vst [vmem:[%s358 + $0x99] sm:$0xff] %v339
        %373 = vst [vmem:[%s358 + $0xa9] sm:$0xff] %v340
        %374 = vst [vmem:[%s358 + $0xb1] sm:$0xff] %v341
        %375 = vst [vmem:[%s358 + $0xc1] sm:$0xff] %v342
        %376 = vst [vmem:[%s358 + $0xc9] sm:$0xff] %v343
        %377 = vst [vmem:[%s358 + $0xd9] sm:$0xff] %v344
        %378 = vst [vmem:[%s358 + $0xe1] sm:$0xff] %v345
        %379 = vst [vmem:[%s358 + $0xf1] sm:$0xff] %v346
        %380 = vst [vmem:[%s358 + $0xf9] sm:$0xff] %v347
        %381 = vst [vmem:[%s358 + $0x109] sm:$0xff] %v348
        %382 = vst [vmem:[%s358 + $0x111] sm:$0xff] %v349
        %383 = vst [vmem:[%s358 + $0x121] sm:$0xff] %v350
        %384 = vst [vmem:[%s358 + $0x129] sm:$0xff] %v351
        %385 = vst [vmem:[%s358 + $0x139] sm:$0xff] %v352
        %386 = vst [vmem:[%s358 + $0x141] sm:$0xff] %v353
        %387 = vst [vmem:[%s358 + $0x151] sm:$0xff] %v354
        %388 = vst [vmem:[%s358 + $0x159] sm:$0xff] %v355
        %389 = vst [vmem:[%s358 + $0x169] sm:$0xff] %v356
        %390 = vst [vmem:[%s358 + $0x171] sm:$0xff] %v357
        %v391 = vld [vmem:[%s4] sm:$0x1]
        %v392 = vld [vmem:[%s4 + $0x1] sm:$0x1]
        %v393 = vld [vmem:[%s4 + $0x2] sm:$0x1]
        %v394 = vld [vmem:[%s4 + $0x3] sm:$0x1]
        %v395 = vld [vmem:[%s4 + $0x4] sm:$0x1]
        %v396 = vld [vmem:[%s4 + $0x5] sm:$0x1]
        %v397 = vld [vmem:[%s4 + $0x6] sm:$0x1]
        %v398 = vld [vmem:[%s4 + $0x7] sm:$0x1]
        %v399 = vld [vmem:[%s4 + $0x8] sm:$0x1]
        %v400 = vld [vmem:[#allocation2] sm:$0xff]
        %v401 = vld [vmem:[#allocation2 + $0x8] sm:$0xff]
        %v402 = vlaneseq
        %v403 = vshrl.u32 %v402, 7
        %v404 = vsub.s32 0, %v403
        %v405 = vrot.slane %v391, %v404
        %v406 = vmul.f32 %v400, %v405
        %v407 = vmul.f32 %v401, %v405
        %v408 = vadd.f32 %v406, 0.0
        %v409 = vadd.f32 %v407, 0.0
        %v410 = vld [vmem:[#allocation2 + $0x1] sm:$0xff]
        %v411 = vld [vmem:[#allocation2 + $0x9] sm:$0xff]
        %v412 = vlaneseq
        %v413 = vshrl.u32 %v412, 7
        %v414 = vsub.s32 0, %v413
        %v415 = vrot.slane %v392, %v414
        %v416 = vmul.f32 %v410, %v415
        %v417 = vmul.f32 %v411, %v415
        %v418 = vadd.f32 %v408, %v416
        %v419 = vadd.f32 %v409, %v417
        %v420 = vld [vmem:[#allocation2 + $0x2] sm:$0xff]
        %v421 = vld [vmem:[#allocation2 + $0xa] sm:$0xff]
        %v422 = vlaneseq
        %v423 = vshrl.u32 %v422, 7
        %v424 = vsub.s32 0, %v423
        %v425 = vrot.slane %v393, %v424
        %v426 = vmul.f32 %v420, %v425
        %v427 = vmul.f32 %v421, %v425
        %v428 = vadd.f32 %v418, %v426
        %v429 = vadd.f32 %v419, %v427
        %v430 = vld [vmem:[%s358] sm:$0xff]
        %v431 = vld [vmem:[%s358 + $0x8] sm:$0xff]
        %v432 = vlaneseq
        %v433 = vshrl.u32 %v432, 7
        %v434 = vsub.s32 0, %v433
        %v435 = vrot.slane %v394, %v434
        %v436 = vmul.f32 %v430, %v435
        %v437 = vmul.f32 %v431, %v435
        %v438 = vadd.f32 %v428, %v436
        %v439 = vadd.f32 %v429, %v437
        %v440 = vld [vmem:[%s358 + $0x1] sm:$0xff]
        %v441 = vld [vmem:[%s358 + $0x9] sm:$0xff]
        %v442 = vlaneseq
        %v443 = vshrl.u32 %v442, 7
        %v444 = vsub.s32 0, %v443
        %v445 = vrot.slane %v395, %v444
        %v446 = vmul.f32 %v440, %v445
        %v447 = vmul.f32 %v441, %v445
        %v448 = vadd.f32 %v438, %v446
        %v449 = vadd.f32 %v439, %v447
        %v450 = vld [vmem:[%s358 + $0x2] sm:$0xff]
        %v451 = vld [vmem:[%s358 + $0xa] sm:$0xff]
        %v452 = vlaneseq
        %v453 = vshrl.u32 %v452, 7
        %v454 = vsub.s32 0, %v453
        %v455 = vrot.slane %v396, %v454
        %v456 = vmul.f32 %v450, %v455
        %v457 = vmul.f32 %v451, %v455
        %v458 = vadd.f32 %v448, %v456
        %v459 = vadd.f32 %v449, %v457
        %s460 = scalar_lea.vmem [#allocation2], 48
        %v461 = vld [vmem:[%s460] sm:$0xff]
        %v462 = vld [vmem:[%s460 + $0x8] sm:$0xff]
        %v463 = vlaneseq
        %v464 = vshrl.u32 %v463, 7
        %v465 = vsub.s32 0, %v464
        %v466 = vrot.slane %v397, %v465
        %v467 = vmul.f32 %v461, %v466
        %v468 = vmul.f32 %v462, %v466
        %v469 = vadd.f32 %v458, %v467
        %v470 = vadd.f32 %v459, %v468
        %v471 = vld [vmem:[%s460 + $0x1] sm:$0xff]
        %v472 = vld [vmem:[%s460 + $0x9] sm:$0xff]
        %v473 = vlaneseq
        %v474 = vshrl.u32 %v473, 7
        %v475 = vsub.s32 0, %v474
        %v476 = vrot.slane %v398, %v475
        %v477 = vmul.f32 %v471, %v476
        %v478 = vmul.f32 %v472, %v476
        %v479 = vadd.f32 %v469, %v477
        %v480 = vadd.f32 %v470, %v478
        %v481 = vld [vmem:[%s460 + $0x2] sm:$0xff]
        %v482 = vld [vmem:[%s460 + $0xa] sm:$0xff]
        %v483 = vlaneseq
        %v484 = vshrl.u32 %v483, 7
        %v485 = vsub.s32 0, %v484
        %v486 = vrot.slane %v399, %v485
        %v487 = vmul.f32 %v481, %v486
        %v488 = vmul.f32 %v482, %v486
        %v489 = vadd.f32 %v479, %v487
        %v490 = vadd.f32 %v480, %v488
        %v491 = vpack.c.bf16 %v490, %v489
        %v493 = vunpack.c.l.b16 %v491
        %v494 = vunpack.c.h.b16 %v491
        %v495 = vpack.c.b16 %v493, %v493
        %v496 = vpack.c.b16 %v494, %v494
        %499 = vst [vmem:[#allocation3] sm:$0xf] %v495
        %500 = vst [vmem:[#allocation3 + $0x4] sm:$0xf] %v496
        %v501 = vld [vmem:[%s358] sm:$0xff]
        %v502 = vld [vmem:[%s358 + $0x8] sm:$0xff]
        %v503 = vmul.f32 %v501, %v405
        %v504 = vmul.f32 %v502, %v405
        %v505 = vadd.f32 %v503, 0.0
        %v506 = vadd.f32 %v504, 0.0
        %v507 = vld [vmem:[%s358 + $0x1] sm:$0xff]
        %v508 = vld [vmem:[%s358 + $0x9] sm:$0xff]
        %v509 = vmul.f32 %v507, %v415
        %v510 = vmul.f32 %v508, %v415
        %v511 = vadd.f32 %v505, %v509
        %v512 = vadd.f32 %v506, %v510
        %v513 = vld [vmem:[%s358 + $0x2] sm:$0xff]
        %v514 = vld [vmem:[%s358 + $0xa] sm:$0xff]
        %v515 = vmul.f32 %v513, %v425
        %v516 = vmul.f32 %v514, %v425
        %v517 = vadd.f32 %v511, %v515
        %v518 = vadd.f32 %v512, %v516
        %v519 = vld [vmem:[%s460] sm:$0xff]
        %v520 = vld [vmem:[%s460 + $0x8] sm:$0xff]
        %v521 = vmul.f32 %v519, %v435
        %v522 = vmul.f32 %v520, %v435
        %v523 = vadd.f32 %v517, %v521
        %v524 = vadd.f32 %v518, %v522
        %v525 = vld [vmem:[%s460 + $0x1] sm:$0xff]
        %v526 = vld [vmem:[%s460 + $0x9] sm:$0xff]
        %v527 = vmul.f32 %v525, %v445
        %v528 = vmul.f32 %v526, %v445
        %v529 = vadd.f32 %v523, %v527
        %v530 = vadd.f32 %v524, %v528
        %v531 = vld [vmem:[%s460 + $0x2] sm:$0xff]
        %v532 = vld [vmem:[%s460 + $0xa] sm:$0xff]
        %v533 = vmul.f32 %v531, %v455
        %v534 = vmul.f32 %v532, %v455
        %v535 = vadd.f32 %v529, %v533
        %v536 = vadd.f32 %v530, %v534
        %s537 = scalar_lea.vmem [#allocation2], 72
        %v538 = vld [vmem:[%s537] sm:$0xff]
        %v539 = vld [vmem:[%s537 + $0x8] sm:$0xff]
        %v540 = vmul.f32 %v538, %v466
        %v541 = vmul.f32 %v539, %v466
        %v542 = vadd.f32 %v535, %v540
        %v543 = vadd.f32 %v536, %v541
        %v544 = vld [vmem:[%s537 + $0x1] sm:$0xff]
        %v545 = vld [vmem:[%s537 + $0x9] sm:$0xff]
        %v546 = vmul.f32 %v544, %v476
        %v547 = vmul.f32 %v545, %v476
        %v548 = vadd.f32 %v542, %v546
        %v549 = vadd.f32 %v543, %v547
        %v550 = vld [vmem:[%s537 + $0x2] sm:$0xff]
        %v551 = vld [vmem:[%s537 + $0xa] sm:$0xff]
        %v552 = vmul.f32 %v550, %v486
        %v553 = vmul.f32 %v551, %v486
        %v554 = vadd.f32 %v548, %v552
        %v555 = vadd.f32 %v549, %v553
        %v556 = vpack.c.bf16 %v555, %v554
        %v558 = vunpack.c.l.b16 %v556
        %v559 = vunpack.c.h.b16 %v556
        %v560 = vpack.c.b16 %v558, %v558
        %v561 = vpack.c.b16 %v559, %v559
        %564 = vst [vmem:[#allocation3 + $0x8] sm:$0xf] %v560
        %565 = vst [vmem:[#allocation3 + $0xc] sm:$0xf] %v561
        %v566 = vld [vmem:[%s460] sm:$0xff]
        %v567 = vld [vmem:[%s460 + $0x8] sm:$0xff]
        %v568 = vmul.f32 %v566, %v405
        %v569 = vmul.f32 %v567, %v405
        %v570 = vadd.f32 %v568, 0.0
        %v571 = vadd.f32 %v569, 0.0
        %v572 = vld [vmem:[%s460 + $0x1] sm:$0xff]
        %v573 = vld [vmem:[%s460 + $0x9] sm:$0xff]
        %v574 = vmul.f32 %v572, %v415
        %v575 = vmul.f32 %v573, %v415
        %v576 = vadd.f32 %v570, %v574
        %v577 = vadd.f32 %v571, %v575
        %v578 = vld [vmem:[%s460 + $0x2] sm:$0xff]
        %v579 = vld [vmem:[%s460 + $0xa] sm:$0xff]
        %v580 = vmul.f32 %v578, %v425
        %v581 = vmul.f32 %v579, %v425
        %v582 = vadd.f32 %v576, %v580
        %v583 = vadd.f32 %v577, %v581
        %v584 = vld [vmem:[%s537] sm:$0xff]
        %v585 = vld [vmem:[%s537 + $0x8] sm:$0xff]
        %v586 = vmul.f32 %v584, %v435
        %v587 = vmul.f32 %v585, %v435
        %v588 = vadd.f32 %v582, %v586
        %v589 = vadd.f32 %v583, %v587
        %v590 = vld [vmem:[%s537 + $0x1] sm:$0xff]
        %v591 = vld [vmem:[%s537 + $0x9] sm:$0xff]
        %v592 = vmul.f32 %v590, %v445
        %v593 = vmul.f32 %v591, %v445
        %v594 = vadd.f32 %v588, %v592
        %v595 = vadd.f32 %v589, %v593
        %v596 = vld [vmem:[%s537 + $0x2] sm:$0xff]
        %v597 = vld [vmem:[%s537 + $0xa] sm:$0xff]
        %v598 = vmul.f32 %v596, %v455
        %v599 = vmul.f32 %v597, %v455
        %v600 = vadd.f32 %v594, %v598
        %v601 = vadd.f32 %v595, %v599
        %s602 = scalar_lea.vmem [#allocation2], 96
        %v603 = vld [vmem:[%s602] sm:$0xff]
        %v604 = vld [vmem:[%s602 + $0x8] sm:$0xff]
        %v605 = vmul.f32 %v603, %v466
        %v606 = vmul.f32 %v604, %v466
        %v607 = vadd.f32 %v600, %v605
        %v608 = vadd.f32 %v601, %v606
        %v609 = vld [vmem:[%s602 + $0x1] sm:$0xff]
        %v610 = vld [vmem:[%s602 + $0x9] sm:$0xff]
        %v611 = vmul.f32 %v609, %v476
        %v612 = vmul.f32 %v610, %v476
        %v613 = vadd.f32 %v607, %v611
        %v614 = vadd.f32 %v608, %v612
        %v615 = vld [vmem:[%s602 + $0x2] sm:$0xff]
        %v616 = vld [vmem:[%s602 + $0xa] sm:$0xff]
        %v617 = vmul.f32 %v615, %v486
        %v618 = vmul.f32 %v616, %v486
        %v619 = vadd.f32 %v613, %v617
        %v620 = vadd.f32 %v614, %v618
        %v621 = vpack.c.bf16 %v620, %v619
        %v623 = vunpack.c.l.b16 %v621
        %v624 = vunpack.c.h.b16 %v621
        %v625 = vpack.c.b16 %v623, %v623
        %v626 = vpack.c.b16 %v624, %v624
        %629 = vst [vmem:[#allocation3 + $0x10] sm:$0xf] %v625
        %630 = vst [vmem:[#allocation3 + $0x14] sm:$0xf] %v626
        %v631 = vld [vmem:[%s537] sm:$0xff]
        %v632 = vld [vmem:[%s537 + $0x8] sm:$0xff]
        %v633 = vmul.f32 %v631, %v405
        %v634 = vmul.f32 %v632, %v405
        %v635 = vadd.f32 %v633, 0.0
        %v636 = vadd.f32 %v634, 0.0
        %v637 = vld [vmem:[%s537 + $0x1] sm:$0xff]
        %v638 = vld [vmem:[%s537 + $0x9] sm:$0xff]
        %v639 = vmul.f32 %v637, %v415
        %v640 = vmul.f32 %v638, %v415
        %v641 = vadd.f32 %v635, %v639
        %v642 = vadd.f32 %v636, %v640
        %v643 = vld [vmem:[%s537 + $0x2] sm:$0xff]
        %v644 = vld [vmem:[%s537 + $0xa] sm:$0xff]
        %v645 = vmul.f32 %v643, %v425
        %v646 = vmul.f32 %v644, %v425
        %v647 = vadd.f32 %v641, %v645
        %v648 = vadd.f32 %v642, %v646
        %v649 = vld [vmem:[%s602] sm:$0xff]
        %v650 = vld [vmem:[%s602 + $0x8] sm:$0xff]
        %v651 = vmul.f32 %v649, %v435
        %v652 = vmul.f32 %v650, %v435
        %v653 = vadd.f32 %v647, %v651
        %v654 = vadd.f32 %v648, %v652
        %v655 = vld [vmem:[%s602 + $0x1] sm:$0xff]
        %v656 = vld [vmem:[%s602 + $0x9] sm:$0xff]
        %v657 = vmul.f32 %v655, %v445
        %v658 = vmul.f32 %v656, %v445
        %v659 = vadd.f32 %v653, %v657
        %v660 = vadd.f32 %v654, %v658
        %v661 = vld [vmem:[%s602 + $0x2] sm:$0xff]
        %v662 = vld [vmem:[%s602 + $0xa] sm:$0xff]
        %v663 = vmul.f32 %v661, %v455
        %v664 = vmul.f32 %v662, %v455
        %v665 = vadd.f32 %v659, %v663
        %v666 = vadd.f32 %v660, %v664
        %s667 = scalar_lea.vmem [#allocation2], 120
        %v668 = vld [vmem:[%s667] sm:$0xff]
        %v669 = vld [vmem:[%s667 + $0x8] sm:$0xff]
        %v670 = vmul.f32 %v668, %v466
        %v671 = vmul.f32 %v669, %v466
        %v672 = vadd.f32 %v665, %v670
        %v673 = vadd.f32 %v666, %v671
        %v674 = vld [vmem:[%s667 + $0x1] sm:$0xff]
        %v675 = vld [vmem:[%s667 + $0x9] sm:$0xff]
        %v676 = vmul.f32 %v674, %v476
        %v677 = vmul.f32 %v675, %v476
        %v678 = vadd.f32 %v672, %v676
        %v679 = vadd.f32 %v673, %v677
        %v680 = vld [vmem:[%s667 + $0x2] sm:$0xff]
        %v681 = vld [vmem:[%s667 + $0xa] sm:$0xff]
        %v682 = vmul.f32 %v680, %v486
        %v683 = vmul.f32 %v681, %v486
        %v684 = vadd.f32 %v678, %v682
        %v685 = vadd.f32 %v679, %v683
        %v686 = vpack.c.bf16 %v685, %v684
        %v688 = vunpack.c.l.b16 %v686
        %v689 = vunpack.c.h.b16 %v686
        %v690 = vpack.c.b16 %v688, %v688
        %v691 = vpack.c.b16 %v689, %v689
        %694 = vst [vmem:[#allocation3 + $0x18] sm:$0xf] %v690
        %695 = vst [vmem:[#allocation3 + $0x1c] sm:$0xf] %v691
        %v696 = vld [vmem:[%s602] sm:$0xff]
        %v697 = vld [vmem:[%s602 + $0x8] sm:$0xff]
        %v698 = vmul.f32 %v696, %v405
        %v699 = vmul.f32 %v697, %v405
        %v700 = vadd.f32 %v698, 0.0
        %v701 = vadd.f32 %v699, 0.0
        %v702 = vld [vmem:[%s602 + $0x1] sm:$0xff]
        %v703 = vld [vmem:[%s602 + $0x9] sm:$0xff]
        %v704 = vmul.f32 %v702, %v415
        %v705 = vmul.f32 %v703, %v415
        %v706 = vadd.f32 %v700, %v704
        %v707 = vadd.f32 %v701, %v705
        %v708 = vld [vmem:[%s602 + $0x2] sm:$0xff]
        %v709 = vld [vmem:[%s602 + $0xa] sm:$0xff]
        %v710 = vmul.f32 %v708, %v425
        %v711 = vmul.f32 %v709, %v425
        %v712 = vadd.f32 %v706, %v710
        %v713 = vadd.f32 %v707, %v711
        %v714 = vld [vmem:[%s667] sm:$0xff]
        %v715 = vld [vmem:[%s667 + $0x8] sm:$0xff]
        %v716 = vmul.f32 %v714, %v435
        %v717 = vmul.f32 %v715, %v435
        %v718 = vadd.f32 %v712, %v716
        %v719 = vadd.f32 %v713, %v717
        %v720 = vld [vmem:[%s667 + $0x1] sm:$0xff]
        %v721 = vld [vmem:[%s667 + $0x9] sm:$0xff]
        %v722 = vmul.f32 %v720, %v445
        %v723 = vmul.f32 %v721, %v445
        %v724 = vadd.f32 %v718, %v722
        %v725 = vadd.f32 %v719, %v723
        %v726 = vld [vmem:[%s667 + $0x2] sm:$0xff]
        %v727 = vld [vmem:[%s667 + $0xa] sm:$0xff]
        %v728 = vmul.f32 %v726, %v455
        %v729 = vmul.f32 %v727, %v455
        %v730 = vadd.f32 %v724, %v728
        %v731 = vadd.f32 %v725, %v729
        %s732 = scalar_lea.vmem [#allocation2], 144
        %v733 = vld [vmem:[%s732] sm:$0xff]
        %v734 = vld [vmem:[%s732 + $0x8] sm:$0xff]
        %v735 = vmul.f32 %v733, %v466
        %v736 = vmul.f32 %v734, %v466
        %v737 = vadd.f32 %v730, %v735
        %v738 = vadd.f32 %v731, %v736
        %v739 = vld [vmem:[%s732 + $0x1] sm:$0xff]
        %v740 = vld [vmem:[%s732 + $0x9] sm:$0xff]
        %v741 = vmul.f32 %v739, %v476
        %v742 = vmul.f32 %v740, %v476
        %v743 = vadd.f32 %v737, %v741
        %v744 = vadd.f32 %v738, %v742
        %v745 = vld [vmem:[%s732 + $0x2] sm:$0xff]
        %v746 = vld [vmem:[%s732 + $0xa] sm:$0xff]
        %v747 = vmul.f32 %v745, %v486
        %v748 = vmul.f32 %v746, %v486
        %v749 = vadd.f32 %v743, %v747
        %v750 = vadd.f32 %v744, %v748
        %v751 = vpack.c.bf16 %v750, %v749
        %v753 = vunpack.c.l.b16 %v751
        %v754 = vunpack.c.h.b16 %v751
        %v755 = vpack.c.b16 %v753, %v753
        %v756 = vpack.c.b16 %v754, %v754
        %759 = vst [vmem:[#allocation3 + $0x20] sm:$0xf] %v755
        %760 = vst [vmem:[#allocation3 + $0x24] sm:$0xf] %v756
        %v761 = vld [vmem:[%s667] sm:$0xff]
        %v762 = vld [vmem:[%s667 + $0x8] sm:$0xff]
        %v763 = vmul.f32 %v761, %v405
        %v764 = vmul.f32 %v762, %v405
        %v765 = vadd.f32 %v763, 0.0
        %v766 = vadd.f32 %v764, 0.0
        %v767 = vld [vmem:[%s667 + $0x1] sm:$0xff]
        %v768 = vld [vmem:[%s667 + $0x9] sm:$0xff]
        %v769 = vmul.f32 %v767, %v415
        %v770 = vmul.f32 %v768, %v415
        %v771 = vadd.f32 %v765, %v769
        %v772 = vadd.f32 %v766, %v770
        %v773 = vld [vmem:[%s667 + $0x2] sm:$0xff]
        %v774 = vld [vmem:[%s667 + $0xa] sm:$0xff]
        %v775 = vmul.f32 %v773, %v425
        %v776 = vmul.f32 %v774, %v425
        %v777 = vadd.f32 %v771, %v775
        %v778 = vadd.f32 %v772, %v776
        %v779 = vld [vmem:[%s732] sm:$0xff]
        %v780 = vld [vmem:[%s732 + $0x8] sm:$0xff]
        %v781 = vmul.f32 %v779, %v435
        %v782 = vmul.f32 %v780, %v435
        %v783 = vadd.f32 %v777, %v781
        %v784 = vadd.f32 %v778, %v782
        %v785 = vld [vmem:[%s732 + $0x1] sm:$0xff]
        %v786 = vld [vmem:[%s732 + $0x9] sm:$0xff]
        %v787 = vmul.f32 %v785, %v445
        %v788 = vmul.f32 %v786, %v445
        %v789 = vadd.f32 %v783, %v787
        %v790 = vadd.f32 %v784, %v788
        %v791 = vld [vmem:[%s732 + $0x2] sm:$0xff]
        %v792 = vld [vmem:[%s732 + $0xa] sm:$0xff]
        %v793 = vmul.f32 %v791, %v455
        %v794 = vmul.f32 %v792, %v455
        %v795 = vadd.f32 %v789, %v793
        %v796 = vadd.f32 %v790, %v794
        %s797 = scalar_lea.vmem [#allocation2], 168
        %v798 = vld [vmem:[%s797] sm:$0xff]
        %v799 = vld [vmem:[%s797 + $0x8] sm:$0xff]
        %v800 = vmul.f32 %v798, %v466
        %v801 = vmul.f32 %v799, %v466
        %v802 = vadd.f32 %v795, %v800
        %v803 = vadd.f32 %v796, %v801
        %v804 = vld [vmem:[%s797 + $0x1] sm:$0xff]
        %v805 = vld [vmem:[%s797 + $0x9] sm:$0xff]
        %v806 = vmul.f32 %v804, %v476
        %v807 = vmul.f32 %v805, %v476
        %v808 = vadd.f32 %v802, %v806
        %v809 = vadd.f32 %v803, %v807
        %v810 = vld [vmem:[%s797 + $0x2] sm:$0xff]
        %v811 = vld [vmem:[%s797 + $0xa] sm:$0xff]
        %v812 = vmul.f32 %v810, %v486
        %v813 = vmul.f32 %v811, %v486
        %v814 = vadd.f32 %v808, %v812
        %v815 = vadd.f32 %v809, %v813
        %v816 = vpack.c.bf16 %v815, %v814
        %v818 = vunpack.c.l.b16 %v816
        %v819 = vunpack.c.h.b16 %v816
        %v820 = vpack.c.b16 %v818, %v818
        %v821 = vpack.c.b16 %v819, %v819
        %824 = vst [vmem:[#allocation3 + $0x28] sm:$0xf] %v820
        %825 = vst [vmem:[#allocation3 + $0x2c] sm:$0xf] %v821
        %v826 = vld [vmem:[%s732] sm:$0xff]
        %v827 = vld [vmem:[%s732 + $0x8] sm:$0xff]
        %v828 = vmul.f32 %v826, %v405
        %v829 = vmul.f32 %v827, %v405
        %v830 = vadd.f32 %v828, 0.0
        %v831 = vadd.f32 %v829, 0.0
        %v832 = vld [vmem:[%s732 + $0x1] sm:$0xff]
        %v833 = vld [vmem:[%s732 + $0x9] sm:$0xff]
        %v834 = vmul.f32 %v832, %v415
        %v835 = vmul.f32 %v833, %v415
        %v836 = vadd.f32 %v830, %v834
        %v837 = vadd.f32 %v831, %v835
        %v838 = vld [vmem:[%s732 + $0x2] sm:$0xff]
        %v839 = vld [vmem:[%s732 + $0xa] sm:$0xff]
        %v840 = vmul.f32 %v838, %v425
        %v841 = vmul.f32 %v839, %v425
        %v842 = vadd.f32 %v836, %v840
        %v843 = vadd.f32 %v837, %v841
        %v844 = vld [vmem:[%s797] sm:$0xff]
        %v845 = vld [vmem:[%s797 + $0x8] sm:$0xff]
        %v846 = vmul.f32 %v844, %v435
        %v847 = vmul.f32 %v845, %v435
        %v848 = vadd.f32 %v842, %v846
        %v849 = vadd.f32 %v843, %v847
        %v850 = vld [vmem:[%s797 + $0x1] sm:$0xff]
        %v851 = vld [vmem:[%s797 + $0x9] sm:$0xff]
        %v852 = vmul.f32 %v850, %v445
        %v853 = vmul.f32 %v851, %v445
        %v854 = vadd.f32 %v848, %v852
        %v855 = vadd.f32 %v849, %v853
        %v856 = vld [vmem:[%s797 + $0x2] sm:$0xff]
        %v857 = vld [vmem:[%s797 + $0xa] sm:$0xff]
        %v858 = vmul.f32 %v856, %v455
        %v859 = vmul.f32 %v857, %v455
        %v860 = vadd.f32 %v854, %v858
        %v861 = vadd.f32 %v855, %v859
        %s862 = scalar_lea.vmem [#allocation2], 192
        %v863 = vld [vmem:[%s862] sm:$0xff]
        %v864 = vld [vmem:[%s862 + $0x8] sm:$0xff]
        %v865 = vmul.f32 %v863, %v466
        %v866 = vmul.f32 %v864, %v466
        %v867 = vadd.f32 %v860, %v865
        %v868 = vadd.f32 %v861, %v866
        %v869 = vld [vmem:[%s862 + $0x1] sm:$0xff]
        %v870 = vld [vmem:[%s862 + $0x9] sm:$0xff]
        %v871 = vmul.f32 %v869, %v476
        %v872 = vmul.f32 %v870, %v476
        %v873 = vadd.f32 %v867, %v871
        %v874 = vadd.f32 %v868, %v872
        %v875 = vld [vmem:[%s862 + $0x2] sm:$0xff]
        %v876 = vld [vmem:[%s862 + $0xa] sm:$0xff]
        %v877 = vmul.f32 %v875, %v486
        %v878 = vmul.f32 %v876, %v486
        %v879 = vadd.f32 %v873, %v877
        %v880 = vadd.f32 %v874, %v878
        %v881 = vpack.c.bf16 %v880, %v879
        %v883 = vunpack.c.l.b16 %v881
        %v884 = vunpack.c.h.b16 %v881
        %v885 = vpack.c.b16 %v883, %v883
        %v886 = vpack.c.b16 %v884, %v884
        %889 = vst [vmem:[#allocation3 + $0x30] sm:$0xf] %v885
        %890 = vst [vmem:[#allocation3 + $0x34] sm:$0xf] %v886
        %v891 = vld [vmem:[%s797] sm:$0xff]
        %v892 = vld [vmem:[%s797 + $0x8] sm:$0xff]
        %v893 = vmul.f32 %v891, %v405
        %v894 = vmul.f32 %v892, %v405
        %v895 = vadd.f32 %v893, 0.0
        %v896 = vadd.f32 %v894, 0.0
        %v897 = vld [vmem:[%s797 + $0x1] sm:$0xff]
        %v898 = vld [vmem:[%s797 + $0x9] sm:$0xff]
        %v899 = vmul.f32 %v897, %v415
        %v900 = vmul.f32 %v898, %v415
        %v901 = vadd.f32 %v895, %v899
        %v902 = vadd.f32 %v896, %v900
        %v903 = vld [vmem:[%s797 + $0x2] sm:$0xff]
        %v904 = vld [vmem:[%s797 + $0xa] sm:$0xff]
        %v905 = vmul.f32 %v903, %v425
        %v906 = vmul.f32 %v904, %v425
        %v907 = vadd.f32 %v901, %v905
        %v908 = vadd.f32 %v902, %v906
        %v909 = vld [vmem:[%s862] sm:$0xff]
        %v910 = vld [vmem:[%s862 + $0x8] sm:$0xff]
        %v911 = vmul.f32 %v909, %v435
        %v912 = vmul.f32 %v910, %v435
        %v913 = vadd.f32 %v907, %v911
        %v914 = vadd.f32 %v908, %v912
        %v915 = vld [vmem:[%s862 + $0x1] sm:$0xff]
        %v916 = vld [vmem:[%s862 + $0x9] sm:$0xff]
        %v917 = vmul.f32 %v915, %v445
        %v918 = vmul.f32 %v916, %v445
        %v919 = vadd.f32 %v913, %v917
        %v920 = vadd.f32 %v914, %v918
        %v921 = vld [vmem:[%s862 + $0x2] sm:$0xff]
        %v922 = vld [vmem:[%s862 + $0xa] sm:$0xff]
        %v923 = vmul.f32 %v921, %v455
        %v924 = vmul.f32 %v922, %v455
        %v925 = vadd.f32 %v919, %v923
        %v926 = vadd.f32 %v920, %v924
        %s927 = scalar_lea.vmem [#allocation2], 216
        %v928 = vld [vmem:[%s927] sm:$0xff]
        %v929 = vld [vmem:[%s927 + $0x8] sm:$0xff]
        %v930 = vmul.f32 %v928, %v466
        %v931 = vmul.f32 %v929, %v466
        %v932 = vadd.f32 %v925, %v930
        %v933 = vadd.f32 %v926, %v931
        %v934 = vld [vmem:[%s927 + $0x1] sm:$0xff]
        %v935 = vld [vmem:[%s927 + $0x9] sm:$0xff]
        %v936 = vmul.f32 %v934, %v476
        %v937 = vmul.f32 %v935, %v476
        %v938 = vadd.f32 %v932, %v936
        %v939 = vadd.f32 %v933, %v937
        %v940 = vld [vmem:[%s927 + $0x2] sm:$0xff]
        %v941 = vld [vmem:[%s927 + $0xa] sm:$0xff]
        %v942 = vmul.f32 %v940, %v486
        %v943 = vmul.f32 %v941, %v486
        %v944 = vadd.f32 %v938, %v942
        %v945 = vadd.f32 %v939, %v943
        %v946 = vpack.c.bf16 %v945, %v944
        %v948 = vunpack.c.l.b16 %v946
        %v949 = vunpack.c.h.b16 %v946
        %v950 = vpack.c.b16 %v948, %v948
        %v951 = vpack.c.b16 %v949, %v949
        %954 = vst [vmem:[#allocation3 + $0x38] sm:$0xf] %v950
        %955 = vst [vmem:[#allocation3 + $0x3c] sm:$0xf] %v951
        %v956 = vld [vmem:[%s862] sm:$0xff]
        %v957 = vld [vmem:[%s862 + $0x8] sm:$0xff]
        %v958 = vmul.f32 %v956, %v405
        %v959 = vmul.f32 %v957, %v405
        %v960 = vadd.f32 %v958, 0.0
        %v961 = vadd.f32 %v959, 0.0
        %v962 = vld [vmem:[%s862 + $0x1] sm:$0xff]
        %v963 = vld [vmem:[%s862 + $0x9] sm:$0xff]
        %v964 = vmul.f32 %v962, %v415
        %v965 = vmul.f32 %v963, %v415
        %v966 = vadd.f32 %v960, %v964
        %v967 = vadd.f32 %v961, %v965
        %v968 = vld [vmem:[%s862 + $0x2] sm:$0xff]
        %v969 = vld [vmem:[%s862 + $0xa] sm:$0xff]
        %v970 = vmul.f32 %v968, %v425
        %v971 = vmul.f32 %v969, %v425
        %v972 = vadd.f32 %v966, %v970
        %v973 = vadd.f32 %v967, %v971
        %v974 = vld [vmem:[%s927] sm:$0xff]
        %v975 = vld [vmem:[%s927 + $0x8] sm:$0xff]
        %v976 = vmul.f32 %v974, %v435
        %v977 = vmul.f32 %v975, %v435
        %v978 = vadd.f32 %v972, %v976
        %v979 = vadd.f32 %v973, %v977
        %v980 = vld [vmem:[%s927 + $0x1] sm:$0xff]
        %v981 = vld [vmem:[%s927 + $0x9] sm:$0xff]
        %v982 = vmul.f32 %v980, %v445
        %v983 = vmul.f32 %v981, %v445
        %v984 = vadd.f32 %v978, %v982
        %v985 = vadd.f32 %v979, %v983
        %v986 = vld [vmem:[%s927 + $0x2] sm:$0xff]
        %v987 = vld [vmem:[%s927 + $0xa] sm:$0xff]
        %v988 = vmul.f32 %v986, %v455
        %v989 = vmul.f32 %v987, %v455
        %v990 = vadd.f32 %v984, %v988
        %v991 = vadd.f32 %v985, %v989
        %s992 = scalar_lea.vmem [#allocation2], 240
        %v993 = vld [vmem:[%s992] sm:$0xff]
        %v994 = vld [vmem:[%s992 + $0x8] sm:$0xff]
        %v995 = vmul.f32 %v993, %v466
        %v996 = vmul.f32 %v994, %v466
        %v997 = vadd.f32 %v990, %v995
        %v998 = vadd.f32 %v991, %v996
        %v999 = vld [vmem:[%s992 + $0x1] sm:$0xff]
        %v1000 = vld [vmem:[%s992 + $0x9] sm:$0xff]
        %v1001 = vmul.f32 %v999, %v476
        %v1002 = vmul.f32 %v1000, %v476
        %v1003 = vadd.f32 %v997, %v1001
        %v1004 = vadd.f32 %v998, %v1002
        %v1005 = vld [vmem:[%s992 + $0x2] sm:$0xff]
        %v1006 = vld [vmem:[%s992 + $0xa] sm:$0xff]
        %v1007 = vmul.f32 %v1005, %v486
        %v1008 = vmul.f32 %v1006, %v486
        %v1009 = vadd.f32 %v1003, %v1007
        %v1010 = vadd.f32 %v1004, %v1008
        %v1011 = vpack.c.bf16 %v1010, %v1009
        %v1013 = vunpack.c.l.b16 %v1011
        %v1014 = vunpack.c.h.b16 %v1011
        %v1015 = vpack.c.b16 %v1013, %v1013
        %v1016 = vpack.c.b16 %v1014, %v1014
        %1019 = vst [vmem:[#allocation3 + $0x40] sm:$0xf] %v1015
        %1020 = vst [vmem:[#allocation3 + $0x44] sm:$0xf] %v1016
        %v1021 = vld [vmem:[%s927] sm:$0xff]
        %v1022 = vld [vmem:[%s927 + $0x8] sm:$0xff]
        %v1023 = vmul.f32 %v1021, %v405
        %v1024 = vmul.f32 %v1022, %v405
        %v1025 = vadd.f32 %v1023, 0.0
        %v1026 = vadd.f32 %v1024, 0.0
        %v1027 = vld [vmem:[%s927 + $0x1] sm:$0xff]
        %v1028 = vld [vmem:[%s927 + $0x9] sm:$0xff]
        %v1029 = vmul.f32 %v1027, %v415
        %v1030 = vmul.f32 %v1028, %v415
        %v1031 = vadd.f32 %v1025, %v1029
        %v1032 = vadd.f32 %v1026, %v1030
        %v1033 = vld [vmem:[%s927 + $0x2] sm:$0xff]
        %v1034 = vld [vmem:[%s927 + $0xa] sm:$0xff]
        %v1035 = vmul.f32 %v1033, %v425
        %v1036 = vmul.f32 %v1034, %v425
        %v1037 = vadd.f32 %v1031, %v1035
        %v1038 = vadd.f32 %v1032, %v1036
        %v1039 = vld [vmem:[%s992] sm:$0xff]
        %v1040 = vld [vmem:[%s992 + $0x8] sm:$0xff]
        %v1041 = vmul.f32 %v1039, %v435
        %v1042 = vmul.f32 %v1040, %v435
        %v1043 = vadd.f32 %v1037, %v1041
        %v1044 = vadd.f32 %v1038, %v1042
        %v1045 = vld [vmem:[%s992 + $0x1] sm:$0xff]
        %v1046 = vld [vmem:[%s992 + $0x9] sm:$0xff]
        %v1047 = vmul.f32 %v1045, %v445
        %v1048 = vmul.f32 %v1046, %v445
        %v1049 = vadd.f32 %v1043, %v1047
        %v1050 = vadd.f32 %v1044, %v1048
        %v1051 = vld [vmem:[%s992 + $0x2] sm:$0xff]
        %v1052 = vld [vmem:[%s992 + $0xa] sm:$0xff]
        %v1053 = vmul.f32 %v1051, %v455
        %v1054 = vmul.f32 %v1052, %v455
        %v1055 = vadd.f32 %v1049, %v1053
        %v1056 = vadd.f32 %v1050, %v1054
        %s1057 = scalar_lea.vmem [#allocation2], 264
        %v1058 = vld [vmem:[%s1057] sm:$0xff]
        %v1059 = vld [vmem:[%s1057 + $0x8] sm:$0xff]
        %v1060 = vmul.f32 %v1058, %v466
        %v1061 = vmul.f32 %v1059, %v466
        %v1062 = vadd.f32 %v1055, %v1060
        %v1063 = vadd.f32 %v1056, %v1061
        %v1064 = vld [vmem:[%s1057 + $0x1] sm:$0xff]
        %v1065 = vld [vmem:[%s1057 + $0x9] sm:$0xff]
        %v1066 = vmul.f32 %v1064, %v476
        %v1067 = vmul.f32 %v1065, %v476
        %v1068 = vadd.f32 %v1062, %v1066
        %v1069 = vadd.f32 %v1063, %v1067
        %v1070 = vld [vmem:[%s1057 + $0x2] sm:$0xff]
        %v1071 = vld [vmem:[%s1057 + $0xa] sm:$0xff]
        %v1072 = vmul.f32 %v1070, %v486
        %v1073 = vmul.f32 %v1071, %v486
        %v1074 = vadd.f32 %v1068, %v1072
        %v1075 = vadd.f32 %v1069, %v1073
        %v1076 = vpack.c.bf16 %v1075, %v1074
        %v1078 = vunpack.c.l.b16 %v1076
        %v1079 = vunpack.c.h.b16 %v1076
        %v1080 = vpack.c.b16 %v1078, %v1078
        %v1081 = vpack.c.b16 %v1079, %v1079
        %1084 = vst [vmem:[#allocation3 + $0x48] sm:$0xf] %v1080
        %1085 = vst [vmem:[#allocation3 + $0x4c] sm:$0xf] %v1081
        %v1086 = vld [vmem:[%s992] sm:$0xff]
        %v1087 = vld [vmem:[%s992 + $0x8] sm:$0xff]
        %v1088 = vmul.f32 %v1086, %v405
        %v1089 = vmul.f32 %v1087, %v405
        %v1090 = vadd.f32 %v1088, 0.0
        %v1091 = vadd.f32 %v1089, 0.0
        %v1092 = vld [vmem:[%s992 + $0x1] sm:$0xff]
        %v1093 = vld [vmem:[%s992 + $0x9] sm:$0xff]
        %v1094 = vmul.f32 %v1092, %v415
        %v1095 = vmul.f32 %v1093, %v415
        %v1096 = vadd.f32 %v1090, %v1094
        %v1097 = vadd.f32 %v1091, %v1095
        %v1098 = vld [vmem:[%s992 + $0x2] sm:$0xff]
        %v1099 = vld [vmem:[%s992 + $0xa] sm:$0xff]
        %v1100 = vmul.f32 %v1098, %v425
        %v1101 = vmul.f32 %v1099, %v425
        %v1102 = vadd.f32 %v1096, %v1100
        %v1103 = vadd.f32 %v1097, %v1101
        %v1104 = vld [vmem:[%s1057] sm:$0xff]
        %v1105 = vld [vmem:[%s1057 + $0x8] sm:$0xff]
        %v1106 = vmul.f32 %v1104, %v435
        %v1107 = vmul.f32 %v1105, %v435
        %v1108 = vadd.f32 %v1102, %v1106
        %v1109 = vadd.f32 %v1103, %v1107
        %v1110 = vld [vmem:[%s1057 + $0x1] sm:$0xff]
        %v1111 = vld [vmem:[%s1057 + $0x9] sm:$0xff]
        %v1112 = vmul.f32 %v1110, %v445
        %v1113 = vmul.f32 %v1111, %v445
        %v1114 = vadd.f32 %v1108, %v1112
        %v1115 = vadd.f32 %v1109, %v1113
        %v1116 = vld [vmem:[%s1057 + $0x2] sm:$0xff]
        %v1117 = vld [vmem:[%s1057 + $0xa] sm:$0xff]
        %v1118 = vmul.f32 %v1116, %v455
        %v1119 = vmul.f32 %v1117, %v455
        %v1120 = vadd.f32 %v1114, %v1118
        %v1121 = vadd.f32 %v1115, %v1119
        %s1122 = scalar_lea.vmem [#allocation2], 288
        %v1123 = vld [vmem:[%s1122] sm:$0xff]
        %v1124 = vld [vmem:[%s1122 + $0x8] sm:$0xff]
        %v1125 = vmul.f32 %v1123, %v466
        %v1126 = vmul.f32 %v1124, %v466
        %v1127 = vadd.f32 %v1120, %v1125
        %v1128 = vadd.f32 %v1121, %v1126
        %v1129 = vld [vmem:[%s1122 + $0x1] sm:$0xff]
        %v1130 = vld [vmem:[%s1122 + $0x9] sm:$0xff]
        %v1131 = vmul.f32 %v1129, %v476
        %v1132 = vmul.f32 %v1130, %v476
        %v1133 = vadd.f32 %v1127, %v1131
        %v1134 = vadd.f32 %v1128, %v1132
        %v1135 = vld [vmem:[%s1122 + $0x2] sm:$0xff]
        %v1136 = vld [vmem:[%s1122 + $0xa] sm:$0xff]
        %v1137 = vmul.f32 %v1135, %v486
        %v1138 = vmul.f32 %v1136, %v486
        %v1139 = vadd.f32 %v1133, %v1137
        %v1140 = vadd.f32 %v1134, %v1138
        %v1141 = vpack.c.bf16 %v1140, %v1139
        %v1143 = vunpack.c.l.b16 %v1141
        %v1144 = vunpack.c.h.b16 %v1141
        %v1145 = vpack.c.b16 %v1143, %v1143
        %v1146 = vpack.c.b16 %v1144, %v1144
        %1149 = vst [vmem:[#allocation3 + $0x50] sm:$0xf] %v1145
        %1150 = vst [vmem:[#allocation3 + $0x54] sm:$0xf] %v1146
        %v1151 = vld [vmem:[%s1057] sm:$0xff]
        %v1152 = vld [vmem:[%s1057 + $0x8] sm:$0xff]
        %v1153 = vmul.f32 %v1151, %v405
        %v1154 = vmul.f32 %v1152, %v405
        %v1155 = vadd.f32 %v1153, 0.0
        %v1156 = vadd.f32 %v1154, 0.0
        %v1157 = vld [vmem:[%s1057 + $0x1] sm:$0xff]
        %v1158 = vld [vmem:[%s1057 + $0x9] sm:$0xff]
        %v1159 = vmul.f32 %v1157, %v415
        %v1160 = vmul.f32 %v1158, %v415
        %v1161 = vadd.f32 %v1155, %v1159
        %v1162 = vadd.f32 %v1156, %v1160
        %v1163 = vld [vmem:[%s1057 + $0x2] sm:$0xff]
        %v1164 = vld [vmem:[%s1057 + $0xa] sm:$0xff]
        %v1165 = vmul.f32 %v1163, %v425
        %v1166 = vmul.f32 %v1164, %v425
        %v1167 = vadd.f32 %v1161, %v1165
        %v1168 = vadd.f32 %v1162, %v1166
        %v1169 = vld [vmem:[%s1122] sm:$0xff]
        %v1170 = vld [vmem:[%s1122 + $0x8] sm:$0xff]
        %v1171 = vmul.f32 %v1169, %v435
        %v1172 = vmul.f32 %v1170, %v435
        %v1173 = vadd.f32 %v1167, %v1171
        %v1174 = vadd.f32 %v1168, %v1172
        %v1175 = vld [vmem:[%s1122 + $0x1] sm:$0xff]
        %v1176 = vld [vmem:[%s1122 + $0x9] sm:$0xff]
        %v1177 = vmul.f32 %v1175, %v445
        %v1178 = vmul.f32 %v1176, %v445
        %v1179 = vadd.f32 %v1173, %v1177
        %v1180 = vadd.f32 %v1174, %v1178
        %v1181 = vld [vmem:[%s1122 + $0x2] sm:$0xff]
        %v1182 = vld [vmem:[%s1122 + $0xa] sm:$0xff]
        %v1183 = vmul.f32 %v1181, %v455
        %v1184 = vmul.f32 %v1182, %v455
        %v1185 = vadd.f32 %v1179, %v1183
        %v1186 = vadd.f32 %v1180, %v1184
        %s1187 = scalar_lea.vmem [#allocation2], 312
        %v1188 = vld [vmem:[%s1187] sm:$0xff]
        %v1189 = vld [vmem:[%s1187 + $0x8] sm:$0xff]
        %v1190 = vmul.f32 %v1188, %v466
        %v1191 = vmul.f32 %v1189, %v466
        %v1192 = vadd.f32 %v1185, %v1190
        %v1193 = vadd.f32 %v1186, %v1191
        %v1194 = vld [vmem:[%s1187 + $0x1] sm:$0xff]
        %v1195 = vld [vmem:[%s1187 + $0x9] sm:$0xff]
        %v1196 = vmul.f32 %v1194, %v476
        %v1197 = vmul.f32 %v1195, %v476
        %v1198 = vadd.f32 %v1192, %v1196
        %v1199 = vadd.f32 %v1193, %v1197
        %v1200 = vld [vmem:[%s1187 + $0x2] sm:$0xff]
        %v1201 = vld [vmem:[%s1187 + $0xa] sm:$0xff]
        %v1202 = vmul.f32 %v1200, %v486
        %v1203 = vmul.f32 %v1201, %v486
        %v1204 = vadd.f32 %v1198, %v1202
        %v1205 = vadd.f32 %v1199, %v1203
        %v1206 = vpack.c.bf16 %v1205, %v1204
        %v1208 = vunpack.c.l.b16 %v1206
        %v1209 = vunpack.c.h.b16 %v1206
        %v1210 = vpack.c.b16 %v1208, %v1208
        %v1211 = vpack.c.b16 %v1209, %v1209
        %1214 = vst [vmem:[#allocation3 + $0x58] sm:$0xf] %v1210
        %1215 = vst [vmem:[#allocation3 + $0x5c] sm:$0xf] %v1211
        %v1216 = vld [vmem:[%s1122] sm:$0xff]
        %v1217 = vld [vmem:[%s1122 + $0x8] sm:$0xff]
        %v1218 = vmul.f32 %v1216, %v405
        %v1219 = vmul.f32 %v1217, %v405
        %v1220 = vadd.f32 %v1218, 0.0
        %v1221 = vadd.f32 %v1219, 0.0
        %v1222 = vld [vmem:[%s1122 + $0x1] sm:$0xff]
        %v1223 = vld [vmem:[%s1122 + $0x9] sm:$0xff]
        %v1224 = vmul.f32 %v1222, %v415
        %v1225 = vmul.f32 %v1223, %v415
        %v1226 = vadd.f32 %v1220, %v1224
        %v1227 = vadd.f32 %v1221, %v1225
        %v1228 = vld [vmem:[%s1122 + $0x2] sm:$0xff]
        %v1229 = vld [vmem:[%s1122 + $0xa] sm:$0xff]
        %v1230 = vmul.f32 %v1228, %v425
        %v1231 = vmul.f32 %v1229, %v425
        %v1232 = vadd.f32 %v1226, %v1230
        %v1233 = vadd.f32 %v1227, %v1231
        %v1234 = vld [vmem:[%s1187] sm:$0xff]
        %v1235 = vld [vmem:[%s1187 + $0x8] sm:$0xff]
        %v1236 = vmul.f32 %v1234, %v435
        %v1237 = vmul.f32 %v1235, %v435
        %v1238 = vadd.f32 %v1232, %v1236
        %v1239 = vadd.f32 %v1233, %v1237
        %v1240 = vld [vmem:[%s1187 + $0x1] sm:$0xff]
        %v1241 = vld [vmem:[%s1187 + $0x9] sm:$0xff]
        %v1242 = vmul.f32 %v1240, %v445
        %v1243 = vmul.f32 %v1241, %v445
        %v1244 = vadd.f32 %v1238, %v1242
        %v1245 = vadd.f32 %v1239, %v1243
        %v1246 = vld [vmem:[%s1187 + $0x2] sm:$0xff]
        %v1247 = vld [vmem:[%s1187 + $0xa] sm:$0xff]
        %v1248 = vmul.f32 %v1246, %v455
        %v1249 = vmul.f32 %v1247, %v455
        %v1250 = vadd.f32 %v1244, %v1248
        %v1251 = vadd.f32 %v1245, %v1249
        %s1252 = scalar_lea.vmem [#allocation2], 336
        %v1253 = vld [vmem:[%s1252] sm:$0xff]
        %v1254 = vld [vmem:[%s1252 + $0x8] sm:$0xff]
        %v1255 = vmul.f32 %v1253, %v466
        %v1256 = vmul.f32 %v1254, %v466
        %v1257 = vadd.f32 %v1250, %v1255
        %v1258 = vadd.f32 %v1251, %v1256
        %v1259 = vld [vmem:[%s1252 + $0x1] sm:$0xff]
        %v1260 = vld [vmem:[%s1252 + $0x9] sm:$0xff]
        %v1261 = vmul.f32 %v1259, %v476
        %v1262 = vmul.f32 %v1260, %v476
        %v1263 = vadd.f32 %v1257, %v1261
        %v1264 = vadd.f32 %v1258, %v1262
        %v1265 = vld [vmem:[%s1252 + $0x2] sm:$0xff]
        %v1266 = vld [vmem:[%s1252 + $0xa] sm:$0xff]
        %v1267 = vmul.f32 %v1265, %v486
        %v1268 = vmul.f32 %v1266, %v486
        %v1269 = vadd.f32 %v1263, %v1267
        %v1270 = vadd.f32 %v1264, %v1268
        %v1271 = vpack.c.bf16 %v1270, %v1269
        %v1273 = vunpack.c.l.b16 %v1271
        %v1274 = vunpack.c.h.b16 %v1271
        %v1275 = vpack.c.b16 %v1273, %v1273
        %v1276 = vpack.c.b16 %v1274, %v1274
        %1279 = vst [vmem:[#allocation3 + $0x60] sm:$0xf] %v1275
        %1280 = vst [vmem:[#allocation3 + $0x64] sm:$0xf] %v1276
        %v1281 = vld [vmem:[%s1187] sm:$0xff]
        %v1282 = vld [vmem:[%s1187 + $0x8] sm:$0xff]
        %v1283 = vmul.f32 %v1281, %v405
        %v1284 = vmul.f32 %v1282, %v405
        %v1285 = vadd.f32 %v1283, 0.0
        %v1286 = vadd.f32 %v1284, 0.0
        %v1287 = vld [vmem:[%s1187 + $0x1] sm:$0xff]
        %v1288 = vld [vmem:[%s1187 + $0x9] sm:$0xff]
        %v1289 = vmul.f32 %v1287, %v415
        %v1290 = vmul.f32 %v1288, %v415
        %v1291 = vadd.f32 %v1285, %v1289
        %v1292 = vadd.f32 %v1286, %v1290
        %v1293 = vld [vmem:[%s1187 + $0x2] sm:$0xff]
        %v1294 = vld [vmem:[%s1187 + $0xa] sm:$0xff]
        %v1295 = vmul.f32 %v1293, %v425
        %v1296 = vmul.f32 %v1294, %v425
        %v1297 = vadd.f32 %v1291, %v1295
        %v1298 = vadd.f32 %v1292, %v1296
        %v1299 = vld [vmem:[%s1252] sm:$0xff]
        %v1300 = vld [vmem:[%s1252 + $0x8] sm:$0xff]
        %v1301 = vmul.f32 %v1299, %v435
        %v1302 = vmul.f32 %v1300, %v435
        %v1303 = vadd.f32 %v1297, %v1301
        %v1304 = vadd.f32 %v1298, %v1302
        %v1305 = vld [vmem:[%s1252 + $0x1] sm:$0xff]
        %v1306 = vld [vmem:[%s1252 + $0x9] sm:$0xff]
        %v1307 = vmul.f32 %v1305, %v445
        %v1308 = vmul.f32 %v1306, %v445
        %v1309 = vadd.f32 %v1303, %v1307
        %v1310 = vadd.f32 %v1304, %v1308
        %v1311 = vld [vmem:[%s1252 + $0x2] sm:$0xff]
        %v1312 = vld [vmem:[%s1252 + $0xa] sm:$0xff]
        %v1313 = vmul.f32 %v1311, %v455
        %v1314 = vmul.f32 %v1312, %v455
        %v1315 = vadd.f32 %v1309, %v1313
        %v1316 = vadd.f32 %v1310, %v1314
        %s1317 = scalar_lea.vmem [#allocation2], 360
        %v1318 = vld [vmem:[%s1317] sm:$0xff]
        %v1319 = vld [vmem:[%s1317 + $0x8] sm:$0xff]
        %v1320 = vmul.f32 %v1318, %v466
        %v1321 = vmul.f32 %v1319, %v466
        %v1322 = vadd.f32 %v1315, %v1320
        %v1323 = vadd.f32 %v1316, %v1321
        %v1324 = vld [vmem:[%s1317 + $0x1] sm:$0xff]
        %v1325 = vld [vmem:[%s1317 + $0x9] sm:$0xff]
        %v1326 = vmul.f32 %v1324, %v476
        %v1327 = vmul.f32 %v1325, %v476
        %v1328 = vadd.f32 %v1322, %v1326
        %v1329 = vadd.f32 %v1323, %v1327
        %v1330 = vld [vmem:[%s1317 + $0x2] sm:$0xff]
        %v1331 = vld [vmem:[%s1317 + $0xa] sm:$0xff]
        %v1332 = vmul.f32 %v1330, %v486
        %v1333 = vmul.f32 %v1331, %v486
        %v1334 = vadd.f32 %v1328, %v1332
        %v1335 = vadd.f32 %v1329, %v1333
        %v1336 = vpack.c.bf16 %v1335, %v1334
        %v1338 = vunpack.c.l.b16 %v1336
        %v1339 = vunpack.c.h.b16 %v1336
        %v1340 = vpack.c.b16 %v1338, %v1338
        %v1341 = vpack.c.b16 %v1339, %v1339
        %1344 = vst [vmem:[#allocation3 + $0x68] sm:$0xf] %v1340
        %1345 = vst [vmem:[#allocation3 + $0x6c] sm:$0xf] %v1341
        %v1346 = vld [vmem:[%s1252] sm:$0xff]
        %v1347 = vld [vmem:[%s1252 + $0x8] sm:$0xff]
        %v1348 = vmul.f32 %v1346, %v405
        %v1349 = vmul.f32 %v1347, %v405
        %v1350 = vadd.f32 %v1348, 0.0
        %v1351 = vadd.f32 %v1349, 0.0
        %v1352 = vld [vmem:[%s1252 + $0x1] sm:$0xff]
        %v1353 = vld [vmem:[%s1252 + $0x9] sm:$0xff]
        %v1354 = vmul.f32 %v1352, %v415
        %v1355 = vmul.f32 %v1353, %v415
        %v1356 = vadd.f32 %v1350, %v1354
        %v1357 = vadd.f32 %v1351, %v1355
        %v1358 = vld [vmem:[%s1252 + $0x2] sm:$0xff]
        %v1359 = vld [vmem:[%s1252 + $0xa] sm:$0xff]
        %v1360 = vmul.f32 %v1358, %v425
        %v1361 = vmul.f32 %v1359, %v425
        %v1362 = vadd.f32 %v1356, %v1360
        %v1363 = vadd.f32 %v1357, %v1361
        %v1364 = vld [vmem:[%s1317] sm:$0xff]
        %v1365 = vld [vmem:[%s1317 + $0x8] sm:$0xff]
        %v1366 = vmul.f32 %v1364, %v435
        %v1367 = vmul.f32 %v1365, %v435
        %v1368 = vadd.f32 %v1362, %v1366
        %v1369 = vadd.f32 %v1363, %v1367
        %v1370 = vld [vmem:[%s1317 + $0x1] sm:$0xff]
        %v1371 = vld [vmem:[%s1317 + $0x9] sm:$0xff]
        %v1372 = vmul.f32 %v1370, %v445
        %v1373 = vmul.f32 %v1371, %v445
        %v1374 = vadd.f32 %v1368, %v1372
        %v1375 = vadd.f32 %v1369, %v1373
        %v1376 = vld [vmem:[%s1317 + $0x2] sm:$0xff]
        %v1377 = vld [vmem:[%s1317 + $0xa] sm:$0xff]
        %v1378 = vmul.f32 %v1376, %v455
        %v1379 = vmul.f32 %v1377, %v455
        %v1380 = vadd.f32 %v1374, %v1378
        %v1381 = vadd.f32 %v1375, %v1379
        %s1382 = scalar_lea.vmem [#allocation2], 384
        %v1383 = vld [vmem:[%s1382] sm:$0xff]
        %v1384 = vld [vmem:[%s1382 + $0x8] sm:$0xff]
        %v1385 = vmul.f32 %v1383, %v466
        %v1386 = vmul.f32 %v1384, %v466
        %v1387 = vadd.f32 %v1380, %v1385
        %v1388 = vadd.f32 %v1381, %v1386
        %v1389 = vld [vmem:[%s1382 + $0x1] sm:$0xff]
        %v1390 = vld [vmem:[%s1382 + $0x9] sm:$0xff]
        %v1391 = vmul.f32 %v1389, %v476
        %v1392 = vmul.f32 %v1390, %v476
        %v1393 = vadd.f32 %v1387, %v1391
        %v1394 = vadd.f32 %v1388, %v1392
        %v1395 = vld [vmem:[%s1382 + $0x2] sm:$0xff]
        %v1396 = vld [vmem:[%s1382 + $0xa] sm:$0xff]
        %v1397 = vmul.f32 %v1395, %v486
        %v1398 = vmul.f32 %v1396, %v486
        %v1399 = vadd.f32 %v1393, %v1397
        %v1400 = vadd.f32 %v1394, %v1398
        %v1401 = vpack.c.bf16 %v1400, %v1399
        %v1403 = vunpack.c.l.b16 %v1401
        %v1404 = vunpack.c.h.b16 %v1401
        %v1405 = vpack.c.b16 %v1403, %v1403
        %v1406 = vpack.c.b16 %v1404, %v1404
        %1409 = vst [vmem:[#allocation3 + $0x70] sm:$0xf] %v1405
        %1410 = vst [vmem:[#allocation3 + $0x74] sm:$0xf] %v1406
        %v1411 = vld [vmem:[%s1317] sm:$0xff]
        %v1412 = vld [vmem:[%s1317 + $0x8] sm:$0xff]
        %v1413 = vmul.f32 %v1411, %v405
        %v1414 = vmul.f32 %v1412, %v405
        %v1415 = vadd.f32 %v1413, 0.0
        %v1416 = vadd.f32 %v1414, 0.0
        %v1417 = vld [vmem:[%s1317 + $0x1] sm:$0xff]
        %v1418 = vld [vmem:[%s1317 + $0x9] sm:$0xff]
        %v1419 = vmul.f32 %v1417, %v415
        %v1420 = vmul.f32 %v1418, %v415
        %v1421 = vadd.f32 %v1415, %v1419
        %v1422 = vadd.f32 %v1416, %v1420
        %v1423 = vld [vmem:[%s1317 + $0x2] sm:$0xff]
        %v1424 = vld [vmem:[%s1317 + $0xa] sm:$0xff]
        %v1425 = vmul.f32 %v1423, %v425
        %v1426 = vmul.f32 %v1424, %v425
        %v1427 = vadd.f32 %v1421, %v1425
        %v1428 = vadd.f32 %v1422, %v1426
        %v1429 = vld [vmem:[%s1382] sm:$0xff]
        %v1430 = vld [vmem:[%s1382 + $0x8] sm:$0xff]
        %v1431 = vmul.f32 %v1429, %v435
        %v1432 = vmul.f32 %v1430, %v435
        %v1433 = vadd.f32 %v1427, %v1431
        %v1434 = vadd.f32 %v1428, %v1432
        %v1435 = vld [vmem:[%s1382 + $0x1] sm:$0xff]
        %v1436 = vld [vmem:[%s1382 + $0x9] sm:$0xff]
        %v1437 = vmul.f32 %v1435, %v445
        %v1438 = vmul.f32 %v1436, %v445
        %v1439 = vadd.f32 %v1433, %v1437
        %v1440 = vadd.f32 %v1434, %v1438
        %v1441 = vld [vmem:[%s1382 + $0x2] sm:$0xff]
        %v1442 = vld [vmem:[%s1382 + $0xa] sm:$0xff]
        %v1443 = vmul.f32 %v1441, %v455
        %v1444 = vmul.f32 %v1442, %v455
        %v1445 = vadd.f32 %v1439, %v1443
        %v1446 = vadd.f32 %v1440, %v1444
        %s1447 = scalar_lea.vmem [#allocation2], 408
        %v1448 = vld [vmem:[%s1447] sm:$0xff]
        %v1449 = vld [vmem:[%s1447 + $0x8] sm:$0xff]
        %v1450 = vmul.f32 %v1448, %v466
        %v1451 = vmul.f32 %v1449, %v466
        %v1452 = vadd.f32 %v1445, %v1450
        %v1453 = vadd.f32 %v1446, %v1451
        %v1454 = vld [vmem:[%s1447 + $0x1] sm:$0xff]
        %v1455 = vld [vmem:[%s1447 + $0x9] sm:$0xff]
        %v1456 = vmul.f32 %v1454, %v476
        %v1457 = vmul.f32 %v1455, %v476
        %v1458 = vadd.f32 %v1452, %v1456
        %v1459 = vadd.f32 %v1453, %v1457
        %v1460 = vld [vmem:[%s1447 + $0x2] sm:$0xff]
        %v1461 = vld [vmem:[%s1447 + $0xa] sm:$0xff]
        %v1462 = vmul.f32 %v1460, %v486
        %v1463 = vmul.f32 %v1461, %v486
        %v1464 = vadd.f32 %v1458, %v1462
        %v1465 = vadd.f32 %v1459, %v1463
        %v1466 = vpack.c.bf16 %v1465, %v1464
        %v1468 = vunpack.c.l.b16 %v1466
        %v1469 = vunpack.c.h.b16 %v1466
        %v1470 = vpack.c.b16 %v1468, %v1468
        %v1471 = vpack.c.b16 %v1469, %v1469
        %1474 = vst [vmem:[#allocation3 + $0x78] sm:$0xf] %v1470
        %1475 = vst [vmem:[#allocation3 + $0x7c] sm:$0xf] %v1471
        %v1476 = vld [vmem:[#allocation3] sm:$0xf]
        %v1477 = vld [vmem:[#allocation3 + $0x4] sm:$0xf]
        %v1478 = vld [vmem:[#allocation3 + $0x8] sm:$0xf]
        %v1479 = vld [vmem:[#allocation3 + $0xc] sm:$0xf]
        %v1480 = vld [vmem:[#allocation3 + $0x10] sm:$0xf]
        %v1481 = vld [vmem:[#allocation3 + $0x14] sm:$0xf]
        %v1482 = vld [vmem:[#allocation3 + $0x18] sm:$0xf]
        %v1483 = vld [vmem:[#allocation3 + $0x1c] sm:$0xf]
        %v1484 = vld [vmem:[#allocation3 + $0x20] sm:$0xf]
        %v1485 = vld [vmem:[#allocation3 + $0x24] sm:$0xf]
        %v1486 = vld [vmem:[#allocation3 + $0x28] sm:$0xf]
        %v1487 = vld [vmem:[#allocation3 + $0x2c] sm:$0xf]
        %v1488 = vld [vmem:[#allocation3 + $0x30] sm:$0xf]
        %v1489 = vld [vmem:[#allocation3 + $0x34] sm:$0xf]
        %v1490 = vld [vmem:[#allocation3 + $0x38] sm:$0xf]
        %v1491 = vld [vmem:[#allocation3 + $0x3c] sm:$0xf]
        %v1492 = vld [vmem:[#allocation3 + $0x40] sm:$0xf]
        %v1493 = vld [vmem:[#allocation3 + $0x44] sm:$0xf]
        %v1494 = vld [vmem:[#allocation3 + $0x48] sm:$0xf]
        %v1495 = vld [vmem:[#allocation3 + $0x4c] sm:$0xf]
        %v1496 = vld [vmem:[#allocation3 + $0x50] sm:$0xf]
        %v1497 = vld [vmem:[#allocation3 + $0x54] sm:$0xf]
        %v1498 = vld [vmem:[#allocation3 + $0x58] sm:$0xf]
        %v1499 = vld [vmem:[#allocation3 + $0x5c] sm:$0xf]
        %v1500 = vld [vmem:[#allocation3 + $0x60] sm:$0xf]
        %v1501 = vld [vmem:[#allocation3 + $0x64] sm:$0xf]
        %v1502 = vld [vmem:[#allocation3 + $0x68] sm:$0xf]
        %v1503 = vld [vmem:[#allocation3 + $0x6c] sm:$0xf]
        %v1504 = vld [vmem:[#allocation3 + $0x70] sm:$0xf]
        %v1505 = vld [vmem:[#allocation3 + $0x74] sm:$0xf]
        %v1506 = vld [vmem:[#allocation3 + $0x78] sm:$0xf]
        %v1507 = vld [vmem:[#allocation3 + $0x7c] sm:$0xf]
        %v1508 = vunpack.c.l.bf16 %v1476
        %v1509 = vunpack.c.l.bf16 %v1477
        %v1510 = vunpack.c.l.bf16 %v1478
        %v1511 = vunpack.c.l.bf16 %v1479
        %v1512 = vunpack.c.l.bf16 %v1480
        %v1513 = vunpack.c.l.bf16 %v1481
        %v1514 = vunpack.c.l.bf16 %v1482
        %v1515 = vunpack.c.l.bf16 %v1483
        %v1516 = vunpack.c.l.bf16 %v1484
        %v1517 = vunpack.c.l.bf16 %v1485
        %v1518 = vunpack.c.l.bf16 %v1486
        %v1519 = vunpack.c.l.bf16 %v1487
        %v1520 = vunpack.c.l.bf16 %v1488
        %v1521 = vunpack.c.l.bf16 %v1489
        %v1522 = vunpack.c.l.bf16 %v1490
        %v1523 = vunpack.c.l.bf16 %v1491
        %v1524 = vunpack.c.l.bf16 %v1492
        %v1525 = vunpack.c.l.bf16 %v1493
        %v1526 = vunpack.c.l.bf16 %v1494
        %v1527 = vunpack.c.l.bf16 %v1495
        %v1528 = vunpack.c.l.bf16 %v1496
        %v1529 = vunpack.c.l.bf16 %v1497
        %v1530 = vunpack.c.l.bf16 %v1498
        %v1531 = vunpack.c.l.bf16 %v1499
        %v1532 = vunpack.c.l.bf16 %v1500
        %v1533 = vunpack.c.l.bf16 %v1501
        %v1534 = vunpack.c.l.bf16 %v1502
        %v1535 = vunpack.c.l.bf16 %v1503
        %v1536 = vunpack.c.l.bf16 %v1504
        %v1537 = vunpack.c.l.bf16 %v1505
        %v1538 = vunpack.c.l.bf16 %v1506
        %v1539 = vunpack.c.l.bf16 %v1507
        %v1540 = vmul.f32 %v1508, %v1508
        %v1541 = vmul.f32 %v1509, %v1509
        %v1542 = vmul.f32 %v1510, %v1510
        %v1543 = vmul.f32 %v1511, %v1511
        %v1544 = vmul.f32 %v1512, %v1512
        %v1545 = vmul.f32 %v1513, %v1513
        %v1546 = vmul.f32 %v1514, %v1514
        %v1547 = vmul.f32 %v1515, %v1515
        %v1548 = vmul.f32 %v1516, %v1516
        %v1549 = vmul.f32 %v1517, %v1517
        %v1550 = vmul.f32 %v1518, %v1518
        %v1551 = vmul.f32 %v1519, %v1519
        %v1552 = vmul.f32 %v1520, %v1520
        %v1553 = vmul.f32 %v1521, %v1521
        %v1554 = vmul.f32 %v1522, %v1522
        %v1555 = vmul.f32 %v1523, %v1523
        %v1556 = vmul.f32 %v1524, %v1524
        %v1557 = vmul.f32 %v1525, %v1525
        %v1558 = vmul.f32 %v1526, %v1526
        %v1559 = vmul.f32 %v1527, %v1527
        %v1560 = vmul.f32 %v1528, %v1528
        %v1561 = vmul.f32 %v1529, %v1529
        %v1562 = vmul.f32 %v1530, %v1530
        %v1563 = vmul.f32 %v1531, %v1531
        %v1564 = vmul.f32 %v1532, %v1532
        %v1565 = vmul.f32 %v1533, %v1533
        %v1566 = vmul.f32 %v1534, %v1534
        %v1567 = vmul.f32 %v1535, %v1535
        %v1568 = vmul.f32 %v1536, %v1536
        %v1569 = vmul.f32 %v1537, %v1537
        %v1570 = vmul.f32 %v1538, %v1538
        %v1571 = vmul.f32 %v1539, %v1539
        %vm1572 = vcmask 261120
        %v1573 = vsel %vm1572, %v1540, 0.0
        %v1574 = vsel %vm1572, %v1541, 0.0
        %v1575 = vadd.f32 %v1573, %v1574
        %v1576 = vsel %vm1572, %v1542, 0.0
        %v1577 = vadd.f32 %v1575, %v1576
        %v1578 = vsel %vm1572, %v1543, 0.0
        %v1579 = vadd.f32 %v1577, %v1578
        %v1580 = vsel %vm1572, %v1544, 0.0
        %v1581 = vadd.f32 %v1579, %v1580
        %v1582 = vsel %vm1572, %v1545, 0.0
        %v1583 = vadd.f32 %v1581, %v1582
        %v1584 = vsel %vm1572, %v1546, 0.0
        %v1585 = vadd.f32 %v1583, %v1584
        %v1586 = vsel %vm1572, %v1547, 0.0
        %v1587 = vadd.f32 %v1585, %v1586
        %v1588 = vsel %vm1572, %v1548, 0.0
        %v1589 = vadd.f32 %v1587, %v1588
        %v1590 = vsel %vm1572, %v1549, 0.0
        %v1591 = vadd.f32 %v1589, %v1590
        %v1592 = vsel %vm1572, %v1550, 0.0
        %v1593 = vadd.f32 %v1591, %v1592
        %v1594 = vsel %vm1572, %v1551, 0.0
        %v1595 = vadd.f32 %v1593, %v1594
        %v1596 = vsel %vm1572, %v1552, 0.0
        %v1597 = vadd.f32 %v1595, %v1596
        %v1598 = vsel %vm1572, %v1553, 0.0
        %v1599 = vadd.f32 %v1597, %v1598
        %v1600 = vsel %vm1572, %v1554, 0.0
        %v1601 = vadd.f32 %v1599, %v1600
        %v1602 = vsel %vm1572, %v1555, 0.0
        %v1603 = vadd.f32 %v1601, %v1602
        %v1604 = vsel %vm1572, %v1556, 0.0
        %v1605 = vadd.f32 %v1603, %v1604
        %v1606 = vsel %vm1572, %v1557, 0.0
        %v1607 = vadd.f32 %v1605, %v1606
        %v1608 = vsel %vm1572, %v1558, 0.0
        %v1609 = vadd.f32 %v1607, %v1608
        %v1610 = vsel %vm1572, %v1559, 0.0
        %v1611 = vadd.f32 %v1609, %v1610
        %v1612 = vsel %vm1572, %v1560, 0.0
        %v1613 = vadd.f32 %v1611, %v1612
        %v1614 = vsel %vm1572, %v1561, 0.0
        %v1615 = vadd.f32 %v1613, %v1614
        %v1616 = vsel %vm1572, %v1562, 0.0
        %v1617 = vadd.f32 %v1615, %v1616
        %v1618 = vsel %vm1572, %v1563, 0.0
        %v1619 = vadd.f32 %v1617, %v1618
        %v1620 = vsel %vm1572, %v1564, 0.0
        %v1621 = vadd.f32 %v1619, %v1620
        %v1622 = vsel %vm1572, %v1565, 0.0
        %v1623 = vadd.f32 %v1621, %v1622
        %v1624 = vsel %vm1572, %v1566, 0.0
        %v1625 = vadd.f32 %v1623, %v1624
        %v1626 = vsel %vm1572, %v1567, 0.0
        %v1627 = vadd.f32 %v1625, %v1626
        %v1628 = vsel %vm1572, %v1568, 0.0
        %v1629 = vadd.f32 %v1627, %v1628
        %v1630 = vsel %vm1572, %v1569, 0.0
        %v1631 = vadd.f32 %v1629, %v1630
        %v1632 = vsel %vm1572, %v1570, 0.0
        %v1633 = vadd.f32 %v1631, %v1632
        %v1634 = vsel %vm1572, %v1571, 0.0
        %v1635 = vadd.f32 %v1633, %v1634
        %v1636 = vrot.slane %v1635, 4
        %v1637 = vadd.f32 %v1635, %v1636
        %v1638 = vrot.slane %v1637, 2
        %v1639 = vadd.f32 %v1637, %v1638
        %v1640 = vrot.slane %v1639, 1
        %v1641 = vadd.f32 %v1639, %v1640
        %v1642 = vmax.f32 %v1641, 1e-24
        %v1643 = vrsqrt.pop %v1642
        %v1644 = vmul.f32 %v1508, %v1643
        %v1645 = vmul.f32 %v1509, %v1643
        %v1646 = vmul.f32 %v1510, %v1643
        %v1647 = vmul.f32 %v1511, %v1643
        %v1648 = vmul.f32 %v1512, %v1643
        %v1649 = vmul.f32 %v1513, %v1643
        %v1650 = vmul.f32 %v1514, %v1643
        %v1651 = vmul.f32 %v1515, %v1643
        %v1652 = vmul.f32 %v1516, %v1643
        %v1653 = vmul.f32 %v1517, %v1643
        %v1654 = vmul.f32 %v1518, %v1643
        %v1655 = vmul.f32 %v1519, %v1643
        %v1656 = vmul.f32 %v1520, %v1643
        %v1657 = vmul.f32 %v1521, %v1643
        %v1658 = vmul.f32 %v1522, %v1643
        %v1659 = vmul.f32 %v1523, %v1643
        %v1660 = vmul.f32 %v1524, %v1643
        %v1661 = vmul.f32 %v1525, %v1643
        %v1662 = vmul.f32 %v1526, %v1643
        %v1663 = vmul.f32 %v1527, %v1643
        %v1664 = vmul.f32 %v1528, %v1643
        %v1665 = vmul.f32 %v1529, %v1643
        %v1666 = vmul.f32 %v1530, %v1643
        %v1667 = vmul.f32 %v1531, %v1643
        %v1668 = vmul.f32 %v1532, %v1643
        %v1669 = vmul.f32 %v1533, %v1643
        %v1670 = vmul.f32 %v1534, %v1643
        %v1671 = vmul.f32 %v1535, %v1643
        %v1672 = vmul.f32 %v1536, %v1643
        %v1673 = vmul.f32 %v1537, %v1643
        %v1674 = vmul.f32 %v1538, %v1643
        %v1675 = vmul.f32 %v1539, %v1643
        %v1676 = vpack.c.bf16 %v1645, %v1644
        %v1677 = vpack.c.bf16 %v1647, %v1646
        %v1678 = vpack.c.bf16 %v1649, %v1648
        %v1679 = vpack.c.bf16 %v1651, %v1650
        %v1680 = vpack.c.bf16 %v1653, %v1652
        %v1681 = vpack.c.bf16 %v1655, %v1654
        %v1682 = vpack.c.bf16 %v1657, %v1656
        %v1683 = vpack.c.bf16 %v1659, %v1658
        %v1684 = vpack.c.bf16 %v1661, %v1660
        %v1685 = vpack.c.bf16 %v1663, %v1662
        %v1686 = vpack.c.bf16 %v1665, %v1664
        %v1687 = vpack.c.bf16 %v1667, %v1666
        %v1688 = vpack.c.bf16 %v1669, %v1668
        %v1689 = vpack.c.bf16 %v1671, %v1670
        %v1690 = vpack.c.bf16 %v1673, %v1672
        %v1691 = vpack.c.bf16 %v1675, %v1674
        %vm1692 = vcmask 523520
        %v1693 = vsel %vm1692, %v1540, 0.0
        %v1694 = vsel %vm1692, %v1541, 0.0
        %v1695 = vadd.f32 %v1693, %v1694
        %v1696 = vsel %vm1692, %v1542, 0.0
        %v1697 = vadd.f32 %v1695, %v1696
        %v1698 = vsel %vm1692, %v1543, 0.0
        %v1699 = vadd.f32 %v1697, %v1698
        %v1700 = vsel %vm1692, %v1544, 0.0
        %v1701 = vadd.f32 %v1699, %v1700
        %v1702 = vsel %vm1692, %v1545, 0.0
        %v1703 = vadd.f32 %v1701, %v1702
        %v1704 = vsel %vm1692, %v1546, 0.0
        %v1705 = vadd.f32 %v1703, %v1704
        %v1706 = vsel %vm1692, %v1547, 0.0
        %v1707 = vadd.f32 %v1705, %v1706
        %v1708 = vsel %vm1692, %v1548, 0.0
        %v1709 = vadd.f32 %v1707, %v1708
        %v1710 = vsel %vm1692, %v1549, 0.0
        %v1711 = vadd.f32 %v1709, %v1710
        %v1712 = vsel %vm1692, %v1550, 0.0
        %v1713 = vadd.f32 %v1711, %v1712
        %v1714 = vsel %vm1692, %v1551, 0.0
        %v1715 = vadd.f32 %v1713, %v1714
        %v1716 = vsel %vm1692, %v1552, 0.0
        %v1717 = vadd.f32 %v1715, %v1716
        %v1718 = vsel %vm1692, %v1553, 0.0
        %v1719 = vadd.f32 %v1717, %v1718
        %v1720 = vsel %vm1692, %v1554, 0.0
        %v1721 = vadd.f32 %v1719, %v1720
        %v1722 = vsel %vm1692, %v1555, 0.0
        %v1723 = vadd.f32 %v1721, %v1722
        %v1724 = vsel %vm1692, %v1556, 0.0
        %v1725 = vadd.f32 %v1723, %v1724
        %v1726 = vsel %vm1692, %v1557, 0.0
        %v1727 = vadd.f32 %v1725, %v1726
        %v1728 = vsel %vm1692, %v1558, 0.0
        %v1729 = vadd.f32 %v1727, %v1728
        %v1730 = vsel %vm1692, %v1559, 0.0
        %v1731 = vadd.f32 %v1729, %v1730
        %v1732 = vsel %vm1692, %v1560, 0.0
        %v1733 = vadd.f32 %v1731, %v1732
        %v1734 = vsel %vm1692, %v1561, 0.0
        %v1735 = vadd.f32 %v1733, %v1734
        %v1736 = vsel %vm1692, %v1562, 0.0
        %v1737 = vadd.f32 %v1735, %v1736
        %v1738 = vsel %vm1692, %v1563, 0.0
        %v1739 = vadd.f32 %v1737, %v1738
        %v1740 = vsel %vm1692, %v1564, 0.0
        %v1741 = vadd.f32 %v1739, %v1740
        %v1742 = vsel %vm1692, %v1565, 0.0
        %v1743 = vadd.f32 %v1741, %v1742
        %v1744 = vsel %vm1692, %v1566, 0.0
        %v1745 = vadd.f32 %v1743, %v1744
        %v1746 = vsel %vm1692, %v1567, 0.0
        %v1747 = vadd.f32 %v1745, %v1746
        %v1748 = vsel %vm1692, %v1568, 0.0
        %v1749 = vadd.f32 %v1747, %v1748
        %v1750 = vsel %vm1692, %v1569, 0.0
        %v1751 = vadd.f32 %v1749, %v1750
        %v1752 = vsel %vm1692, %v1570, 0.0
        %v1753 = vadd.f32 %v1751, %v1752
        %v1754 = vsel %vm1692, %v1571, 0.0
        %v1755 = vadd.f32 %v1753, %v1754
        %v1756 = vrot.slane %v1755, 4
        %v1757 = vadd.f32 %v1755, %v1756
        %v1758 = vrot.slane %v1757, 2
        %v1759 = vadd.f32 %v1757, %v1758
        %v1760 = vrot.slane %v1759, 1
        %v1761 = vadd.f32 %v1759, %v1760
        %v1762 = vmax.f32 %v1761, 1e-24
        %v1763 = vrsqrt.pop %v1762
        %v1764 = vmul.f32 %v1508, %v1763
        %v1765 = vmul.f32 %v1509, %v1763
        %v1766 = vmul.f32 %v1510, %v1763
        %v1767 = vmul.f32 %v1511, %v1763
        %v1768 = vmul.f32 %v1512, %v1763
        %v1769 = vmul.f32 %v1513, %v1763
        %v1770 = vmul.f32 %v1514, %v1763
        %v1771 = vmul.f32 %v1515, %v1763
        %v1772 = vmul.f32 %v1516, %v1763
        %v1773 = vmul.f32 %v1517, %v1763
        %v1774 = vmul.f32 %v1518, %v1763
        %v1775 = vmul.f32 %v1519, %v1763
        %v1776 = vmul.f32 %v1520, %v1763
        %v1777 = vmul.f32 %v1521, %v1763
        %v1778 = vmul.f32 %v1522, %v1763
        %v1779 = vmul.f32 %v1523, %v1763
        %v1780 = vmul.f32 %v1524, %v1763
        %v1781 = vmul.f32 %v1525, %v1763
        %v1782 = vmul.f32 %v1526, %v1763
        %v1783 = vmul.f32 %v1527, %v1763
        %v1784 = vmul.f32 %v1528, %v1763
        %v1785 = vmul.f32 %v1529, %v1763
        %v1786 = vmul.f32 %v1530, %v1763
        %v1787 = vmul.f32 %v1531, %v1763
        %v1788 = vmul.f32 %v1532, %v1763
        %v1789 = vmul.f32 %v1533, %v1763
        %v1790 = vmul.f32 %v1534, %v1763
        %v1791 = vmul.f32 %v1535, %v1763
        %v1792 = vmul.f32 %v1536, %v1763
        %v1793 = vmul.f32 %v1537, %v1763
        %v1794 = vmul.f32 %v1538, %v1763
        %v1795 = vmul.f32 %v1539, %v1763
        %v1796 = vpack.c.bf16 %v1765, %v1764
        %v1797 = vpack.c.bf16 %v1767, %v1766
        %v1798 = vpack.c.bf16 %v1769, %v1768
        %v1799 = vpack.c.bf16 %v1771, %v1770
        %v1800 = vpack.c.bf16 %v1773, %v1772
        %v1801 = vpack.c.bf16 %v1775, %v1774
        %v1802 = vpack.c.bf16 %v1777, %v1776
        %v1803 = vpack.c.bf16 %v1779, %v1778
        %v1804 = vpack.c.bf16 %v1781, %v1780
        %v1805 = vpack.c.bf16 %v1783, %v1782
        %v1806 = vpack.c.bf16 %v1785, %v1784
        %v1807 = vpack.c.bf16 %v1787, %v1786
        %v1808 = vpack.c.bf16 %v1789, %v1788
        %v1809 = vpack.c.bf16 %v1791, %v1790
        %v1810 = vpack.c.bf16 %v1793, %v1792
        %v1811 = vpack.c.bf16 %v1795, %v1794
        %1812 = vxpose.xlu0.c.b16.start [1/8] %v1676, 128
        %1813 = vxpose.xlu0.c.b16.cont [2/8] %v1677, 128
        %1814 = vxpose.xlu0.c.b16.cont [3/8] %v1678, 128
        %1815 = vxpose.xlu0.c.b16.cont [4/8] %v1679, 128
        %1816 = vxpose.xlu0.c.b16.cont [5/8] %v1680, 128
        %1817 = vxpose.xlu0.c.b16.cont [6/8] %v1681, 128
        %1818 = vxpose.xlu0.c.b16.cont [7/8] %v1682, 128
        %1819 = vxpose.xlu0.c.b16.end [8/8] %v1683, 128
        %v1820 = vpop.trf.xlu0
        %v1821 = vpop.trf.xlu0
        %v1822 = vpop.trf.xlu0
        %v1823 = vpop.trf.xlu0
        %v1824 = vpop.trf.xlu0
        %v1825 = vpop.trf.xlu0
        %v1826 = vpop.trf.xlu0
        %v1827 = vpop.trf.xlu0
        %1828 = vxpose.xlu0.c.b16.start [1/8] %v1684, 128
        %1829 = vxpose.xlu0.c.b16.cont [2/8] %v1685, 128
        %1830 = vxpose.xlu0.c.b16.cont [3/8] %v1686, 128
        %1831 = vxpose.xlu0.c.b16.cont [4/8] %v1687, 128
        %1832 = vxpose.xlu0.c.b16.cont [5/8] %v1688, 128
        %1833 = vxpose.xlu0.c.b16.cont [6/8] %v1689, 128
        %1834 = vxpose.xlu0.c.b16.cont [7/8] %v1690, 128
        %1835 = vxpose.xlu0.c.b16.end [8/8] %v1691, 128
        %v1836 = vpop.trf.xlu0
        %v1837 = vpop.trf.xlu0
        %v1838 = vpop.trf.xlu0
        %v1839 = vpop.trf.xlu0
        %v1840 = vpop.trf.xlu0
        %v1841 = vpop.trf.xlu0
        %v1842 = vpop.trf.xlu0
        %v1843 = vpop.trf.xlu0
        %1860 = vrot.lane.b32.xlu0 %v1796, 96
        %v1861 = vpop.permute.xlu0 %1860
        %1862 = vrot.lane.b32.xlu0 %v1797, 96
        %v1863 = vpop.permute.xlu0 %1862
        %1864 = vrot.lane.b32.xlu0 %v1798, 96
        %v1865 = vpop.permute.xlu0 %1864
        %1866 = vrot.lane.b32.xlu0 %v1799, 96
        %v1867 = vpop.permute.xlu0 %1866
        %1868 = vrot.lane.b32.xlu0 %v1800, 96
        %v1869 = vpop.permute.xlu0 %1868
        %1870 = vrot.lane.b32.xlu0 %v1801, 96
        %v1871 = vpop.permute.xlu0 %1870
        %1872 = vrot.lane.b32.xlu0 %v1802, 96
        %v1873 = vpop.permute.xlu0 %1872
        %1874 = vrot.lane.b32.xlu0 %v1803, 96
        %v1875 = vpop.permute.xlu0 %1874
        %1876 = vrot.lane.b32.xlu0 %v1804, 96
        %v1877 = vpop.permute.xlu0 %1876
        %1878 = vrot.lane.b32.xlu0 %v1805, 96
        %v1879 = vpop.permute.xlu0 %1878
        %1880 = vrot.lane.b32.xlu0 %v1806, 96
        %v1881 = vpop.permute.xlu0 %1880
        %1882 = vrot.lane.b32.xlu0 %v1807, 96
        %v1883 = vpop.permute.xlu0 %1882
        %1884 = vrot.lane.b32.xlu0 %v1808, 96
        %v1885 = vpop.permute.xlu0 %1884
        %1886 = vrot.lane.b32.xlu0 %v1809, 96
        %v1887 = vpop.permute.xlu0 %1886
        %1888 = vrot.lane.b32.xlu0 %v1810, 96
        %v1889 = vpop.permute.xlu0 %1888
        %1890 = vrot.lane.b32.xlu0 %v1811, 96
        %v1891 = vpop.permute.xlu0 %1890
        %1908 = vmatprep.subr.bf16.mxu0 0
        %1909 = vmatpush1.bf16.msra.mxu0 %v1875
        %1910 = vmatprep.subr.bf16.mxu0 0
        %1911 = vmatpush1.bf16.msra.mxu0 %v1873
        %1912 = vmatprep.subr.bf16.mxu0 0
        %1913 = vmatpush1.bf16.msra.mxu0 %v1871
        %1914 = vmatprep.subr.bf16.mxu0 0
        %1915 = vmatpush1.bf16.msra.mxu0 %v1869
        %1916 = vmatprep.subr.bf16.mxu0 0
        %1917 = vmatpush1.bf16.msra.mxu0 %v1867
        %1918 = vmatprep.subr.bf16.mxu0 0
        %1919 = vmatpush1.bf16.msra.mxu0 %v1865
        %1920 = vmatprep.subr.bf16.mxu0 0
        %1921 = vmatpush1.bf16.msra.mxu0 %v1863
        %1922 = vmatprep.subr.bf16.mxu0 0
        %1923 = vmatpush1.bf16.msra.mxu0 %v1861
        %1924 = vmatprep.subr.bf16.mxu0 0
        %1925 = vmatpush2.bf16.msra.mxu0 %v1891
        %1926 = vmatprep.subr.bf16.mxu0 0
        %1927 = vmatpush2.bf16.msra.mxu0 %v1889
        %1928 = vmatprep.subr.bf16.mxu0 0
        %1929 = vmatpush2.bf16.msra.mxu0 %v1887
        %1930 = vmatprep.subr.bf16.mxu0 0
        %1931 = vmatpush2.bf16.msra.mxu0 %v1885
        %1932 = vmatprep.subr.bf16.mxu0 0
        %1933 = vmatpush2.bf16.msra.mxu0 %v1883
        %1934 = vmatprep.subr.bf16.mxu0 0
        %1935 = vmatpush2.bf16.msra.mxu0 %v1881
        %1936 = vmatprep.subr.bf16.mxu0 0
        %1937 = vmatpush2.bf16.msra.mxu0 %v1879
        %1938 = vmatprep.subr.bf16.mxu0 0
        %1939 = vmatpush2.bf16.msra.mxu0 %v1877
        %1940 = vmatprep.mubr.bf16.mxu0 %v1836
        %1941 = vmatmul.mubr.bf16.gmra.mxu0 %v1820
        %v1942 = vpop.f32.mrf.mxu0
        %v1943 = vadd.f32 0.0, %v1942
        %v1944 = vpop.f32.mrf.mxu0
        %v1945 = vpop.f32.mrf.mxu0
        %v1946 = vadd.f32 0.0, %v1945
        %v1947 = vpop.f32.mrf.mxu0
        %1948 = vmatprep.mubr.bf16.mxu0 %v1837
        %1949 = vmatmul.mubr.bf16.gmra.mxu0 %v1821
        %v1950 = vpop.f32.mrf.mxu0
        %v1951 = vadd.f32 0.0, %v1950
        %v1952 = vpop.f32.mrf.mxu0
        %v1953 = vpop.f32.mrf.mxu0
        %v1954 = vadd.f32 0.0, %v1953
        %v1955 = vpop.f32.mrf.mxu0
        %1956 = vdwg.mxu0
        %v1957 = vld [vmem:[%s1] sm:$0xff]
        %v1958 = vld [vmem:[%s1 + $0x8] sm:$0xff]
        %v1959 = vld [vmem:[%s1 + $0x10] sm:$0xff]
        %v1960 = vld [vmem:[%s1 + $0x18] sm:$0xff]
        %1962 = vset.pattern.permute.xlu0 0
        %1963 = vperm.xlu0 %1962, %v1957
        %v1964 = vpop.permute.xlu0 %1963
        %1967 = vset.pattern.permute.xlu0 0
        %1968 = vperm.xlu0 %1967, %v1958
        %v1969 = vpop.permute.xlu0 %1968
        %1972 = vset.pattern.permute.xlu0 0
        %1973 = vperm.xlu0 %1972, %v1959
        %v1974 = vpop.permute.xlu0 %1973
        %1977 = vset.pattern.permute.xlu0 0
        %1978 = vperm.xlu0 %1977, %v1960
        %v1979 = vpop.permute.xlu0 %1978
        %v1981 = vmul.f32 %v1943, %v1964
        %v1982 = vmul.f32 %v1946, %v1969
        %v1983 = vmul.f32 %v1951, %v1974
        %v1984 = vmul.f32 %v1954, %v1979
        %v1985 = vld [vmem:[%s2] sm:$0xff]
        %v1986 = vld [vmem:[%s2 + $0x8] sm:$0xff]
        %v1987 = vld [vmem:[%s2 + $0x10] sm:$0xff]
        %v1988 = vld [vmem:[%s2 + $0x18] sm:$0xff]
        %v1989 = vadd.f32 %v1981, %v1985
        %v1990 = vadd.f32 %v1982, %v1986
        %v1991 = vadd.f32 %v1983, %v1987
        %v1992 = vadd.f32 %v1984, %v1988
        %1994 = vrot.lane.b32.xlu0 %v1990, 120
        %v1995 = vpop.permute.xlu0 %1994
        %1998 = vrot.lane.b32.xlu0 %v1991, 112
        %v1999 = vpop.permute.xlu0 %1998
        %2002 = vrot.lane.b32.xlu0 %v1992, 104
        %v2003 = vpop.permute.xlu0 %2002
        %2006 = vset.pattern.permute.xlu0 0
        %2007 = vperm.xlu0 %2006, %v1989
        %v2008 = vpop.permute.xlu0 %2007
        %2010 = vset.pattern.permute.xlu0 0
        %2011 = vperm.xlu0 %2010, %v1995
        %v2012 = vpop.permute.xlu0 %2011
        %2014 = vset.pattern.permute.xlu0 0
        %2015 = vperm.xlu0 %2014, %v1999
        %v2016 = vpop.permute.xlu0 %2015
        %2018 = vset.pattern.permute.xlu0 0
        %2019 = vperm.xlu0 %2018, %v2003
        %v2020 = vpop.permute.xlu0 %2019
        %vm2022 = vcmp.gt.f32.partialorder %v2008, %v1989
        %vm2023 = vcmp.gt.f32.partialorder %v2012, %v1995
        %vm2024 = vcmp.gt.f32.partialorder %v2016, %v1999
        %vm2025 = vcmp.gt.f32.partialorder %v2020, %v2003
        %v2026 = vsel %vm2022, 1, 0
        %v2027 = vsel %vm2023, 1, 0
        %v2028 = vsel %vm2024, 1, 0
        %v2029 = vsel %vm2025, 1, 0
        %v2030 = vcvt.s32.f32 %v2026
        %v2031 = vcvt.s32.f32 %v2027
        %v2032 = vcvt.s32.f32 %v2028
        %v2033 = vcvt.s32.f32 %v2029
        %v2034 = vadd.f32 %v2030, 0.0
        %v2035 = vadd.f32 %v2031, 0.0
        %v2036 = vadd.f32 %v2032, 0.0
        %v2037 = vadd.f32 %v2033, 0.0
        %2038 = vset.pattern.permute.xlu0 1
        %2039 = vperm.xlu0 %2038, %v1989
        %v2040 = vpop.permute.xlu0 %2039
        %2042 = vset.pattern.permute.xlu0 1
        %2043 = vperm.xlu0 %2042, %v1995
        %v2044 = vpop.permute.xlu0 %2043
        %2046 = vset.pattern.permute.xlu0 1
        %2047 = vperm.xlu0 %2046, %v1999
        %v2048 = vpop.permute.xlu0 %2047
        %2050 = vset.pattern.permute.xlu0 1
        %2051 = vperm.xlu0 %2050, %v2003
        %v2052 = vpop.permute.xlu0 %2051
        %vm2054 = vcmp.gt.f32.partialorder %v2040, %v1989
        %vm2055 = vcmp.gt.f32.partialorder %v2044, %v1995
        %vm2056 = vcmp.gt.f32.partialorder %v2048, %v1999
        %vm2057 = vcmp.gt.f32.partialorder %v2052, %v2003
        %v2058 = vsel %vm2054, 1, 0
        %v2059 = vsel %vm2055, 1, 0
        %v2060 = vsel %vm2056, 1, 0
        %v2061 = vsel %vm2057, 1, 0
        %v2062 = vcvt.s32.f32 %v2058
        %v2063 = vcvt.s32.f32 %v2059
        %v2064 = vcvt.s32.f32 %v2060
        %v2065 = vcvt.s32.f32 %v2061
        %v2066 = vadd.f32 %v2034, %v2062
        %v2067 = vadd.f32 %v2035, %v2063
        %v2068 = vadd.f32 %v2036, %v2064
        %v2069 = vadd.f32 %v2037, %v2065
        %2070 = vset.pattern.permute.xlu0 2
        %2071 = vperm.xlu0 %2070, %v1989
        %v2072 = vpop.permute.xlu0 %2071
        %2074 = vset.pattern.permute.xlu0 2
        %2075 = vperm.xlu0 %2074, %v1995
        %v2076 = vpop.permute.xlu0 %2075
        %2078 = vset.pattern.permute.xlu0 2
        %2079 = vperm.xlu0 %2078, %v1999
        %v2080 = vpop.permute.xlu0 %2079
        %2082 = vset.pattern.permute.xlu0 2
        %2083 = vperm.xlu0 %2082, %v2003
        %v2084 = vpop.permute.xlu0 %2083
        %vm2086 = vcmp.gt.f32.partialorder %v2072, %v1989
        %vm2087 = vcmp.gt.f32.partialorder %v2076, %v1995
        %vm2088 = vcmp.gt.f32.partialorder %v2080, %v1999
        %vm2089 = vcmp.gt.f32.partialorder %v2084, %v2003
        %v2090 = vsel %vm2086, 1, 0
        %v2091 = vsel %vm2087, 1, 0
        %v2092 = vsel %vm2088, 1, 0
        %v2093 = vsel %vm2089, 1, 0
        %v2094 = vcvt.s32.f32 %v2090
        %v2095 = vcvt.s32.f32 %v2091
        %v2096 = vcvt.s32.f32 %v2092
        %v2097 = vcvt.s32.f32 %v2093
        %v2098 = vadd.f32 %v2066, %v2094
        %v2099 = vadd.f32 %v2067, %v2095
        %v2100 = vadd.f32 %v2068, %v2096
        %v2101 = vadd.f32 %v2069, %v2097
        %2102 = vset.pattern.permute.xlu0 3
        %2103 = vperm.xlu0 %2102, %v1989
        %v2104 = vpop.permute.xlu0 %2103
        %2106 = vset.pattern.permute.xlu0 3
        %2107 = vperm.xlu0 %2106, %v1995
        %v2108 = vpop.permute.xlu0 %2107
        %2110 = vset.pattern.permute.xlu0 3
        %2111 = vperm.xlu0 %2110, %v1999
        %v2112 = vpop.permute.xlu0 %2111
        %2114 = vset.pattern.permute.xlu0 3
        %2115 = vperm.xlu0 %2114, %v2003
        %v2116 = vpop.permute.xlu0 %2115
        %vm2118 = vcmp.gt.f32.partialorder %v2104, %v1989
        %vm2119 = vcmp.gt.f32.partialorder %v2108, %v1995
        %vm2120 = vcmp.gt.f32.partialorder %v2112, %v1999
        %vm2121 = vcmp.gt.f32.partialorder %v2116, %v2003
        %v2122 = vsel %vm2118, 1, 0
        %v2123 = vsel %vm2119, 1, 0
        %v2124 = vsel %vm2120, 1, 0
        %v2125 = vsel %vm2121, 1, 0
        %v2126 = vcvt.s32.f32 %v2122
        %v2127 = vcvt.s32.f32 %v2123
        %v2128 = vcvt.s32.f32 %v2124
        %v2129 = vcvt.s32.f32 %v2125
        %v2130 = vadd.f32 %v2098, %v2126
        %v2131 = vadd.f32 %v2099, %v2127
        %v2132 = vadd.f32 %v2100, %v2128
        %v2133 = vadd.f32 %v2101, %v2129
        %2134 = vset.pattern.permute.xlu0 4
        %2135 = vperm.xlu0 %2134, %v1989
        %v2136 = vpop.permute.xlu0 %2135
        %2138 = vset.pattern.permute.xlu0 4
        %2139 = vperm.xlu0 %2138, %v1995
        %v2140 = vpop.permute.xlu0 %2139
        %2142 = vset.pattern.permute.xlu0 4
        %2143 = vperm.xlu0 %2142, %v1999
        %v2144 = vpop.permute.xlu0 %2143
        %2146 = vset.pattern.permute.xlu0 4
        %2147 = vperm.xlu0 %2146, %v2003
        %v2148 = vpop.permute.xlu0 %2147
        %vm2150 = vcmp.gt.f32.partialorder %v2136, %v1989
        %vm2151 = vcmp.gt.f32.partialorder %v2140, %v1995
        %vm2152 = vcmp.gt.f32.partialorder %v2144, %v1999
        %vm2153 = vcmp.gt.f32.partialorder %v2148, %v2003
        %v2154 = vsel %vm2150, 1, 0
        %v2155 = vsel %vm2151, 1, 0
        %v2156 = vsel %vm2152, 1, 0
        %v2157 = vsel %vm2153, 1, 0
        %v2158 = vcvt.s32.f32 %v2154
        %v2159 = vcvt.s32.f32 %v2155
        %v2160 = vcvt.s32.f32 %v2156
        %v2161 = vcvt.s32.f32 %v2157
        %v2162 = vadd.f32 %v2130, %v2158
        %v2163 = vadd.f32 %v2131, %v2159
        %v2164 = vadd.f32 %v2132, %v2160
        %v2165 = vadd.f32 %v2133, %v2161
        %2166 = vset.pattern.permute.xlu0 5
        %2167 = vperm.xlu0 %2166, %v1989
        %v2168 = vpop.permute.xlu0 %2167
        %2170 = vset.pattern.permute.xlu0 5
        %2171 = vperm.xlu0 %2170, %v1995
        %v2172 = vpop.permute.xlu0 %2171
        %2174 = vset.pattern.permute.xlu0 5
        %2175 = vperm.xlu0 %2174, %v1999
        %v2176 = vpop.permute.xlu0 %2175
        %2178 = vset.pattern.permute.xlu0 5
        %2179 = vperm.xlu0 %2178, %v2003
        %v2180 = vpop.permute.xlu0 %2179
        %vm2182 = vcmp.gt.f32.partialorder %v2168, %v1989
        %vm2183 = vcmp.gt.f32.partialorder %v2172, %v1995
        %vm2184 = vcmp.gt.f32.partialorder %v2176, %v1999
        %vm2185 = vcmp.gt.f32.partialorder %v2180, %v2003
        %v2186 = vsel %vm2182, 1, 0
        %v2187 = vsel %vm2183, 1, 0
        %v2188 = vsel %vm2184, 1, 0
        %v2189 = vsel %vm2185, 1, 0
        %v2190 = vcvt.s32.f32 %v2186
        %v2191 = vcvt.s32.f32 %v2187
        %v2192 = vcvt.s32.f32 %v2188
        %v2193 = vcvt.s32.f32 %v2189
        %v2194 = vadd.f32 %v2162, %v2190
        %v2195 = vadd.f32 %v2163, %v2191
        %v2196 = vadd.f32 %v2164, %v2192
        %v2197 = vadd.f32 %v2165, %v2193
        %2198 = vset.pattern.permute.xlu0 6
        %2199 = vperm.xlu0 %2198, %v1989
        %v2200 = vpop.permute.xlu0 %2199
        %2202 = vset.pattern.permute.xlu0 6
        %2203 = vperm.xlu0 %2202, %v1995
        %v2204 = vpop.permute.xlu0 %2203
        %2206 = vset.pattern.permute.xlu0 6
        %2207 = vperm.xlu0 %2206, %v1999
        %v2208 = vpop.permute.xlu0 %2207
        %2210 = vset.pattern.permute.xlu0 6
        %2211 = vperm.xlu0 %2210, %v2003
        %v2212 = vpop.permute.xlu0 %2211
        %vm2214 = vcmp.gt.f32.partialorder %v2200, %v1989
        %vm2215 = vcmp.gt.f32.partialorder %v2204, %v1995
        %vm2216 = vcmp.gt.f32.partialorder %v2208, %v1999
        %vm2217 = vcmp.gt.f32.partialorder %v2212, %v2003
        %v2218 = vsel %vm2214, 1, 0
        %v2219 = vsel %vm2215, 1, 0
        %v2220 = vsel %vm2216, 1, 0
        %v2221 = vsel %vm2217, 1, 0
        %v2222 = vcvt.s32.f32 %v2218
        %v2223 = vcvt.s32.f32 %v2219
        %v2224 = vcvt.s32.f32 %v2220
        %v2225 = vcvt.s32.f32 %v2221
        %v2226 = vadd.f32 %v2194, %v2222
        %v2227 = vadd.f32 %v2195, %v2223
        %v2228 = vadd.f32 %v2196, %v2224
        %v2229 = vadd.f32 %v2197, %v2225
        %2230 = vset.pattern.permute.xlu0 7
        %2231 = vperm.xlu0 %2230, %v1989
        %v2232 = vpop.permute.xlu0 %2231
        %2234 = vset.pattern.permute.xlu0 7
        %2235 = vperm.xlu0 %2234, %v1995
        %v2236 = vpop.permute.xlu0 %2235
        %2238 = vset.pattern.permute.xlu0 7
        %2239 = vperm.xlu0 %2238, %v1999
        %v2240 = vpop.permute.xlu0 %2239
        %2242 = vset.pattern.permute.xlu0 7
        %2243 = vperm.xlu0 %2242, %v2003
        %v2244 = vpop.permute.xlu0 %2243
        %vm2246 = vcmp.gt.f32.partialorder %v2232, %v1989
        %vm2247 = vcmp.gt.f32.partialorder %v2236, %v1995
        %vm2248 = vcmp.gt.f32.partialorder %v2240, %v1999
        %vm2249 = vcmp.gt.f32.partialorder %v2244, %v2003
        %v2250 = vsel %vm2246, 1, 0
        %v2251 = vsel %vm2247, 1, 0
        %v2252 = vsel %vm2248, 1, 0
        %v2253 = vsel %vm2249, 1, 0
        %v2254 = vcvt.s32.f32 %v2250
        %v2255 = vcvt.s32.f32 %v2251
        %v2256 = vcvt.s32.f32 %v2252
        %v2257 = vcvt.s32.f32 %v2253
        %v2258 = vadd.f32 %v2226, %v2254
        %v2259 = vadd.f32 %v2227, %v2255
        %v2260 = vadd.f32 %v2228, %v2256
        %v2261 = vadd.f32 %v2229, %v2257
        %v2262 = vsel %vm1572, %v1989, -inf
        %2263 = vmax.xlane.f32.xlu0 %v2262
        %v2264 = vpop.xlane.xlu0 %2263
        %v2265 = vsel %vm1572, %v1990, -inf
        %2266 = vmax.xlane.f32.xlu0 %v2265
        %v2267 = vpop.xlane.xlu0 %2266
        %v2268 = vsel %vm1572, %v1991, -inf
        %2269 = vmax.xlane.f32.xlu0 %v2268
        %v2270 = vpop.xlane.xlu0 %2269
        %v2271 = vsel %vm1572, %v1992, -inf
        %2272 = vmax.xlane.f32.xlu0 %v2271
        %v2273 = vpop.xlane.xlu0 %2272
        %v2274 = vsub.f32 %v1989, %v2264
        %v2275 = vsub.f32 %v1990, %v2267
        %v2276 = vsub.f32 %v1991, %v2270
        %v2277 = vsub.f32 %v1992, %v2273
        %v2278 = vmul.f32 %v2274, 1.442695
        %v2279 = vpow.pop %v2278
        %v2280 = vmul.f32 %v2275, 1.442695
        %v2281 = vpow.pop %v2280
        %v2282 = vmul.f32 %v2276, 1.442695
        %v2283 = vpow.pop %v2282
        %v2284 = vmul.f32 %v2277, 1.442695
        %v2285 = vpow.pop %v2284
        %vm2286 = vcmp.lt.f32.partialorder %v2258, 4.0
        %vm2287 = vcmp.lt.f32.partialorder %v2259, 4.0
        %vm2288 = vcmp.lt.f32.partialorder %v2260, 4.0
        %vm2289 = vcmp.lt.f32.partialorder %v2261, 4.0
        %v2290 = vsel %vm2286, %v1989, inf
        %v2291 = vsel %vm2287, %v1995, inf
        %v2292 = vsel %vm2288, %v1999, inf
        %v2293 = vsel %vm2289, %v2003, inf
        %vm2294 = vcmask 64512
        %v2295 = vsel %vm2294, %v2290, inf
        %2296 = vmin.xlane.f32.xlu0 %v2295
        %v2297 = vpop.xlane.xlu0 %2296
        %v2298 = vsel %vm2294, %v2291, inf
        %2299 = vmin.xlane.f32.xlu0 %v2298
        %v2300 = vpop.xlane.xlu0 %2299
        %v2301 = vsel %vm2294, %v2292, inf
        %2302 = vmin.xlane.f32.xlu0 %v2301
        %v2303 = vpop.xlane.xlu0 %2302
        %v2304 = vsel %vm2294, %v2293, inf
        %2305 = vmin.xlane.f32.xlu0 %v2304
        %v2306 = vpop.xlane.xlu0 %2305
        %vm2307 = vcmp.ge.f32.partialorder %v1989, %v2297
        %vm2308 = vcmp.ge.f32.partialorder %v1990, %v2300
        %vm2309 = vcmp.ge.f32.partialorder %v1991, %v2303
        %vm2310 = vcmp.ge.f32.partialorder %v1992, %v2306
        %v2311 = vsel %vm2307, 1, 0
        %v2312 = vsel %vm2308, 1, 0
        %v2313 = vsel %vm2309, 1, 0
        %v2314 = vsel %vm2310, 1, 0
        %v2315 = vcvt.s32.f32 %v2311
        %v2316 = vcvt.s32.f32 %v2312
        %v2317 = vcvt.s32.f32 %v2313
        %v2318 = vcvt.s32.f32 %v2314
        %v2319 = vmul.f32 %v2315, %v2279
        %v2320 = vmul.f32 %v2316, %v2281
        %v2321 = vmul.f32 %v2317, %v2283
        %v2322 = vmul.f32 %v2318, %v2285
        %v2323 = vsel %vm1572, %v2319, 0.0
        %2324 = vadd.xlane.f32.xlu0 %v2323
        %v2325 = vpop.xlane.xlu0 %2324
        %v2326 = vsel %vm1572, %v2320, 0.0
        %2327 = vadd.xlane.f32.xlu0 %v2326
        %v2328 = vpop.xlane.xlu0 %2327
        %v2329 = vsel %vm1572, %v2321, 0.0
        %2330 = vadd.xlane.f32.xlu0 %v2329
        %v2331 = vpop.xlane.xlu0 %2330
        %v2332 = vsel %vm1572, %v2322, 0.0
        %2333 = vadd.xlane.f32.xlu0 %v2332
        %v2334 = vpop.xlane.xlu0 %2333
        %s2335 = sld [smem:[#allocation4]]
        %v2336 = vrcp.pop %v2325
        %v2337 = vrcp.pop %v2328
        %v2338 = vrcp.pop %v2331
        %v2339 = vrcp.pop %v2334
        %v2340 = vmul.f32 %v2315, %v2336
        %v2341 = vmul.f32 %v2316, %v2337
        %v2342 = vmul.f32 %v2317, %v2338
        %v2343 = vmul.f32 %v2318, %v2339
        %v2344 = vstv %s2335
        %v2345 = vmul.f32 %v2344, %v2340
        %v2346 = vmul.f32 %v2344, %v2341
        %v2347 = vmul.f32 %v2344, %v2342
        %v2348 = vmul.f32 %v2344, %v2343
        %v2349 = vadd.f32 %v2345, 0.0
        %v2350 = vadd.f32 %v2346, 0.0
        %v2351 = vadd.f32 %v2347, 0.0
        %v2352 = vadd.f32 %v2348, 0.0
        %vm2353 = vcmp.lt.f32.partialorder %v2258, 5.0
        %vm2354 = vcmp.lt.f32.partialorder %v2259, 5.0
        %vm2355 = vcmp.lt.f32.partialorder %v2260, 5.0
        %vm2356 = vcmp.lt.f32.partialorder %v2261, 5.0
        %v2357 = vsel %vm2353, %v1989, inf
        %v2358 = vsel %vm2354, %v1995, inf
        %v2359 = vsel %vm2355, %v1999, inf
        %v2360 = vsel %vm2356, %v2003, inf
        %v2361 = vsel %vm2294, %v2357, inf
        %2362 = vmin.xlane.f32.xlu0 %v2361
        %v2363 = vpop.xlane.xlu0 %2362
        %v2364 = vsel %vm2294, %v2358, inf
        %2365 = vmin.xlane.f32.xlu0 %v2364
        %v2366 = vpop.xlane.xlu0 %2365
        %v2367 = vsel %vm2294, %v2359, inf
        %2368 = vmin.xlane.f32.xlu0 %v2367
        %v2369 = vpop.xlane.xlu0 %2368
        %v2370 = vsel %vm2294, %v2360, inf
        %2371 = vmin.xlane.f32.xlu0 %v2370
        %v2372 = vpop.xlane.xlu0 %2371
        %vm2373 = vcmp.ge.f32.partialorder %v1989, %v2363
        %vm2374 = vcmp.ge.f32.partialorder %v1990, %v2366
        %vm2375 = vcmp.ge.f32.partialorder %v1991, %v2369
        %vm2376 = vcmp.ge.f32.partialorder %v1992, %v2372
        %v2377 = vsel %vm2373, 1, 0
        %v2378 = vsel %vm2374, 1, 0
        %v2379 = vsel %vm2375, 1, 0
        %v2380 = vsel %vm2376, 1, 0
        %v2381 = vcvt.s32.f32 %v2377
        %v2382 = vcvt.s32.f32 %v2378
        %v2383 = vcvt.s32.f32 %v2379
        %v2384 = vcvt.s32.f32 %v2380
        %v2385 = vmul.f32 %v2381, %v2279
        %v2386 = vmul.f32 %v2382, %v2281
        %v2387 = vmul.f32 %v2383, %v2283
        %v2388 = vmul.f32 %v2384, %v2285
        %v2389 = vsel %vm1572, %v2385, 0.0
        %2390 = vadd.xlane.f32.xlu0 %v2389
        %v2391 = vpop.xlane.xlu0 %2390
        %v2392 = vsel %vm1572, %v2386, 0.0
        %2393 = vadd.xlane.f32.xlu0 %v2392
        %v2394 = vpop.xlane.xlu0 %2393
        %v2395 = vsel %vm1572, %v2387, 0.0
        %2396 = vadd.xlane.f32.xlu0 %v2395
        %v2397 = vpop.xlane.xlu0 %2396
        %v2398 = vsel %vm1572, %v2388, 0.0
        %2399 = vadd.xlane.f32.xlu0 %v2398
        %v2400 = vpop.xlane.xlu0 %2399
        %s2401 = sld [smem:[#allocation4 + $0x1]]
        %v2402 = vrcp.pop %v2391
        %v2403 = vrcp.pop %v2394
        %v2404 = vrcp.pop %v2397
        %v2405 = vrcp.pop %v2400
        %v2406 = vmul.f32 %v2381, %v2402
        %v2407 = vmul.f32 %v2382, %v2403
        %v2408 = vmul.f32 %v2383, %v2404
        %v2409 = vmul.f32 %v2384, %v2405
        %v2410 = vstv %s2401
        %v2411 = vmul.f32 %v2410, %v2406
        %v2412 = vmul.f32 %v2410, %v2407
        %v2413 = vmul.f32 %v2410, %v2408
        %v2414 = vmul.f32 %v2410, %v2409
        %v2415 = vadd.f32 %v2349, %v2411
        %v2416 = vadd.f32 %v2350, %v2412
        %v2417 = vadd.f32 %v2351, %v2413
        %v2418 = vadd.f32 %v2352, %v2414
        %vm2419 = vcmp.lt.f32.partialorder %v2258, 6.0
        %vm2420 = vcmp.lt.f32.partialorder %v2259, 6.0
        %vm2421 = vcmp.lt.f32.partialorder %v2260, 6.0
        %vm2422 = vcmp.lt.f32.partialorder %v2261, 6.0
        %v2423 = vsel %vm2419, %v1989, inf
        %v2424 = vsel %vm2420, %v1995, inf
        %v2425 = vsel %vm2421, %v1999, inf
        %v2426 = vsel %vm2422, %v2003, inf
        %v2427 = vsel %vm2294, %v2423, inf
        %2428 = vmin.xlane.f32.xlu0 %v2427
        %v2429 = vpop.xlane.xlu0 %2428
        %v2430 = vsel %vm2294, %v2424, inf
        %2431 = vmin.xlane.f32.xlu0 %v2430
        %v2432 = vpop.xlane.xlu0 %2431
        %v2433 = vsel %vm2294, %v2425, inf
        %2434 = vmin.xlane.f32.xlu0 %v2433
        %v2435 = vpop.xlane.xlu0 %2434
        %v2436 = vsel %vm2294, %v2426, inf
        %2437 = vmin.xlane.f32.xlu0 %v2436
        %v2438 = vpop.xlane.xlu0 %2437
        %vm2439 = vcmp.ge.f32.partialorder %v1989, %v2429
        %vm2440 = vcmp.ge.f32.partialorder %v1990, %v2432
        %vm2441 = vcmp.ge.f32.partialorder %v1991, %v2435
        %vm2442 = vcmp.ge.f32.partialorder %v1992, %v2438
        %v2443 = vsel %vm2439, 1, 0
        %v2444 = vsel %vm2440, 1, 0
        %v2445 = vsel %vm2441, 1, 0
        %v2446 = vsel %vm2442, 1, 0
        %v2447 = vcvt.s32.f32 %v2443
        %v2448 = vcvt.s32.f32 %v2444
        %v2449 = vcvt.s32.f32 %v2445
        %v2450 = vcvt.s32.f32 %v2446
        %v2451 = vmul.f32 %v2447, %v2279
        %v2452 = vmul.f32 %v2448, %v2281
        %v2453 = vmul.f32 %v2449, %v2283
        %v2454 = vmul.f32 %v2450, %v2285
        %v2455 = vsel %vm1572, %v2451, 0.0
        %2456 = vadd.xlane.f32.xlu0 %v2455
        %v2457 = vpop.xlane.xlu0 %2456
        %v2458 = vsel %vm1572, %v2452, 0.0
        %2459 = vadd.xlane.f32.xlu0 %v2458
        %v2460 = vpop.xlane.xlu0 %2459
        %v2461 = vsel %vm1572, %v2453, 0.0
        %2462 = vadd.xlane.f32.xlu0 %v2461
        %v2463 = vpop.xlane.xlu0 %2462
        %v2464 = vsel %vm1572, %v2454, 0.0
        %2465 = vadd.xlane.f32.xlu0 %v2464
        %v2466 = vpop.xlane.xlu0 %2465
        %s2467 = sld [smem:[#allocation4 + $0x2]]
        %v2468 = vrcp.pop %v2457
        %v2469 = vrcp.pop %v2460
        %v2470 = vrcp.pop %v2463
        %v2471 = vrcp.pop %v2466
        %v2472 = vmul.f32 %v2447, %v2468
        %v2473 = vmul.f32 %v2448, %v2469
        %v2474 = vmul.f32 %v2449, %v2470
        %v2475 = vmul.f32 %v2450, %v2471
        %v2476 = vstv %s2467
        %v2477 = vmul.f32 %v2476, %v2472
        %v2478 = vmul.f32 %v2476, %v2473
        %v2479 = vmul.f32 %v2476, %v2474
        %v2480 = vmul.f32 %v2476, %v2475
        %v2481 = vadd.f32 %v2415, %v2477
        %v2482 = vadd.f32 %v2416, %v2478
        %v2483 = vadd.f32 %v2417, %v2479
        %v2484 = vadd.f32 %v2418, %v2480
        %s2485 = sld [smem:[#allocation4 + $0x3]]
        %v2486 = vstv %s2485
        %v2487 = vmul.f32 %v2486, %v2472
        %v2488 = vmul.f32 %v2486, %v2473
        %v2489 = vmul.f32 %v2486, %v2474
        %v2490 = vmul.f32 %v2486, %v2475
        %v2491 = vadd.f32 %v2481, %v2487
        %v2492 = vadd.f32 %v2482, %v2488
        %v2493 = vadd.f32 %v2483, %v2489
        %v2494 = vadd.f32 %v2484, %v2490
        %v2495 = vmul.f32 %v2491, %v2279
        %v2496 = vmul.f32 %v2492, %v2281
        %v2497 = vmul.f32 %v2493, %v2283
        %v2498 = vmul.f32 %v2494, %v2285
        %v2499 = vpack.c.bf16 %v2496, %v2495
        %v2500 = vpack.c.bf16 %v2498, %v2497
        %v2501 = vpack.c.bf16 0.0, 0.0
        %v2534 = vunpack.c.l.b16 %v1476
        %v2535 = vunpack.c.l.b16 %v1477
        %v2536 = vunpack.c.l.b16 %v1478
        %v2537 = vunpack.c.l.b16 %v1479
        %v2538 = vunpack.c.l.b16 %v1480
        %v2539 = vunpack.c.l.b16 %v1481
        %v2540 = vunpack.c.l.b16 %v1482
        %v2541 = vunpack.c.l.b16 %v1483
        %v2542 = vunpack.c.l.b16 %v1484
        %v2543 = vunpack.c.l.b16 %v1485
        %v2544 = vunpack.c.l.b16 %v1486
        %v2545 = vunpack.c.l.b16 %v1487
        %v2546 = vunpack.c.l.b16 %v1488
        %v2547 = vunpack.c.l.b16 %v1489
        %v2548 = vunpack.c.l.b16 %v1490
        %v2549 = vunpack.c.l.b16 %v1491
        %v2550 = vunpack.c.l.b16 %v1492
        %v2551 = vunpack.c.l.b16 %v1493
        %v2552 = vunpack.c.l.b16 %v1494
        %v2553 = vunpack.c.l.b16 %v1495
        %v2554 = vunpack.c.l.b16 %v1496
        %v2555 = vunpack.c.l.b16 %v1497
        %v2556 = vunpack.c.l.b16 %v1498
        %v2557 = vunpack.c.l.b16 %v1499
        %v2558 = vunpack.c.l.b16 %v1500
        %v2559 = vunpack.c.l.b16 %v1501
        %v2560 = vunpack.c.l.b16 %v1502
        %v2561 = vunpack.c.l.b16 %v1503
        %v2562 = vunpack.c.l.b16 %v1504
        %v2563 = vunpack.c.l.b16 %v1505
        %v2564 = vunpack.c.l.b16 %v1506
        %v2565 = vunpack.c.l.b16 %v1507
        %v2566 = vpack.c.b16 %v2535, %v2534
        %v2567 = vpack.c.b16 %v2537, %v2536
        %v2568 = vpack.c.b16 %v2539, %v2538
        %v2569 = vpack.c.b16 %v2541, %v2540
        %v2570 = vpack.c.b16 %v2543, %v2542
        %v2571 = vpack.c.b16 %v2545, %v2544
        %v2572 = vpack.c.b16 %v2547, %v2546
        %v2573 = vpack.c.b16 %v2549, %v2548
        %v2574 = vpack.c.b16 %v2551, %v2550
        %v2575 = vpack.c.b16 %v2553, %v2552
        %v2576 = vpack.c.b16 %v2555, %v2554
        %v2577 = vpack.c.b16 %v2557, %v2556
        %v2578 = vpack.c.b16 %v2559, %v2558
        %v2579 = vpack.c.b16 %v2561, %v2560
        %v2580 = vpack.c.b16 %v2563, %v2562
        %v2581 = vpack.c.b16 %v2565, %v2564
        %2582 = vrot.lane.b32.xlu0 %v2566, 64
        %v2583 = vpop.permute.xlu0 %2582
        %2584 = vrot.lane.b32.xlu0 %v2567, 64
        %v2585 = vpop.permute.xlu0 %2584
        %2586 = vrot.lane.b32.xlu0 %v2568, 64
        %v2587 = vpop.permute.xlu0 %2586
        %2588 = vrot.lane.b32.xlu0 %v2569, 64
        %v2589 = vpop.permute.xlu0 %2588
        %2590 = vrot.lane.b32.xlu0 %v2570, 64
        %v2591 = vpop.permute.xlu0 %2590
        %2592 = vrot.lane.b32.xlu0 %v2571, 64
        %v2593 = vpop.permute.xlu0 %2592
        %2594 = vrot.lane.b32.xlu0 %v2572, 64
        %v2595 = vpop.permute.xlu0 %2594
        %2596 = vrot.lane.b32.xlu0 %v2573, 64
        %v2597 = vpop.permute.xlu0 %2596
        %2598 = vrot.lane.b32.xlu0 %v2574, 64
        %v2599 = vpop.permute.xlu0 %2598
        %2600 = vrot.lane.b32.xlu0 %v2575, 64
        %v2601 = vpop.permute.xlu0 %2600
        %2602 = vrot.lane.b32.xlu0 %v2576, 64
        %v2603 = vpop.permute.xlu0 %2602
        %2604 = vrot.lane.b32.xlu0 %v2577, 64
        %v2605 = vpop.permute.xlu0 %2604
        %2606 = vrot.lane.b32.xlu0 %v2578, 64
        %v2607 = vpop.permute.xlu0 %2606
        %2608 = vrot.lane.b32.xlu0 %v2579, 64
        %v2609 = vpop.permute.xlu0 %2608
        %2610 = vrot.lane.b32.xlu0 %v2580, 64
        %v2611 = vpop.permute.xlu0 %2610
        %2612 = vrot.lane.b32.xlu0 %v2581, 64
        %v2613 = vpop.permute.xlu0 %2612
        %v2615 = vsel %vm1572, %v2583, 0
        %v2618 = vsel %vm1572, %v2585, 0
        %v2621 = vsel %vm1572, %v2587, 0
        %v2624 = vsel %vm1572, %v2589, 0
        %v2627 = vsel %vm1572, %v2591, 0
        %v2630 = vsel %vm1572, %v2593, 0
        %v2633 = vsel %vm1572, %v2595, 0
        %v2636 = vsel %vm1572, %v2597, 0
        %v2639 = vsel %vm1572, %v2599, 0
        %v2642 = vsel %vm1572, %v2601, 0
        %v2645 = vsel %vm1572, %v2603, 0
        %v2648 = vsel %vm1572, %v2605, 0
        %v2651 = vsel %vm1572, %v2607, 0
        %v2654 = vsel %vm1572, %v2609, 0
        %v2657 = vsel %vm1572, %v2611, 0
        %v2660 = vsel %vm1572, %v2613, 0
        %v2663 = vsel %vm1572, %v2499, 0
        %v2666 = vsel %vm1572, %v2500, 0
        %v2669 = vsel %vm1572, %v2501, 0
        %2671 = vmatprep.subr.bf16.mxu0 0
        %2672 = vmatpush1.bf16.xpose.msra.mxu0 %v2669
        %2673 = vmatprep.subr.bf16.mxu0 0
        %2674 = vmatpush1.bf16.xpose.msra.mxu0 %v2669
        %2675 = vmatprep.subr.bf16.mxu0 0
        %2676 = vmatpush1.bf16.xpose.msra.mxu0 %v2669
        %2677 = vmatprep.subr.bf16.mxu0 0
        %2678 = vmatpush1.bf16.xpose.msra.mxu0 %v2669
        %2679 = vmatprep.subr.bf16.mxu0 0
        %2680 = vmatpush1.bf16.xpose.msra.mxu0 %v2669
        %2681 = vmatprep.subr.bf16.mxu0 0
        %2682 = vmatpush1.bf16.xpose.msra.mxu0 %v2669
        %2683 = vmatprep.subr.bf16.mxu0 0
        %2684 = vmatpush1.bf16.xpose.msra.mxu0 %v2666
        %2685 = vmatprep.subr.bf16.mxu0 0
        %2686 = vmatpush1.bf16.xpose.msra.mxu0 %v2663
        %2687 = vmatprep.subr.bf16.mxu0 0
        %2688 = vmatpush2.bf16.xpose.msra.mxu0 0
        %2689 = vmatprep.subr.bf16.mxu0 0
        %2690 = vmatpush2.bf16.xpose.msra.mxu0 0
        %2691 = vmatprep.subr.bf16.mxu0 0
        %2692 = vmatpush2.bf16.xpose.msra.mxu0 0
        %2693 = vmatprep.subr.bf16.mxu0 0
        %2694 = vmatpush2.bf16.xpose.msra.mxu0 0
        %2695 = vmatprep.subr.bf16.mxu0 0
        %2696 = vmatpush2.bf16.xpose.msra.mxu0 0
        %2697 = vmatprep.subr.bf16.mxu0 0
        %2698 = vmatpush2.bf16.xpose.msra.mxu0 0
        %2699 = vmatprep.subr.bf16.mxu0 0
        %2700 = vmatpush2.bf16.xpose.msra.mxu0 0
        %2701 = vmatprep.subr.bf16.mxu0 0
        %2702 = vmatpush2.bf16.xpose.msra.mxu0 0
        %2703 = vmatprep.mubr.bf16.mxu0 0
        %2704 = vmatmul.mubr.bf16.gmra.mxu0 %v2615
        %v2705 = vpop.f32.mrf.mxu0
        %v2706 = vadd.f32 0.0, %v2705
        %v2707 = vpop.f32.mrf.mxu0
        %v2708 = vpop.f32.mrf.mxu0
        %v2709 = vadd.f32 0.0, %v2708
        %v2710 = vpop.f32.mrf.mxu0
        %2711 = vmatprep.mubr.bf16.mxu0 0
        %2712 = vmatmul.mubr.bf16.gmra.mxu0 %v2618
        %v2713 = vpop.f32.mrf.mxu0
        %v2714 = vadd.f32 0.0, %v2713
        %v2715 = vpop.f32.mrf.mxu0
        %v2716 = vpop.f32.mrf.mxu0
        %v2717 = vadd.f32 0.0, %v2716
        %v2718 = vpop.f32.mrf.mxu0
        %2719 = vmatprep.mubr.bf16.mxu0 0
        %2720 = vmatmul.mubr.bf16.gmra.mxu0 %v2621
        %v2721 = vpop.f32.mrf.mxu0
        %v2722 = vadd.f32 0.0, %v2721
        %v2723 = vpop.f32.mrf.mxu0
        %v2724 = vpop.f32.mrf.mxu0
        %v2725 = vadd.f32 0.0, %v2724
        %v2726 = vpop.f32.mrf.mxu0
        %2727 = vmatprep.mubr.bf16.mxu0 0
        %2728 = vmatmul.mubr.bf16.gmra.mxu0 %v2624
        %v2729 = vpop.f32.mrf.mxu0
        %v2730 = vadd.f32 0.0, %v2729
        %v2731 = vpop.f32.mrf.mxu0
        %v2732 = vpop.f32.mrf.mxu0
        %v2733 = vadd.f32 0.0, %v2732
        %v2734 = vpop.f32.mrf.mxu0
        %2735 = vmatprep.mubr.bf16.mxu0 0
        %2736 = vmatmul.mubr.bf16.gmra.mxu0 %v2627
        %v2737 = vpop.f32.mrf.mxu0
        %v2738 = vadd.f32 0.0, %v2737
        %v2739 = vpop.f32.mrf.mxu0
        %v2740 = vpop.f32.mrf.mxu0
        %v2741 = vadd.f32 0.0, %v2740
        %v2742 = vpop.f32.mrf.mxu0
        %2743 = vmatprep.mubr.bf16.mxu0 0
        %2744 = vmatmul.mubr.bf16.gmra.mxu0 %v2630
        %v2745 = vpop.f32.mrf.mxu0
        %v2746 = vadd.f32 0.0, %v2745
        %v2747 = vpop.f32.mrf.mxu0
        %v2748 = vpop.f32.mrf.mxu0
        %v2749 = vadd.f32 0.0, %v2748
        %v2750 = vpop.f32.mrf.mxu0
        %2751 = vmatprep.mubr.bf16.mxu0 0
        %2752 = vmatmul.mubr.bf16.gmra.mxu0 %v2633
        %v2753 = vpop.f32.mrf.mxu0
        %v2754 = vadd.f32 0.0, %v2753
        %v2755 = vpop.f32.mrf.mxu0
        %v2756 = vpop.f32.mrf.mxu0
        %v2757 = vadd.f32 0.0, %v2756
        %v2758 = vpop.f32.mrf.mxu0
        %2759 = vmatprep.mubr.bf16.mxu0 0
        %2760 = vmatmul.mubr.bf16.gmra.mxu0 %v2636
        %v2761 = vpop.f32.mrf.mxu0
        %v2762 = vadd.f32 0.0, %v2761
        %v2763 = vpop.f32.mrf.mxu0
        %v2764 = vpop.f32.mrf.mxu0
        %v2765 = vadd.f32 0.0, %v2764
        %v2766 = vpop.f32.mrf.mxu0
        %2767 = vmatprep.mubr.bf16.mxu0 0
        %2768 = vmatmul.mubr.bf16.gmra.mxu0 %v2639
        %v2769 = vpop.f32.mrf.mxu0
        %v2770 = vadd.f32 0.0, %v2769
        %v2771 = vpop.f32.mrf.mxu0
        %v2772 = vpop.f32.mrf.mxu0
        %v2773 = vadd.f32 0.0, %v2772
        %v2774 = vpop.f32.mrf.mxu0
        %2775 = vmatprep.mubr.bf16.mxu0 0
        %2776 = vmatmul.mubr.bf16.gmra.mxu0 %v2642
        %v2777 = vpop.f32.mrf.mxu0
        %v2778 = vadd.f32 0.0, %v2777
        %v2779 = vpop.f32.mrf.mxu0
        %v2780 = vpop.f32.mrf.mxu0
        %v2781 = vadd.f32 0.0, %v2780
        %v2782 = vpop.f32.mrf.mxu0
        %2783 = vmatprep.mubr.bf16.mxu0 0
        %2784 = vmatmul.mubr.bf16.gmra.mxu0 %v2645
        %v2785 = vpop.f32.mrf.mxu0
        %v2786 = vadd.f32 0.0, %v2785
        %v2787 = vpop.f32.mrf.mxu0
        %v2788 = vpop.f32.mrf.mxu0
        %v2789 = vadd.f32 0.0, %v2788
        %v2790 = vpop.f32.mrf.mxu0
        %2791 = vmatprep.mubr.bf16.mxu0 0
        %2792 = vmatmul.mubr.bf16.gmra.mxu0 %v2648
        %v2793 = vpop.f32.mrf.mxu0
        %v2794 = vadd.f32 0.0, %v2793
        %v2795 = vpop.f32.mrf.mxu0
        %v2796 = vpop.f32.mrf.mxu0
        %v2797 = vadd.f32 0.0, %v2796
        %v2798 = vpop.f32.mrf.mxu0
        %2799 = vmatprep.mubr.bf16.mxu0 0
        %2800 = vmatmul.mubr.bf16.gmra.mxu0 %v2651
        %v2801 = vpop.f32.mrf.mxu0
        %v2802 = vadd.f32 0.0, %v2801
        %v2803 = vpop.f32.mrf.mxu0
        %v2804 = vpop.f32.mrf.mxu0
        %v2805 = vadd.f32 0.0, %v2804
        %v2806 = vpop.f32.mrf.mxu0
        %2807 = vmatprep.mubr.bf16.mxu0 0
        %2808 = vmatmul.mubr.bf16.gmra.mxu0 %v2654
        %v2809 = vpop.f32.mrf.mxu0
        %v2810 = vadd.f32 0.0, %v2809
        %v2811 = vpop.f32.mrf.mxu0
        %v2812 = vpop.f32.mrf.mxu0
        %v2813 = vadd.f32 0.0, %v2812
        %v2814 = vpop.f32.mrf.mxu0
        %2815 = vmatprep.mubr.bf16.mxu0 0
        %2816 = vmatmul.mubr.bf16.gmra.mxu0 %v2657
        %v2817 = vpop.f32.mrf.mxu0
        %v2818 = vadd.f32 0.0, %v2817
        %v2819 = vpop.f32.mrf.mxu0
        %v2820 = vpop.f32.mrf.mxu0
        %v2821 = vadd.f32 0.0, %v2820
        %v2822 = vpop.f32.mrf.mxu0
        %2823 = vmatprep.mubr.bf16.mxu0 0
        %2824 = vmatmul.mubr.bf16.gmra.mxu0 %v2660
        %v2825 = vpop.f32.mrf.mxu0
        %v2826 = vadd.f32 0.0, %v2825
        %v2827 = vpop.f32.mrf.mxu0
        %v2828 = vpop.f32.mrf.mxu0
        %v2829 = vadd.f32 0.0, %v2828
        %v2830 = vpop.f32.mrf.mxu0
        %2831 = vdwg.mxu0
        %v2832 = vpack.c.bf16 %v2709, %v2706
        %v2833 = vpack.c.bf16 %v2717, %v2714
        %v2834 = vpack.c.bf16 %v2725, %v2722
        %v2835 = vpack.c.bf16 %v2733, %v2730
        %v2836 = vpack.c.bf16 %v2741, %v2738
        %v2837 = vpack.c.bf16 %v2749, %v2746
        %v2838 = vpack.c.bf16 %v2757, %v2754
        %v2839 = vpack.c.bf16 %v2765, %v2762
        %v2840 = vpack.c.bf16 %v2773, %v2770
        %v2841 = vpack.c.bf16 %v2781, %v2778
        %v2842 = vpack.c.bf16 %v2789, %v2786
        %v2843 = vpack.c.bf16 %v2797, %v2794
        %v2844 = vpack.c.bf16 %v2805, %v2802
        %v2845 = vpack.c.bf16 %v2813, %v2810
        %v2846 = vpack.c.bf16 %v2821, %v2818
        %v2847 = vpack.c.bf16 %v2829, %v2826
        %v2864 = vunpack.c.l.b16 %v2832
        %v2865 = vunpack.c.h.b16 %v2832
        %v2866 = vunpack.c.l.b16 %v2833
        %v2867 = vunpack.c.h.b16 %v2833
        %v2868 = vunpack.c.l.b16 %v2834
        %v2869 = vunpack.c.h.b16 %v2834
        %v2870 = vunpack.c.l.b16 %v2835
        %v2871 = vunpack.c.h.b16 %v2835
        %v2872 = vunpack.c.l.b16 %v2836
        %v2873 = vunpack.c.h.b16 %v2836
        %v2874 = vunpack.c.l.b16 %v2837
        %v2875 = vunpack.c.h.b16 %v2837
        %v2876 = vunpack.c.l.b16 %v2838
        %v2877 = vunpack.c.h.b16 %v2838
        %v2878 = vunpack.c.l.b16 %v2839
        %v2879 = vunpack.c.h.b16 %v2839
        %v2880 = vunpack.c.l.b16 %v2840
        %v2881 = vunpack.c.h.b16 %v2840
        %v2882 = vunpack.c.l.b16 %v2841
        %v2883 = vunpack.c.h.b16 %v2841
        %v2884 = vunpack.c.l.b16 %v2842
        %v2885 = vunpack.c.h.b16 %v2842
        %v2886 = vunpack.c.l.b16 %v2843
        %v2887 = vunpack.c.h.b16 %v2843
        %v2888 = vunpack.c.l.b16 %v2844
        %v2889 = vunpack.c.h.b16 %v2844
        %v2890 = vunpack.c.l.b16 %v2845
        %v2891 = vunpack.c.h.b16 %v2845
        %v2892 = vunpack.c.l.b16 %v2846
        %v2893 = vunpack.c.h.b16 %v2846
        %v2894 = vunpack.c.l.b16 %v2847
        %v2895 = vunpack.c.h.b16 %v2847
        %v2896 = vpack.c.b16 %v2864, %v2864
        %v2897 = vpack.c.b16 %v2865, %v2865
        %v2898 = vpack.c.b16 %v2866, %v2866
        %v2899 = vpack.c.b16 %v2867, %v2867
        %v2900 = vpack.c.b16 %v2868, %v2868
        %v2901 = vpack.c.b16 %v2869, %v2869
        %v2902 = vpack.c.b16 %v2870, %v2870
        %v2903 = vpack.c.b16 %v2871, %v2871
        %v2904 = vpack.c.b16 %v2872, %v2872
        %v2905 = vpack.c.b16 %v2873, %v2873
        %v2906 = vpack.c.b16 %v2874, %v2874
        %v2907 = vpack.c.b16 %v2875, %v2875
        %v2908 = vpack.c.b16 %v2876, %v2876
        %v2909 = vpack.c.b16 %v2877, %v2877
        %v2910 = vpack.c.b16 %v2878, %v2878
        %v2911 = vpack.c.b16 %v2879, %v2879
        %v2912 = vpack.c.b16 %v2880, %v2880
        %v2913 = vpack.c.b16 %v2881, %v2881
        %v2914 = vpack.c.b16 %v2882, %v2882
        %v2915 = vpack.c.b16 %v2883, %v2883
        %v2916 = vpack.c.b16 %v2884, %v2884
        %v2917 = vpack.c.b16 %v2885, %v2885
        %v2918 = vpack.c.b16 %v2886, %v2886
        %v2919 = vpack.c.b16 %v2887, %v2887
        %v2920 = vpack.c.b16 %v2888, %v2888
        %v2921 = vpack.c.b16 %v2889, %v2889
        %v2922 = vpack.c.b16 %v2890, %v2890
        %v2923 = vpack.c.b16 %v2891, %v2891
        %v2924 = vpack.c.b16 %v2892, %v2892
        %v2925 = vpack.c.b16 %v2893, %v2893
        %v2926 = vpack.c.b16 %v2894, %v2894
        %v2927 = vpack.c.b16 %v2895, %v2895
        %2960 = vst [vmem:[%s238] sm:$0xf] %v2896
        %2961 = vst [vmem:[%s238 + $0x4] sm:$0xf] %v2897
        %2962 = vst [vmem:[%s238 + $0x8] sm:$0xf] %v2898
        %2963 = vst [vmem:[%s238 + $0xc] sm:$0xf] %v2899
        %2964 = vst [vmem:[%s238 + $0x10] sm:$0xf] %v2900
        %2965 = vst [vmem:[%s238 + $0x14] sm:$0xf] %v2901
        %2966 = vst [vmem:[%s238 + $0x18] sm:$0xf] %v2902
        %2967 = vst [vmem:[%s238 + $0x1c] sm:$0xf] %v2903
        %2968 = vst [vmem:[%s238 + $0x20] sm:$0xf] %v2904
        %2969 = vst [vmem:[%s238 + $0x24] sm:$0xf] %v2905
        %2970 = vst [vmem:[%s238 + $0x28] sm:$0xf] %v2906
        %2971 = vst [vmem:[%s238 + $0x2c] sm:$0xf] %v2907
        %2972 = vst [vmem:[%s238 + $0x30] sm:$0xf] %v2908
        %2973 = vst [vmem:[%s238 + $0x34] sm:$0xf] %v2909
        %2974 = vst [vmem:[%s238 + $0x38] sm:$0xf] %v2910
        %2975 = vst [vmem:[%s238 + $0x3c] sm:$0xf] %v2911
        %2976 = vst [vmem:[%s238 + $0x40] sm:$0xf] %v2912
        %2977 = vst [vmem:[%s238 + $0x44] sm:$0xf] %v2913
        %2978 = vst [vmem:[%s238 + $0x48] sm:$0xf] %v2914
        %2979 = vst [vmem:[%s238 + $0x4c] sm:$0xf] %v2915
        %2980 = vst [vmem:[%s238 + $0x50] sm:$0xf] %v2916
        %2981 = vst [vmem:[%s238 + $0x54] sm:$0xf] %v2917
        %2982 = vst [vmem:[%s238 + $0x58] sm:$0xf] %v2918
        %2983 = vst [vmem:[%s238 + $0x5c] sm:$0xf] %v2919
        %2984 = vst [vmem:[%s238 + $0x60] sm:$0xf] %v2920
        %2985 = vst [vmem:[%s238 + $0x64] sm:$0xf] %v2921
        %2986 = vst [vmem:[%s238 + $0x68] sm:$0xf] %v2922
        %2987 = vst [vmem:[%s238 + $0x6c] sm:$0xf] %v2923
        %2988 = vst [vmem:[%s238 + $0x70] sm:$0xf] %v2924
        %2989 = vst [vmem:[%s238 + $0x74] sm:$0xf] %v2925
        %2990 = vst [vmem:[%s238 + $0x78] sm:$0xf] %v2926
        %2991 = vst [vmem:[%s238 + $0x7c] sm:$0xf] %v2927
        %p2992 = scmp.lt.s32.totalorder %s17, 1
        %s2993 = scalar_select %p2992, %s17, 1
        %s2994 = smul.addr %s2993, 32
        %s2995 = smul.addr %s2994, 4
        %s2996 = scalar_lea.vmem %s5, %s2995
        // Predicated region
        $region45: #{attention_forward.4} parent=39 // pred_check
          %p2997 = pneg %p145
        $region46: #{attention_forward.4} parent=39 // pred_check_branch
          %2999 = sbr.rel (%p2997) target = $region48
        $region47: #{attention_forward.4} parent=39 // pred_region
          _
        $region48: #{attention_forward.4} parent=39 // pred_fallthru
          _
      $region40: #{attention_forward.4} parent=5 // pred_fallthru
        _
      %p3000 = scmp.le.s32.totalorder 2, %s12
      // Predicated region
      $region49: #{attention_forward.4} parent=5 // pred_check
        %p3001 = pneg %p3000
      $region50: #{attention_forward.4} parent=5 // pred_check_branch
        %3003 = sbr.rel (%p3001) target = $region52
      $region51: #{attention_forward.4} parent=5 // pred_region
        %s3004 = ssub.s32 %s12, 2
        // Predicated region
        $region53: #{attention_forward.4} parent=51 // pred_check
          %p3005 = pneg %p151
        $region54: #{attention_forward.4} parent=51 // pred_check_branch
          %3007 = sbr.rel (%p3005) target = $region56
        $region55: #{attention_forward.4} parent=51 // pred_region
          %p3008 = scmp.lt.s32.totalorder %s18, 1
          %s3009 = scalar_select %p3008, %s18, 1
          %s3010 = smul.addr %s3009, 32
          %s3011 = smul.addr %s3010, 4
          %s3012 = scalar_lea.vmem %s5, %s3011
        $region56: #{attention_forward.4} parent=51 // pred_fallthru
          _
      $region52: #{attention_forward.4} parent=5 // pred_fallthru
        _
    $region6: #{attention_forward.4} parent=1 // loop_footer
      %s16 = sadd.s32 1, %s12
    $region7: #{attention_forward.4} parent=1 // loop_footer_branch
      %11 = sbr.rel target = $region3
    $region8: #{attention_forward.4} parent=1 // loop_exit
      _
    %3013 = vsyncpa [#allocation5], 1
    %s3014 = scalar_lea.sflag [#allocation5], 1
    %3015 = vsyncpa %s3014, 1

</llo_original>
